<compile_context>
chip_gen: v6e
topology: v6e:2x2x1
jax: 0.10.0
libtpu: 0.0.40
codegen_flags: <defaults>
</compile_context>

<pallas_src>
import jax
import jax.numpy as jnp
from jax.experimental import pallas as pl
from jax.experimental.pallas import tpu as pltpu


# ----------------------------- Fused Pallas kernel --------------------------

def make_fused_kernel(T, B, H):
    """Builds the fused 3xGRU + MLP kernel for static (T, B, H)."""

    def kernel(x_ref, wih0_ref, wih12_ref, whh_ref, bfused_ref, bhhn_ref,
               m1_ref, m2_ref, m3_ref, m4_ref, o_ref):

        def gru_layer(x_flat, wih, layer):
            whh = whh_ref[layer]                       # (H, 3H)
            bfused = bfused_ref[layer:layer + 1, :]    # (1, 3H)  bih + [bhh_r, bhh_z, 0]
            bhh_n = bhhn_ref[layer:layer + 1, :]       # (1, H)

            # ---- hoisted, batched input projection over all T*B rows ----
            gx = jnp.dot(x_flat, wih,
                         preferred_element_type=jnp.float32) + bfused
            gx_rz = gx[:, 0:2 * H]                     # (T*B, 2H)
            gx_n = gx[:, 2 * H:3 * H]                  # (T*B, H)

            hs = []

            # ---- t = 0: h_prev == 0, the recurrent matmul vanishes ----
            rz = jax.nn.sigmoid(gx_rz[0:B])
            r = rz[:, 0:H]
            z = rz[:, H:2 * H]
            n = jnp.tanh(gx_n[0:B] + r * bhh_n)
            h = (1.0 - z) * n
            hs.append(h)

            # ---- unrolled serial recurrence (T static & small) ----
            for t in range(1, T):
                gh = jnp.dot(h, whh,
                             preferred_element_type=jnp.float32)  # (B, 3H)
                rz = jax.nn.sigmoid(gx_rz[t * B:(t + 1) * B] + gh[:, 0:2 * H])
                r = rz[:, 0:H]
                z = rz[:, H:2 * H]
                n = jnp.tanh(gx_n[t * B:(t + 1) * B]
                             + r * (gh[:, 2 * H:3 * H] + bhh_n))
                h = (1.0 - z) * n + z * h
                hs.append(h)

            # Single concat per layer; states never leave vregs in between.
            return jnp.concatenate(hs, axis=0)         # (T*B, H) time-major

        x0 = x_ref[...].astype(jnp.float32)            # (T*B, D), time-major
        y = gru_layer(x0, wih0_ref[...], 0)
        y = gru_layer(y, wih12_ref[0], 1)
        y = gru_layer(y, wih12_ref[1], 2)

        # ---- fused MLP head on all T*B rows (W and b packed in one slab) ----
        def linear(v, slab_ref):
            fan_in = slab_ref.shape[0] - 1
            w = slab_ref[0:fan_in, :]                  # (fan_in, fan_out)
            b = slab_ref[fan_in:fan_in + 1, :]         # (1, fan_out)
            return jnp.dot(v, w, preferred_element_type=jnp.float32) + b

        h1 = jnp.maximum(linear(y, m1_ref), 0.0)
        h2 = jnp.maximum(linear(h1, m2_ref), 0.0)
        h3 = jnp.maximum(linear(h2, m3_ref), 0.0)
        o_ref[...] = jax.nn.sigmoid(linear(h3, m4_ref)).astype(o_ref.dtype)

    return kernel


# ------------------------- One-time parameter packing -----------------------

def pack_params(params):
    """Transpose / fold / slab-pack parameters ONCE (not per forward call)."""
    H = params["gru"][0][1].shape[1]

    wih_list, whh_list, bfused_list, bhhn_list = [], [], [], []
    for (wih, whh, bih, bhh) in params["gru"]:
        wih_list.append(wih.T)                                     # (D_in, 3H)
        whh_list.append(whh.T)                                     # (H, 3H)
        # r/z recurrent biases sit outside the reset multiply -> fold them
        # into the input-projection bias; keep bhh_n separate.
        bfused_list.append(bih + jnp.concatenate(
            [bhh[:2 * H], jnp.zeros((H,), jnp.float32)]))          # (3H,)
        bhhn_list.append(bhh[2 * H:])                              # (H,)

    mlp_slabs = []
    for (w, b) in params["mlp"]:
        # Slab rows [0:fan_in] = W^T, last row = bias.
        mlp_slabs.append(jnp.concatenate([w.T, b[None, :]], axis=0))

    return {
        "wih0": wih_list[0],                            # (D, 3H)
        "wih12": jnp.stack(wih_list[1:], axis=0),       # (2, H, 3H)
        "whh": jnp.stack(whh_list, axis=0),             # (3, H, 3H)
        "bfused": jnp.stack(bfused_list, axis=0),       # (3, 3H)
        "bhhn": jnp.stack(bhhn_list, axis=0),           # (3, H)
        "mlp": tuple(mlp_slabs),                        # 4 x (fan_in+1, fan_out)
    }


# --------------------------------- Wrapper -----------------------------------

def simple_rnn_forward(packed, x):
    """x: (B, T, input_size), batch_first like the PyTorch module."""
    B, T, D = x.shape
    H = packed["whh"].shape[1]
    out_dim = packed["mlp"][-1].shape[1]

    # Time-major flat rows: row index = t*B + b (tiny XLA transpose).
    x_tm = jnp.transpose(x, (1, 0, 2)).reshape(T * B, D).astype(jnp.float32)

    vmem = pl.BlockSpec(memory_space=pltpu.MemorySpace.VMEM)
    args = (x_tm, packed["wih0"], packed["wih12"], packed["whh"],
            packed["bfused"], packed["bhhn"], *packed["mlp"])

    out_flat = pl.pallas_call(
        make_fused_kernel(T, B, H),
        out_shape=jax.ShapeDtypeStruct((T * B, out_dim), jnp.float32),
        in_specs=[vmem] * len(args),
        out_specs=vmem,
    )(*args)

    return jnp.transpose(out_flat.reshape(T, B, out_dim), (1, 0, 2))


# --------------------------- Parameter init (PyTorch layout) ----------------

def init_params(key, input_size, hidden_size, output_size):
    h1, h2, h3 = 80, 40, 20

    def uniform(key, shape, bound):
        return jax.random.uniform(key, shape, jnp.float32, -bound, bound)

    params = {"gru": [], "mlp": []}
    k_gru = 1.0 / jnp.sqrt(float(hidden_size))
    d_in = input_size
    for _ in range(3):
        key, k1, k2, k3, k4 = jax.random.split(key, 5)
        params["gru"].append((
            uniform(k1, (3 * hidden_size, d_in), k_gru),
            uniform(k2, (3 * hidden_size, hidden_size), k_gru),
            uniform(k3, (3 * hidden_size,), k_gru),
            uniform(k4, (3 * hidden_size,), k_gru),
        ))
        d_in = hidden_size

    for fan_in, fan_out in ((hidden_size, h1), (h1, h2), (h2, h3),
                            (h3, output_size)):
        key, kw, kb = jax.random.split(key, 3)
        bound = 1.0 / jnp.sqrt(float(fan_in))
        params["mlp"].append((uniform(kw, (fan_out, fan_in), bound),
                              uniform(kb, (fan_out,), bound)))
    return params


# ----------------------------- Pure-JAX reference ---------------------------

def reference_forward(params, x):
    def gru_ref(x, wih, whh, bih, bhh):
        B, T, _ = x.shape
        H = whh.shape[1]
        h = jnp.zeros((B, H), jnp.float32)
        outs = []
        for t in range(T):
            gx = x[:, t, :] @ wih.T + bih
            gh = h @ whh.T + bhh
            r = jax.nn.sigmoid(gx[:, :H] + gh[:, :H])
            z = jax.nn.sigmoid(gx[:, H:2 * H] + gh[:, H:2 * H])
            n = jnp.tanh(gx[:, 2 * H:] + r * gh[:, 2 * H:])
            h = (1.0 - z) * n + z * h
            outs.append(h)
        return jnp.stack(outs, axis=1)

    y = x
    for (wih, whh, bih, bhh) in params["gru"]:
        y = gru_ref(y, wih, whh, bih, bhh)
    for i, (w, b) in enumerate(params["mlp"]):
        y = y @ w.T + b
        y = jax.nn.sigmoid(y) if i == 3 else jnp.maximum(y, 0.0)
    return y


# --------------------------------- Main -------------------------------------

if __name__ == "__main__":
    B, T = 2, 8
    input_size, hidden_size, output_size = 16, 32, 4

    key = jax.random.PRNGKey(0)
    key, kx, kp = jax.random.split(key, 3)
    x = jax.random.normal(kx, (B, T, input_size), jnp.float32)
    params = init_params(kp, input_size, hidden_size, output_size)

    packed = pack_params(params)                 # one-time packing (hoisted)
    fwd = jax.jit(simple_rnn_forward)

    out = jax.block_until_ready(fwd(packed, x))

    ref = reference_forward(params, x)
    assert out.shape == (B, T, output_size), out.shape
    assert jnp.allclose(out, ref, atol=2e-3, rtol=2e-3), \
        f"max abs err {jnp.max(jnp.abs(out - ref))}"

    print("KERNEL_OK")
</pallas_src>

<mosaic_0001>
module attributes {stable_mosaic.version = 11 : i64} {
  func.func @kernel(%arg0: memref<16x16xf32, #tpu.memory_space<vmem>>, %arg1: memref<16x96xf32, #tpu.memory_space<vmem>>, %arg2: memref<2x32x96xf32, #tpu.memory_space<vmem>>, %arg3: memref<3x32x96xf32, #tpu.memory_space<vmem>>, %arg4: memref<3x96xf32, #tpu.memory_space<vmem>>, %arg5: memref<3x32xf32, #tpu.memory_space<vmem>>, %arg6: memref<33x80xf32, #tpu.memory_space<vmem>>, %arg7: memref<81x40xf32, #tpu.memory_space<vmem>>, %arg8: memref<41x20xf32, #tpu.memory_space<vmem>>, %arg9: memref<21x4xf32, #tpu.memory_space<vmem>>, %arg10: memref<16x4xf32, #tpu.memory_space<vmem>>) attributes {dimension_semantics = [], scalar_prefetch = 0 : i64, scratch_operands = 0 : i64, tpu.core_type = #tpu.core_type<tc>} {
    %c0 = arith.constant 0 : index
    %c0_0 = arith.constant 0 : index
    %0 = vector.load %arg0[%c0, %c0_0] : memref<16x16xf32, #tpu.memory_space<vmem>>, vector<16x16xf32>
    %c0_1 = arith.constant 0 : index
    %c0_2 = arith.constant 0 : index
    %1 = vector.load %arg1[%c0_1, %c0_2] : memref<16x96xf32, #tpu.memory_space<vmem>>, vector<16x96xf32>
    %c0_3 = arith.constant 0 : index
    %c0_4 = arith.constant 0 : index
    %c0_5 = arith.constant 0 : index
    %2 = vector.load %arg3[%c0_3, %c0_4, %c0_5] : memref<3x32x96xf32, #tpu.memory_space<vmem>>, vector<1x32x96xf32>
    %3 = vector.shape_cast %2 : vector<1x32x96xf32> to vector<32x96xf32>
    %c0_6 = arith.constant 0 : index
    %c0_7 = arith.constant 0 : index
    %4 = vector.load %arg4[%c0_6, %c0_7] : memref<3x96xf32, #tpu.memory_space<vmem>>, vector<1x96xf32>
    %c0_8 = arith.constant 0 : index
    %c0_9 = arith.constant 0 : index
    %5 = vector.load %arg5[%c0_8, %c0_9] : memref<3x32xf32, #tpu.memory_space<vmem>>, vector<1x32xf32>
    %cst = arith.constant dense<0.000000e+00> : vector<16x96xf32>
    %6 = tpu.matmul %0, %1, %cst {dimension_numbers = #tpu.dot_dimension_numbers<[1], [0], [0], [1], [0, 0, 1, 1], [], []>} : vector<16x16xf32>, vector<16x96xf32>, vector<16x96xf32> -> vector<16x96xf32>
    %7 = vector.broadcast %4 : vector<1x96xf32> to vector<16x96xf32>
    %8 = arith.addf %6, %7 : vector<16x96xf32>
    %9 = vector.extract_strided_slice %8 {offsets = [0, 0], sizes = [16, 64], strides = [1, 1]} : vector<16x96xf32> to vector<16x64xf32>
    %10 = vector.extract_strided_slice %8 {offsets = [0, 64], sizes = [16, 32], strides = [1, 1]} : vector<16x96xf32> to vector<16x32xf32>
    %11 = vector.extract_strided_slice %9 {offsets = [0, 0], sizes = [2, 64], strides = [1, 1]} : vector<16x64xf32> to vector<2x64xf32>
    %12 = arith.negf %11 : vector<2x64xf32>
    %13 = math.exp %12 : vector<2x64xf32>
    %cst_10 = arith.constant 1.000000e+00 : f32
    %14 = vector.broadcast %cst_10 : f32 to vector<2x64xf32>
    %15 = arith.addf %14, %13 : vector<2x64xf32>
    %16 = arith.divf %14, %15 : vector<2x64xf32>
    %17 = vector.extract_strided_slice %16 {offsets = [0, 0], sizes = [2, 32], strides = [1, 1]} : vector<2x64xf32> to vector<2x32xf32>
    %18 = vector.extract_strided_slice %16 {offsets = [0, 32], sizes = [2, 32], strides = [1, 1]} : vector<2x64xf32> to vector<2x32xf32>
    %19 = vector.extract_strided_slice %10 {offsets = [0, 0], sizes = [2, 32], strides = [1, 1]} : vector<16x32xf32> to vector<2x32xf32>
    %20 = vector.broadcast %5 : vector<1x32xf32> to vector<2x32xf32>
    %21 = arith.mulf %17, %20 : vector<2x32xf32>
    %22 = arith.addf %19, %21 : vector<2x32xf32>
    %23 = math.tanh %22 : vector<2x32xf32>
    %cst_11 = arith.constant 1.000000e+00 : f32
    %24 = vector.broadcast %cst_11 : f32 to vector<2x32xf32>
    %25 = arith.subf %24, %18 : vector<2x32xf32>
    %26 = arith.mulf %25, %23 : vector<2x32xf32>
    %cst_12 = arith.constant dense<0.000000e+00> : vector<2x96xf32>
    %27 = tpu.matmul %26, %3, %cst_12 {dimension_numbers = #tpu.dot_dimension_numbers<[1], [0], [0], [1], [0, 0, 1, 1], [], []>} : vector<2x32xf32>, vector<32x96xf32>, vector<2x96xf32> -> vector<2x96xf32>
    %28 = vector.extract_strided_slice %9 {offsets = [2, 0], sizes = [2, 64], strides = [1, 1]} : vector<16x64xf32> to vector<2x64xf32>
    %29 = vector.extract_strided_slice %27 {offsets = [0, 0], sizes = [2, 64], strides = [1, 1]} : vector<2x96xf32> to vector<2x64xf32>
    %30 = arith.addf %28, %29 : vector<2x64xf32>
    %31 = arith.negf %30 : vector<2x64xf32>
    %32 = math.exp %31 : vector<2x64xf32>
    %cst_13 = arith.constant 1.000000e+00 : f32
    %33 = vector.broadcast %cst_13 : f32 to vector<2x64xf32>
    %34 = arith.addf %33, %32 : vector<2x64xf32>
    %35 = arith.divf %33, %34 : vector<2x64xf32>
    %36 = vector.extract_strided_slice %35 {offsets = [0, 0], sizes = [2, 32], strides = [1, 1]} : vector<2x64xf32> to vector<2x32xf32>
    %37 = vector.extract_strided_slice %35 {offsets = [0, 32], sizes = [2, 32], strides = [1, 1]} : vector<2x64xf32> to vector<2x32xf32>
    %38 = vector.extract_strided_slice %10 {offsets = [2, 0], sizes = [2, 32], strides = [1, 1]} : vector<16x32xf32> to vector<2x32xf32>
    %39 = vector.extract_strided_slice %27 {offsets = [0, 64], sizes = [2, 32], strides = [1, 1]} : vector<2x96xf32> to vector<2x32xf32>
    %40 = vector.broadcast %5 : vector<1x32xf32> to vector<2x32xf32>
    %41 = arith.addf %39, %40 : vector<2x32xf32>
    %42 = arith.mulf %36, %41 : vector<2x32xf32>
    %43 = arith.addf %38, %42 : vector<2x32xf32>
    %44 = math.tanh %43 : vector<2x32xf32>
    %cst_14 = arith.constant 1.000000e+00 : f32
    %45 = vector.broadcast %cst_14 : f32 to vector<2x32xf32>
    %46 = arith.subf %45, %37 : vector<2x32xf32>
    %47 = arith.mulf %46, %44 : vector<2x32xf32>
    %48 = arith.mulf %37, %26 : vector<2x32xf32>
    %49 = arith.addf %47, %48 : vector<2x32xf32>
    %cst_15 = arith.constant dense<0.000000e+00> : vector<2x96xf32>
    %50 = tpu.matmul %49, %3, %cst_15 {dimension_numbers = #tpu.dot_dimension_numbers<[1], [0], [0], [1], [0, 0, 1, 1], [], []>} : vector<2x32xf32>, vector<32x96xf32>, vector<2x96xf32> -> vector<2x96xf32>
    %51 = vector.extract_strided_slice %9 {offsets = [4, 0], sizes = [2, 64], strides = [1, 1]} : vector<16x64xf32> to vector<2x64xf32>
    %52 = vector.extract_strided_slice %50 {offsets = [0, 0], sizes = [2, 64], strides = [1, 1]} : vector<2x96xf32> to vector<2x64xf32>
    %53 = arith.addf %51, %52 : vector<2x64xf32>
    %54 = arith.negf %53 : vector<2x64xf32>
    %55 = math.exp %54 : vector<2x64xf32>
    %cst_16 = arith.constant 1.000000e+00 : f32
    %56 = vector.broadcast %cst_16 : f32 to vector<2x64xf32>
    %57 = arith.addf %56, %55 : vector<2x64xf32>
    %58 = arith.divf %56, %57 : vector<2x64xf32>
    %59 = vector.extract_strided_slice %58 {offsets = [0, 0], sizes = [2, 32], strides = [1, 1]} : vector<2x64xf32> to vector<2x32xf32>
    %60 = vector.extract_strided_slice %58 {offsets = [0, 32], sizes = [2, 32], strides = [1, 1]} : vector<2x64xf32> to vector<2x32xf32>
    %61 = vector.extract_strided_slice %10 {offsets = [4, 0], sizes = [2, 32], strides = [1, 1]} : vector<16x32xf32> to vector<2x32xf32>
    %62 = vector.extract_strided_slice %50 {offsets = [0, 64], sizes = [2, 32], strides = [1, 1]} : vector<2x96xf32> to vector<2x32xf32>
    %63 = vector.broadcast %5 : vector<1x32xf32> to vector<2x32xf32>
    %64 = arith.addf %62, %63 : vector<2x32xf32>
    %65 = arith.mulf %59, %64 : vector<2x32xf32>
    %66 = arith.addf %61, %65 : vector<2x32xf32>
    %67 = math.tanh %66 : vector<2x32xf32>
    %cst_17 = arith.constant 1.000000e+00 : f32
    %68 = vector.broadcast %cst_17 : f32 to vector<2x32xf32>
    %69 = arith.subf %68, %60 : vector<2x32xf32>
    %70 = arith.mulf %69, %67 : vector<2x32xf32>
    %71 = arith.mulf %60, %49 : vector<2x32xf32>
    %72 = arith.addf %70, %71 : vector<2x32xf32>
    %cst_18 = arith.constant dense<0.000000e+00> : vector<2x96xf32>
    %73 = tpu.matmul %72, %3, %cst_18 {dimension_numbers = #tpu.dot_dimension_numbers<[1], [0], [0], [1], [0, 0, 1, 1], [], []>} : vector<2x32xf32>, vector<32x96xf32>, vector<2x96xf32> -> vector<2x96xf32>
    %74 = vector.extract_strided_slice %9 {offsets = [6, 0], sizes = [2, 64], strides = [1, 1]} : vector<16x64xf32> to vector<2x64xf32>
    %75 = vector.extract_strided_slice %73 {offsets = [0, 0], sizes = [2, 64], strides = [1, 1]} : vector<2x96xf32> to vector<2x64xf32>
    %76 = arith.addf %74, %75 : vector<2x64xf32>
    %77 = arith.negf %76 : vector<2x64xf32>
    %78 = math.exp %77 : vector<2x64xf32>
    %cst_19 = arith.constant 1.000000e+00 : f32
    %79 = vector.broadcast %cst_19 : f32 to vector<2x64xf32>
    %80 = arith.addf %79, %78 : vector<2x64xf32>
    %81 = arith.divf %79, %80 : vector<2x64xf32>
    %82 = vector.extract_strided_slice %81 {offsets = [0, 0], sizes = [2, 32], strides = [1, 1]} : vector<2x64xf32> to vector<2x32xf32>
    %83 = vector.extract_strided_slice %81 {offsets = [0, 32], sizes = [2, 32], strides = [1, 1]} : vector<2x64xf32> to vector<2x32xf32>
    %84 = vector.extract_strided_slice %10 {offsets = [6, 0], sizes = [2, 32], strides = [1, 1]} : vector<16x32xf32> to vector<2x32xf32>
    %85 = vector.extract_strided_slice %73 {offsets = [0, 64], sizes = [2, 32], strides = [1, 1]} : vector<2x96xf32> to vector<2x32xf32>
    %86 = vector.broadcast %5 : vector<1x32xf32> to vector<2x32xf32>
    %87 = arith.addf %85, %86 : vector<2x32xf32>
    %88 = arith.mulf %82, %87 : vector<2x32xf32>
    %89 = arith.addf %84, %88 : vector<2x32xf32>
    %90 = math.tanh %89 : vector<2x32xf32>
    %cst_20 = arith.constant 1.000000e+00 : f32
    %91 = vector.broadcast %cst_20 : f32 to vector<2x32xf32>
    %92 = arith.subf %91, %83 : vector<2x32xf32>
    %93 = arith.mulf %92, %90 : vector<2x32xf32>
    %94 = arith.mulf %83, %72 : vector<2x32xf32>
    %95 = arith.addf %93, %94 : vector<2x32xf32>
    %cst_21 = arith.constant dense<0.000000e+00> : vector<2x96xf32>
    %96 = tpu.matmul %95, %3, %cst_21 {dimension_numbers = #tpu.dot_dimension_numbers<[1], [0], [0], [1], [0, 0, 1, 1], [], []>} : vector<2x32xf32>, vector<32x96xf32>, vector<2x96xf32> -> vector<2x96xf32>
    %97 = vector.extract_strided_slice %9 {offsets = [8, 0], sizes = [2, 64], strides = [1, 1]} : vector<16x64xf32> to vector<2x64xf32>
    %98 = vector.extract_strided_slice %96 {offsets = [0, 0], sizes = [2, 64], strides = [1, 1]} : vector<2x96xf32> to vector<2x64xf32>
    %99 = arith.addf %97, %98 : vector<2x64xf32>
    %100 = arith.negf %99 : vector<2x64xf32>
    %101 = math.exp %100 : vector<2x64xf32>
    %cst_22 = arith.constant 1.000000e+00 : f32
    %102 = vector.broadcast %cst_22 : f32 to vector<2x64xf32>
    %103 = arith.addf %102, %101 : vector<2x64xf32>
    %104 = arith.divf %102, %103 : vector<2x64xf32>
    %105 = vector.extract_strided_slice %104 {offsets = [0, 0], sizes = [2, 32], strides = [1, 1]} : vector<2x64xf32> to vector<2x32xf32>
    %106 = vector.extract_strided_slice %104 {offsets = [0, 32], sizes = [2, 32], strides = [1, 1]} : vector<2x64xf32> to vector<2x32xf32>
    %107 = vector.extract_strided_slice %10 {offsets = [8, 0], sizes = [2, 32], strides = [1, 1]} : vector<16x32xf32> to vector<2x32xf32>
    %108 = vector.extract_strided_slice %96 {offsets = [0, 64], sizes = [2, 32], strides = [1, 1]} : vector<2x96xf32> to vector<2x32xf32>
    %109 = vector.broadcast %5 : vector<1x32xf32> to vector<2x32xf32>
    %110 = arith.addf %108, %109 : vector<2x32xf32>
    %111 = arith.mulf %105, %110 : vector<2x32xf32>
    %112 = arith.addf %107, %111 : vector<2x32xf32>
    %113 = math.tanh %112 : vector<2x32xf32>
    %cst_23 = arith.constant 1.000000e+00 : f32
    %114 = vector.broadcast %cst_23 : f32 to vector<2x32xf32>
    %115 = arith.subf %114, %106 : vector<2x32xf32>
    %116 = arith.mulf %115, %113 : vector<2x32xf32>
    %117 = arith.mulf %106, %95 : vector<2x32xf32>
    %118 = arith.addf %116, %117 : vector<2x32xf32>
    %cst_24 = arith.constant dense<0.000000e+00> : vector<2x96xf32>
    %119 = tpu.matmul %118, %3, %cst_24 {dimension_numbers = #tpu.dot_dimension_numbers<[1], [0], [0], [1], [0, 0, 1, 1], [], []>} : vector<2x32xf32>, vector<32x96xf32>, vector<2x96xf32> -> vector<2x96xf32>
    %120 = vector.extract_strided_slice %9 {offsets = [10, 0], sizes = [2, 64], strides = [1, 1]} : vector<16x64xf32> to vector<2x64xf32>
    %121 = vector.extract_strided_slice %119 {offsets = [0, 0], sizes = [2, 64], strides = [1, 1]} : vector<2x96xf32> to vector<2x64xf32>
    %122 = arith.addf %120, %121 : vector<2x64xf32>
    %123 = arith.negf %122 : vector<2x64xf32>
    %124 = math.exp %123 : vector<2x64xf32>
    %cst_25 = arith.constant 1.000000e+00 : f32
    %125 = vector.broadcast %cst_25 : f32 to vector<2x64xf32>
    %126 = arith.addf %125, %124 : vector<2x64xf32>
    %127 = arith.divf %125, %126 : vector<2x64xf32>
    %128 = vector.extract_strided_slice %127 {offsets = [0, 0], sizes = [2, 32], strides = [1, 1]} : vector<2x64xf32> to vector<2x32xf32>
    %129 = vector.extract_strided_slice %127 {offsets = [0, 32], sizes = [2, 32], strides = [1, 1]} : vector<2x64xf32> to vector<2x32xf32>
    %130 = vector.extract_strided_slice %10 {offsets = [10, 0], sizes = [2, 32], strides = [1, 1]} : vector<16x32xf32> to vector<2x32xf32>
    %131 = vector.extract_strided_slice %119 {offsets = [0, 64], sizes = [2, 32], strides = [1, 1]} : vector<2x96xf32> to vector<2x32xf32>
    %132 = vector.broadcast %5 : vector<1x32xf32> to vector<2x32xf32>
    %133 = arith.addf %131, %132 : vector<2x32xf32>
    %134 = arith.mulf %128, %133 : vector<2x32xf32>
    %135 = arith.addf %130, %134 : vector<2x32xf32>
    %136 = math.tanh %135 : vector<2x32xf32>
    %cst_26 = arith.constant 1.000000e+00 : f32
    %137 = vector.broadcast %cst_26 : f32 to vector<2x32xf32>
    %138 = arith.subf %137, %129 : vector<2x32xf32>
    %139 = arith.mulf %138, %136 : vector<2x32xf32>
    %140 = arith.mulf %129, %118 : vector<2x32xf32>
    %141 = arith.addf %139, %140 : vector<2x32xf32>
    %cst_27 = arith.constant dense<0.000000e+00> : vector<2x96xf32>
    %142 = tpu.matmul %141, %3, %cst_27 {dimension_numbers = #tpu.dot_dimension_numbers<[1], [0], [0], [1], [0, 0, 1, 1], [], []>} : vector<2x32xf32>, vector<32x96xf32>, vector<2x96xf32> -> vector<2x96xf32>
    %143 = vector.extract_strided_slice %9 {offsets = [12, 0], sizes = [2, 64], strides = [1, 1]} : vector<16x64xf32> to vector<2x64xf32>
    %144 = vector.extract_strided_slice %142 {offsets = [0, 0], sizes = [2, 64], strides = [1, 1]} : vector<2x96xf32> to vector<2x64xf32>
    %145 = arith.addf %143, %144 : vector<2x64xf32>
    %146 = arith.negf %145 : vector<2x64xf32>
    %147 = math.exp %146 : vector<2x64xf32>
    %cst_28 = arith.constant 1.000000e+00 : f32
    %148 = vector.broadcast %cst_28 : f32 to vector<2x64xf32>
    %149 = arith.addf %148, %147 : vector<2x64xf32>
    %150 = arith.divf %148, %149 : vector<2x64xf32>
    %151 = vector.extract_strided_slice %150 {offsets = [0, 0], sizes = [2, 32], strides = [1, 1]} : vector<2x64xf32> to vector<2x32xf32>
    %152 = vector.extract_strided_slice %150 {offsets = [0, 32], sizes = [2, 32], strides = [1, 1]} : vector<2x64xf32> to vector<2x32xf32>
    %153 = vector.extract_strided_slice %10 {offsets = [12, 0], sizes = [2, 32], strides = [1, 1]} : vector<16x32xf32> to vector<2x32xf32>
    %154 = vector.extract_strided_slice %142 {offsets = [0, 64], sizes = [2, 32], strides = [1, 1]} : vector<2x96xf32> to vector<2x32xf32>
    %155 = vector.broadcast %5 : vector<1x32xf32> to vector<2x32xf32>
    %156 = arith.addf %154, %155 : vector<2x32xf32>
    %157 = arith.mulf %151, %156 : vector<2x32xf32>
    %158 = arith.addf %153, %157 : vector<2x32xf32>
    %159 = math.tanh %158 : vector<2x32xf32>
    %cst_29 = arith.constant 1.000000e+00 : f32
    %160 = vector.broadcast %cst_29 : f32 to vector<2x32xf32>
    %161 = arith.subf %160, %152 : vector<2x32xf32>
    %162 = arith.mulf %161, %159 : vector<2x32xf32>
    %163 = arith.mulf %152, %141 : vector<2x32xf32>
    %164 = arith.addf %162, %163 : vector<2x32xf32>
    %cst_30 = arith.constant dense<0.000000e+00> : vector<2x96xf32>
    %165 = tpu.matmul %164, %3, %cst_30 {dimension_numbers = #tpu.dot_dimension_numbers<[1], [0], [0], [1], [0, 0, 1, 1], [], []>} : vector<2x32xf32>, vector<32x96xf32>, vector<2x96xf32> -> vector<2x96xf32>
    %166 = vector.extract_strided_slice %9 {offsets = [14, 0], sizes = [2, 64], strides = [1, 1]} : vector<16x64xf32> to vector<2x64xf32>
    %167 = vector.extract_strided_slice %165 {offsets = [0, 0], sizes = [2, 64], strides = [1, 1]} : vector<2x96xf32> to vector<2x64xf32>
    %168 = arith.addf %166, %167 : vector<2x64xf32>
    %169 = arith.negf %168 : vector<2x64xf32>
    %170 = math.exp %169 : vector<2x64xf32>
    %cst_31 = arith.constant 1.000000e+00 : f32
    %171 = vector.broadcast %cst_31 : f32 to vector<2x64xf32>
    %172 = arith.addf %171, %170 : vector<2x64xf32>
    %173 = arith.divf %171, %172 : vector<2x64xf32>
    %174 = vector.extract_strided_slice %173 {offsets = [0, 0], sizes = [2, 32], strides = [1, 1]} : vector<2x64xf32> to vector<2x32xf32>
    %175 = vector.extract_strided_slice %173 {offsets = [0, 32], sizes = [2, 32], strides = [1, 1]} : vector<2x64xf32> to vector<2x32xf32>
    %176 = vector.extract_strided_slice %10 {offsets = [14, 0], sizes = [2, 32], strides = [1, 1]} : vector<16x32xf32> to vector<2x32xf32>
    %177 = vector.extract_strided_slice %165 {offsets = [0, 64], sizes = [2, 32], strides = [1, 1]} : vector<2x96xf32> to vector<2x32xf32>
    %178 = vector.broadcast %5 : vector<1x32xf32> to vector<2x32xf32>
    %179 = arith.addf %177, %178 : vector<2x32xf32>
    %180 = arith.mulf %174, %179 : vector<2x32xf32>
    %181 = arith.addf %176, %180 : vector<2x32xf32>
    %182 = math.tanh %181 : vector<2x32xf32>
    %cst_32 = arith.constant 1.000000e+00 : f32
    %183 = vector.broadcast %cst_32 : f32 to vector<2x32xf32>
    %184 = arith.subf %183, %175 : vector<2x32xf32>
    %185 = arith.mulf %184, %182 : vector<2x32xf32>
    %186 = arith.mulf %175, %164 : vector<2x32xf32>
    %187 = arith.addf %185, %186 : vector<2x32xf32>
    %188 = tpu.concatenate %26, %49, %72, %95, %118, %141, %164, %187 in 0 : vector<2x32xf32>, vector<2x32xf32>, vector<2x32xf32>, vector<2x32xf32>, vector<2x32xf32>, vector<2x32xf32>, vector<2x32xf32>, vector<2x32xf32> -> vector<16x32xf32>
    %c0_33 = arith.constant 0 : index
    %c0_34 = arith.constant 0 : index
    %c0_35 = arith.constant 0 : index
    %189 = vector.load %arg2[%c0_33, %c0_34, %c0_35] : memref<2x32x96xf32, #tpu.memory_space<vmem>>, vector<1x32x96xf32>
    %190 = vector.shape_cast %189 : vector<1x32x96xf32> to vector<32x96xf32>
    %c1 = arith.constant 1 : index
    %c0_36 = arith.constant 0 : index
    %c0_37 = arith.constant 0 : index
    %191 = vector.load %arg3[%c1, %c0_36, %c0_37] : memref<3x32x96xf32, #tpu.memory_space<vmem>>, vector<1x32x96xf32>
    %192 = vector.shape_cast %191 : vector<1x32x96xf32> to vector<32x96xf32>
    %c1_38 = arith.constant 1 : index
    %c0_39 = arith.constant 0 : index
    %193 = vector.load %arg4[%c1_38, %c0_39] : memref<3x96xf32, #tpu.memory_space<vmem>>, vector<1x96xf32>
    %c1_40 = arith.constant 1 : index
    %c0_41 = arith.constant 0 : index
    %194 = vector.load %arg5[%c1_40, %c0_41] : memref<3x32xf32, #tpu.memory_space<vmem>>, vector<1x32xf32>
    %cst_42 = arith.constant dense<0.000000e+00> : vector<16x96xf32>
    %195 = tpu.matmul %188, %190, %cst_42 {dimension_numbers = #tpu.dot_dimension_numbers<[1], [0], [0], [1], [0, 0, 1, 1], [], []>} : vector<16x32xf32>, vector<32x96xf32>, vector<16x96xf32> -> vector<16x96xf32>
    %196 = vector.broadcast %193 : vector<1x96xf32> to vector<16x96xf32>
    %197 = arith.addf %195, %196 : vector<16x96xf32>
    %198 = vector.extract_strided_slice %197 {offsets = [0, 0], sizes = [16, 64], strides = [1, 1]} : vector<16x96xf32> to vector<16x64xf32>
    %199 = vector.extract_strided_slice %197 {offsets = [0, 64], sizes = [16, 32], strides = [1, 1]} : vector<16x96xf32> to vector<16x32xf32>
    %200 = vector.extract_strided_slice %198 {offsets = [0, 0], sizes = [2, 64], strides = [1, 1]} : vector<16x64xf32> to vector<2x64xf32>
    %201 = arith.negf %200 : vector<2x64xf32>
    %202 = math.exp %201 : vector<2x64xf32>
    %cst_43 = arith.constant 1.000000e+00 : f32
    %203 = vector.broadcast %cst_43 : f32 to vector<2x64xf32>
    %204 = arith.addf %203, %202 : vector<2x64xf32>
    %205 = arith.divf %203, %204 : vector<2x64xf32>
    %206 = vector.extract_strided_slice %205 {offsets = [0, 0], sizes = [2, 32], strides = [1, 1]} : vector<2x64xf32> to vector<2x32xf32>
    %207 = vector.extract_strided_slice %205 {offsets = [0, 32], sizes = [2, 32], strides = [1, 1]} : vector<2x64xf32> to vector<2x32xf32>
    %208 = vector.extract_strided_slice %199 {offsets = [0, 0], sizes = [2, 32], strides = [1, 1]} : vector<16x32xf32> to vector<2x32xf32>
    %209 = vector.broadcast %194 : vector<1x32xf32> to vector<2x32xf32>
    %210 = arith.mulf %206, %209 : vector<2x32xf32>
    %211 = arith.addf %208, %210 : vector<2x32xf32>
    %212 = math.tanh %211 : vector<2x32xf32>
    %cst_44 = arith.constant 1.000000e+00 : f32
    %213 = vector.broadcast %cst_44 : f32 to vector<2x32xf32>
    %214 = arith.subf %213, %207 : vector<2x32xf32>
    %215 = arith.mulf %214, %212 : vector<2x32xf32>
    %cst_45 = arith.constant dense<0.000000e+00> : vector<2x96xf32>
    %216 = tpu.matmul %215, %192, %cst_45 {dimension_numbers = #tpu.dot_dimension_numbers<[1], [0], [0], [1], [0, 0, 1, 1], [], []>} : vector<2x32xf32>, vector<32x96xf32>, vector<2x96xf32> -> vector<2x96xf32>
    %217 = vector.extract_strided_slice %198 {offsets = [2, 0], sizes = [2, 64], strides = [1, 1]} : vector<16x64xf32> to vector<2x64xf32>
    %218 = vector.extract_strided_slice %216 {offsets = [0, 0], sizes = [2, 64], strides = [1, 1]} : vector<2x96xf32> to vector<2x64xf32>
    %219 = arith.addf %217, %218 : vector<2x64xf32>
    %220 = arith.negf %219 : vector<2x64xf32>
    %221 = math.exp %220 : vector<2x64xf32>
    %cst_46 = arith.constant 1.000000e+00 : f32
    %222 = vector.broadcast %cst_46 : f32 to vector<2x64xf32>
    %223 = arith.addf %222, %221 : vector<2x64xf32>
    %224 = arith.divf %222, %223 : vector<2x64xf32>
    %225 = vector.extract_strided_slice %224 {offsets = [0, 0], sizes = [2, 32], strides = [1, 1]} : vector<2x64xf32> to vector<2x32xf32>
    %226 = vector.extract_strided_slice %224 {offsets = [0, 32], sizes = [2, 32], strides = [1, 1]} : vector<2x64xf32> to vector<2x32xf32>
    %227 = vector.extract_strided_slice %199 {offsets = [2, 0], sizes = [2, 32], strides = [1, 1]} : vector<16x32xf32> to vector<2x32xf32>
    %228 = vector.extract_strided_slice %216 {offsets = [0, 64], sizes = [2, 32], strides = [1, 1]} : vector<2x96xf32> to vector<2x32xf32>
    %229 = vector.broadcast %194 : vector<1x32xf32> to vector<2x32xf32>
    %230 = arith.addf %228, %229 : vector<2x32xf32>
    %231 = arith.mulf %225, %230 : vector<2x32xf32>
    %232 = arith.addf %227, %231 : vector<2x32xf32>
    %233 = math.tanh %232 : vector<2x32xf32>
    %cst_47 = arith.constant 1.000000e+00 : f32
    %234 = vector.broadcast %cst_47 : f32 to vector<2x32xf32>
    %235 = arith.subf %234, %226 : vector<2x32xf32>
    %236 = arith.mulf %235, %233 : vector<2x32xf32>
    %237 = arith.mulf %226, %215 : vector<2x32xf32>
    %238 = arith.addf %236, %237 : vector<2x32xf32>
    %cst_48 = arith.constant dense<0.000000e+00> : vector<2x96xf32>
    %239 = tpu.matmul %238, %192, %cst_48 {dimension_numbers = #tpu.dot_dimension_numbers<[1], [0], [0], [1], [0, 0, 1, 1], [], []>} : vector<2x32xf32>, vector<32x96xf32>, vector<2x96xf32> -> vector<2x96xf32>
    %240 = vector.extract_strided_slice %198 {offsets = [4, 0], sizes = [2, 64], strides = [1, 1]} : vector<16x64xf32> to vector<2x64xf32>
    %241 = vector.extract_strided_slice %239 {offsets = [0, 0], sizes = [2, 64], strides = [1, 1]} : vector<2x96xf32> to vector<2x64xf32>
    %242 = arith.addf %240, %241 : vector<2x64xf32>
    %243 = arith.negf %242 : vector<2x64xf32>
    %244 = math.exp %243 : vector<2x64xf32>
    %cst_49 = arith.constant 1.000000e+00 : f32
    %245 = vector.broadcast %cst_49 : f32 to vector<2x64xf32>
    %246 = arith.addf %245, %244 : vector<2x64xf32>
    %247 = arith.divf %245, %246 : vector<2x64xf32>
    %248 = vector.extract_strided_slice %247 {offsets = [0, 0], sizes = [2, 32], strides = [1, 1]} : vector<2x64xf32> to vector<2x32xf32>
    %249 = vector.extract_strided_slice %247 {offsets = [0, 32], sizes = [2, 32], strides = [1, 1]} : vector<2x64xf32> to vector<2x32xf32>
    %250 = vector.extract_strided_slice %199 {offsets = [4, 0], sizes = [2, 32], strides = [1, 1]} : vector<16x32xf32> to vector<2x32xf32>
    %251 = vector.extract_strided_slice %239 {offsets = [0, 64], sizes = [2, 32], strides = [1, 1]} : vector<2x96xf32> to vector<2x32xf32>
    %252 = vector.broadcast %194 : vector<1x32xf32> to vector<2x32xf32>
    %253 = arith.addf %251, %252 : vector<2x32xf32>
    %254 = arith.mulf %248, %253 : vector<2x32xf32>
    %255 = arith.addf %250, %254 : vector<2x32xf32>
    %256 = math.tanh %255 : vector<2x32xf32>
    %cst_50 = arith.constant 1.000000e+00 : f32
    %257 = vector.broadcast %cst_50 : f32 to vector<2x32xf32>
    %258 = arith.subf %257, %249 : vector<2x32xf32>
    %259 = arith.mulf %258, %256 : vector<2x32xf32>
    %260 = arith.mulf %249, %238 : vector<2x32xf32>
    %261 = arith.addf %259, %260 : vector<2x32xf32>
    %cst_51 = arith.constant dense<0.000000e+00> : vector<2x96xf32>
    %262 = tpu.matmul %261, %192, %cst_51 {dimension_numbers = #tpu.dot_dimension_numbers<[1], [0], [0], [1], [0, 0, 1, 1], [], []>} : vector<2x32xf32>, vector<32x96xf32>, vector<2x96xf32> -> vector<2x96xf32>
    %263 = vector.extract_strided_slice %198 {offsets = [6, 0], sizes = [2, 64], strides = [1, 1]} : vector<16x64xf32> to vector<2x64xf32>
    %264 = vector.extract_strided_slice %262 {offsets = [0, 0], sizes = [2, 64], strides = [1, 1]} : vector<2x96xf32> to vector<2x64xf32>
    %265 = arith.addf %263, %264 : vector<2x64xf32>
    %266 = arith.negf %265 : vector<2x64xf32>
    %267 = math.exp %266 : vector<2x64xf32>
    %cst_52 = arith.constant 1.000000e+00 : f32
    %268 = vector.broadcast %cst_52 : f32 to vector<2x64xf32>
    %269 = arith.addf %268, %267 : vector<2x64xf32>
    %270 = arith.divf %268, %269 : vector<2x64xf32>
    %271 = vector.extract_strided_slice %270 {offsets = [0, 0], sizes = [2, 32], strides = [1, 1]} : vector<2x64xf32> to vector<2x32xf32>
    %272 = vector.extract_strided_slice %270 {offsets = [0, 32], sizes = [2, 32], strides = [1, 1]} : vector<2x64xf32> to vector<2x32xf32>
    %273 = vector.extract_strided_slice %199 {offsets = [6, 0], sizes = [2, 32], strides = [1, 1]} : vector<16x32xf32> to vector<2x32xf32>
    %274 = vector.extract_strided_slice %262 {offsets = [0, 64], sizes = [2, 32], strides = [1, 1]} : vector<2x96xf32> to vector<2x32xf32>
    %275 = vector.broadcast %194 : vector<1x32xf32> to vector<2x32xf32>
    %276 = arith.addf %274, %275 : vector<2x32xf32>
    %277 = arith.mulf %271, %276 : vector<2x32xf32>
    %278 = arith.addf %273, %277 : vector<2x32xf32>
    %279 = math.tanh %278 : vector<2x32xf32>
    %cst_53 = arith.constant 1.000000e+00 : f32
    %280 = vector.broadcast %cst_53 : f32 to vector<2x32xf32>
    %281 = arith.subf %280, %272 : vector<2x32xf32>
    %282 = arith.mulf %281, %279 : vector<2x32xf32>
    %283 = arith.mulf %272, %261 : vector<2x32xf32>
    %284 = arith.addf %282, %283 : vector<2x32xf32>
    %cst_54 = arith.constant dense<0.000000e+00> : vector<2x96xf32>
    %285 = tpu.matmul %284, %192, %cst_54 {dimension_numbers = #tpu.dot_dimension_numbers<[1], [0], [0], [1], [0, 0, 1, 1], [], []>} : vector<2x32xf32>, vector<32x96xf32>, vector<2x96xf32> -> vector<2x96xf32>
    %286 = vector.extract_strided_slice %198 {offsets = [8, 0], sizes = [2, 64], strides = [1, 1]} : vector<16x64xf32> to vector<2x64xf32>
    %287 = vector.extract_strided_slice %285 {offsets = [0, 0], sizes = [2, 64], strides = [1, 1]} : vector<2x96xf32> to vector<2x64xf32>
    %288 = arith.addf %286, %287 : vector<2x64xf32>
    %289 = arith.negf %288 : vector<2x64xf32>
    %290 = math.exp %289 : vector<2x64xf32>
    %cst_55 = arith.constant 1.000000e+00 : f32
    %291 = vector.broadcast %cst_55 : f32 to vector<2x64xf32>
    %292 = arith.addf %291, %290 : vector<2x64xf32>
    %293 = arith.divf %291, %292 : vector<2x64xf32>
    %294 = vector.extract_strided_slice %293 {offsets = [0, 0], sizes = [2, 32], strides = [1, 1]} : vector<2x64xf32> to vector<2x32xf32>
    %295 = vector.extract_strided_slice %293 {offsets = [0, 32], sizes = [2, 32], strides = [1, 1]} : vector<2x64xf32> to vector<2x32xf32>
    %296 = vector.extract_strided_slice %199 {offsets = [8, 0], sizes = [2, 32], strides = [1, 1]} : vector<16x32xf32> to vector<2x32xf32>
    %297 = vector.extract_strided_slice %285 {offsets = [0, 64], sizes = [2, 32], strides = [1, 1]} : vector<2x96xf32> to vector<2x32xf32>
    %298 = vector.broadcast %194 : vector<1x32xf32> to vector<2x32xf32>
    %299 = arith.addf %297, %298 : vector<2x32xf32>
    %300 = arith.mulf %294, %299 : vector<2x32xf32>
    %301 = arith.addf %296, %300 : vector<2x32xf32>
    %302 = math.tanh %301 : vector<2x32xf32>
    %cst_56 = arith.constant 1.000000e+00 : f32
    %303 = vector.broadcast %cst_56 : f32 to vector<2x32xf32>
    %304 = arith.subf %303, %295 : vector<2x32xf32>
    %305 = arith.mulf %304, %302 : vector<2x32xf32>
    %306 = arith.mulf %295, %284 : vector<2x32xf32>
    %307 = arith.addf %305, %306 : vector<2x32xf32>
    %cst_57 = arith.constant dense<0.000000e+00> : vector<2x96xf32>
    %308 = tpu.matmul %307, %192, %cst_57 {dimension_numbers = #tpu.dot_dimension_numbers<[1], [0], [0], [1], [0, 0, 1, 1], [], []>} : vector<2x32xf32>, vector<32x96xf32>, vector<2x96xf32> -> vector<2x96xf32>
    %309 = vector.extract_strided_slice %198 {offsets = [10, 0], sizes = [2, 64], strides = [1, 1]} : vector<16x64xf32> to vector<2x64xf32>
    %310 = vector.extract_strided_slice %308 {offsets = [0, 0], sizes = [2, 64], strides = [1, 1]} : vector<2x96xf32> to vector<2x64xf32>
    %311 = arith.addf %309, %310 : vector<2x64xf32>
    %312 = arith.negf %311 : vector<2x64xf32>
    %313 = math.exp %312 : vector<2x64xf32>
    %cst_58 = arith.constant 1.000000e+00 : f32
    %314 = vector.broadcast %cst_58 : f32 to vector<2x64xf32>
    %315 = arith.addf %314, %313 : vector<2x64xf32>
    %316 = arith.divf %314, %315 : vector<2x64xf32>
    %317 = vector.extract_strided_slice %316 {offsets = [0, 0], sizes = [2, 32], strides = [1, 1]} : vector<2x64xf32> to vector<2x32xf32>
    %318 = vector.extract_strided_slice %316 {offsets = [0, 32], sizes = [2, 32], strides = [1, 1]} : vector<2x64xf32> to vector<2x32xf32>
    %319 = vector.extract_strided_slice %199 {offsets = [10, 0], sizes = [2, 32], strides = [1, 1]} : vector<16x32xf32> to vector<2x32xf32>
    %320 = vector.extract_strided_slice %308 {offsets = [0, 64], sizes = [2, 32], strides = [1, 1]} : vector<2x96xf32> to vector<2x32xf32>
    %321 = vector.broadcast %194 : vector<1x32xf32> to vector<2x32xf32>
    %322 = arith.addf %320, %321 : vector<2x32xf32>
    %323 = arith.mulf %317, %322 : vector<2x32xf32>
    %324 = arith.addf %319, %323 : vector<2x32xf32>
    %325 = math.tanh %324 : vector<2x32xf32>
    %cst_59 = arith.constant 1.000000e+00 : f32
    %326 = vector.broadcast %cst_59 : f32 to vector<2x32xf32>
    %327 = arith.subf %326, %318 : vector<2x32xf32>
    %328 = arith.mulf %327, %325 : vector<2x32xf32>
    %329 = arith.mulf %318, %307 : vector<2x32xf32>
    %330 = arith.addf %328, %329 : vector<2x32xf32>
    %cst_60 = arith.constant dense<0.000000e+00> : vector<2x96xf32>
    %331 = tpu.matmul %330, %192, %cst_60 {dimension_numbers = #tpu.dot_dimension_numbers<[1], [0], [0], [1], [0, 0, 1, 1], [], []>} : vector<2x32xf32>, vector<32x96xf32>, vector<2x96xf32> -> vector<2x96xf32>
    %332 = vector.extract_strided_slice %198 {offsets = [12, 0], sizes = [2, 64], strides = [1, 1]} : vector<16x64xf32> to vector<2x64xf32>
    %333 = vector.extract_strided_slice %331 {offsets = [0, 0], sizes = [2, 64], strides = [1, 1]} : vector<2x96xf32> to vector<2x64xf32>
    %334 = arith.addf %332, %333 : vector<2x64xf32>
    %335 = arith.negf %334 : vector<2x64xf32>
    %336 = math.exp %335 : vector<2x64xf32>
    %cst_61 = arith.constant 1.000000e+00 : f32
    %337 = vector.broadcast %cst_61 : f32 to vector<2x64xf32>
    %338 = arith.addf %337, %336 : vector<2x64xf32>
    %339 = arith.divf %337, %338 : vector<2x64xf32>
    %340 = vector.extract_strided_slice %339 {offsets = [0, 0], sizes = [2, 32], strides = [1, 1]} : vector<2x64xf32> to vector<2x32xf32>
    %341 = vector.extract_strided_slice %339 {offsets = [0, 32], sizes = [2, 32], strides = [1, 1]} : vector<2x64xf32> to vector<2x32xf32>
    %342 = vector.extract_strided_slice %199 {offsets = [12, 0], sizes = [2, 32], strides = [1, 1]} : vector<16x32xf32> to vector<2x32xf32>
    %343 = vector.extract_strided_slice %331 {offsets = [0, 64], sizes = [2, 32], strides = [1, 1]} : vector<2x96xf32> to vector<2x32xf32>
    %344 = vector.broadcast %194 : vector<1x32xf32> to vector<2x32xf32>
    %345 = arith.addf %343, %344 : vector<2x32xf32>
    %346 = arith.mulf %340, %345 : vector<2x32xf32>
    %347 = arith.addf %342, %346 : vector<2x32xf32>
    %348 = math.tanh %347 : vector<2x32xf32>
    %cst_62 = arith.constant 1.000000e+00 : f32
    %349 = vector.broadcast %cst_62 : f32 to vector<2x32xf32>
    %350 = arith.subf %349, %341 : vector<2x32xf32>
    %351 = arith.mulf %350, %348 : vector<2x32xf32>
    %352 = arith.mulf %341, %330 : vector<2x32xf32>
    %353 = arith.addf %351, %352 : vector<2x32xf32>
    %cst_63 = arith.constant dense<0.000000e+00> : vector<2x96xf32>
    %354 = tpu.matmul %353, %192, %cst_63 {dimension_numbers = #tpu.dot_dimension_numbers<[1], [0], [0], [1], [0, 0, 1, 1], [], []>} : vector<2x32xf32>, vector<32x96xf32>, vector<2x96xf32> -> vector<2x96xf32>
    %355 = vector.extract_strided_slice %198 {offsets = [14, 0], sizes = [2, 64], strides = [1, 1]} : vector<16x64xf32> to vector<2x64xf32>
    %356 = vector.extract_strided_slice %354 {offsets = [0, 0], sizes = [2, 64], strides = [1, 1]} : vector<2x96xf32> to vector<2x64xf32>
    %357 = arith.addf %355, %356 : vector<2x64xf32>
    %358 = arith.negf %357 : vector<2x64xf32>
    %359 = math.exp %358 : vector<2x64xf32>
    %cst_64 = arith.constant 1.000000e+00 : f32
    %360 = vector.broadcast %cst_64 : f32 to vector<2x64xf32>
    %361 = arith.addf %360, %359 : vector<2x64xf32>
    %362 = arith.divf %360, %361 : vector<2x64xf32>
    %363 = vector.extract_strided_slice %362 {offsets = [0, 0], sizes = [2, 32], strides = [1, 1]} : vector<2x64xf32> to vector<2x32xf32>
    %364 = vector.extract_strided_slice %362 {offsets = [0, 32], sizes = [2, 32], strides = [1, 1]} : vector<2x64xf32> to vector<2x32xf32>
    %365 = vector.extract_strided_slice %199 {offsets = [14, 0], sizes = [2, 32], strides = [1, 1]} : vector<16x32xf32> to vector<2x32xf32>
    %366 = vector.extract_strided_slice %354 {offsets = [0, 64], sizes = [2, 32], strides = [1, 1]} : vector<2x96xf32> to vector<2x32xf32>
    %367 = vector.broadcast %194 : vector<1x32xf32> to vector<2x32xf32>
    %368 = arith.addf %366, %367 : vector<2x32xf32>
    %369 = arith.mulf %363, %368 : vector<2x32xf32>
    %370 = arith.addf %365, %369 : vector<2x32xf32>
    %371 = math.tanh %370 : vector<2x32xf32>
    %cst_65 = arith.constant 1.000000e+00 : f32
    %372 = vector.broadcast %cst_65 : f32 to vector<2x32xf32>
    %373 = arith.subf %372, %364 : vector<2x32xf32>
    %374 = arith.mulf %373, %371 : vector<2x32xf32>
    %375 = arith.mulf %364, %353 : vector<2x32xf32>
    %376 = arith.addf %374, %375 : vector<2x32xf32>
    %377 = tpu.concatenate %215, %238, %261, %284, %307, %330, %353, %376 in 0 : vector<2x32xf32>, vector<2x32xf32>, vector<2x32xf32>, vector<2x32xf32>, vector<2x32xf32>, vector<2x32xf32>, vector<2x32xf32>, vector<2x32xf32> -> vector<16x32xf32>
    %c1_66 = arith.constant 1 : index
    %c0_67 = arith.constant 0 : index
    %c0_68 = arith.constant 0 : index
    %378 = vector.load %arg2[%c1_66, %c0_67, %c0_68] : memref<2x32x96xf32, #tpu.memory_space<vmem>>, vector<1x32x96xf32>
    %379 = vector.shape_cast %378 : vector<1x32x96xf32> to vector<32x96xf32>
    %c2 = arith.constant 2 : index
    %c0_69 = arith.constant 0 : index
    %c0_70 = arith.constant 0 : index
    %380 = vector.load %arg3[%c2, %c0_69, %c0_70] : memref<3x32x96xf32, #tpu.memory_space<vmem>>, vector<1x32x96xf32>
    %381 = vector.shape_cast %380 : vector<1x32x96xf32> to vector<32x96xf32>
    %c2_71 = arith.constant 2 : index
    %c0_72 = arith.constant 0 : index
    %382 = vector.load %arg4[%c2_71, %c0_72] : memref<3x96xf32, #tpu.memory_space<vmem>>, vector<1x96xf32>
    %c2_73 = arith.constant 2 : index
    %c0_74 = arith.constant 0 : index
    %383 = vector.load %arg5[%c2_73, %c0_74] : memref<3x32xf32, #tpu.memory_space<vmem>>, vector<1x32xf32>
    %cst_75 = arith.constant dense<0.000000e+00> : vector<16x96xf32>
    %384 = tpu.matmul %377, %379, %cst_75 {dimension_numbers = #tpu.dot_dimension_numbers<[1], [0], [0], [1], [0, 0, 1, 1], [], []>} : vector<16x32xf32>, vector<32x96xf32>, vector<16x96xf32> -> vector<16x96xf32>
    %385 = vector.broadcast %382 : vector<1x96xf32> to vector<16x96xf32>
    %386 = arith.addf %384, %385 : vector<16x96xf32>
    %387 = vector.extract_strided_slice %386 {offsets = [0, 0], sizes = [16, 64], strides = [1, 1]} : vector<16x96xf32> to vector<16x64xf32>
    %388 = vector.extract_strided_slice %386 {offsets = [0, 64], sizes = [16, 32], strides = [1, 1]} : vector<16x96xf32> to vector<16x32xf32>
    %389 = vector.extract_strided_slice %387 {offsets = [0, 0], sizes = [2, 64], strides = [1, 1]} : vector<16x64xf32> to vector<2x64xf32>
    %390 = arith.negf %389 : vector<2x64xf32>
    %391 = math.exp %390 : vector<2x64xf32>
    %cst_76 = arith.constant 1.000000e+00 : f32
    %392 = vector.broadcast %cst_76 : f32 to vector<2x64xf32>
    %393 = arith.addf %392, %391 : vector<2x64xf32>
    %394 = arith.divf %392, %393 : vector<2x64xf32>
    %395 = vector.extract_strided_slice %394 {offsets = [0, 0], sizes = [2, 32], strides = [1, 1]} : vector<2x64xf32> to vector<2x32xf32>
    %396 = vector.extract_strided_slice %394 {offsets = [0, 32], sizes = [2, 32], strides = [1, 1]} : vector<2x64xf32> to vector<2x32xf32>
    %397 = vector.extract_strided_slice %388 {offsets = [0, 0], sizes = [2, 32], strides = [1, 1]} : vector<16x32xf32> to vector<2x32xf32>
    %398 = vector.broadcast %383 : vector<1x32xf32> to vector<2x32xf32>
    %399 = arith.mulf %395, %398 : vector<2x32xf32>
    %400 = arith.addf %397, %399 : vector<2x32xf32>
    %401 = math.tanh %400 : vector<2x32xf32>
    %cst_77 = arith.constant 1.000000e+00 : f32
    %402 = vector.broadcast %cst_77 : f32 to vector<2x32xf32>
    %403 = arith.subf %402, %396 : vector<2x32xf32>
    %404 = arith.mulf %403, %401 : vector<2x32xf32>
    %cst_78 = arith.constant dense<0.000000e+00> : vector<2x96xf32>
    %405 = tpu.matmul %404, %381, %cst_78 {dimension_numbers = #tpu.dot_dimension_numbers<[1], [0], [0], [1], [0, 0, 1, 1], [], []>} : vector<2x32xf32>, vector<32x96xf32>, vector<2x96xf32> -> vector<2x96xf32>
    %406 = vector.extract_strided_slice %387 {offsets = [2, 0], sizes = [2, 64], strides = [1, 1]} : vector<16x64xf32> to vector<2x64xf32>
    %407 = vector.extract_strided_slice %405 {offsets = [0, 0], sizes = [2, 64], strides = [1, 1]} : vector<2x96xf32> to vector<2x64xf32>
    %408 = arith.addf %406, %407 : vector<2x64xf32>
    %409 = arith.negf %408 : vector<2x64xf32>
    %410 = math.exp %409 : vector<2x64xf32>
    %cst_79 = arith.constant 1.000000e+00 : f32
    %411 = vector.broadcast %cst_79 : f32 to vector<2x64xf32>
    %412 = arith.addf %411, %410 : vector<2x64xf32>
    %413 = arith.divf %411, %412 : vector<2x64xf32>
    %414 = vector.extract_strided_slice %413 {offsets = [0, 0], sizes = [2, 32], strides = [1, 1]} : vector<2x64xf32> to vector<2x32xf32>
    %415 = vector.extract_strided_slice %413 {offsets = [0, 32], sizes = [2, 32], strides = [1, 1]} : vector<2x64xf32> to vector<2x32xf32>
    %416 = vector.extract_strided_slice %388 {offsets = [2, 0], sizes = [2, 32], strides = [1, 1]} : vector<16x32xf32> to vector<2x32xf32>
    %417 = vector.extract_strided_slice %405 {offsets = [0, 64], sizes = [2, 32], strides = [1, 1]} : vector<2x96xf32> to vector<2x32xf32>
    %418 = vector.broadcast %383 : vector<1x32xf32> to vector<2x32xf32>
    %419 = arith.addf %417, %418 : vector<2x32xf32>
    %420 = arith.mulf %414, %419 : vector<2x32xf32>
    %421 = arith.addf %416, %420 : vector<2x32xf32>
    %422 = math.tanh %421 : vector<2x32xf32>
    %cst_80 = arith.constant 1.000000e+00 : f32
    %423 = vector.broadcast %cst_80 : f32 to vector<2x32xf32>
    %424 = arith.subf %423, %415 : vector<2x32xf32>
    %425 = arith.mulf %424, %422 : vector<2x32xf32>
    %426 = arith.mulf %415, %404 : vector<2x32xf32>
    %427 = arith.addf %425, %426 : vector<2x32xf32>
    %cst_81 = arith.constant dense<0.000000e+00> : vector<2x96xf32>
    %428 = tpu.matmul %427, %381, %cst_81 {dimension_numbers = #tpu.dot_dimension_numbers<[1], [0], [0], [1], [0, 0, 1, 1], [], []>} : vector<2x32xf32>, vector<32x96xf32>, vector<2x96xf32> -> vector<2x96xf32>
    %429 = vector.extract_strided_slice %387 {offsets = [4, 0], sizes = [2, 64], strides = [1, 1]} : vector<16x64xf32> to vector<2x64xf32>
    %430 = vector.extract_strided_slice %428 {offsets = [0, 0], sizes = [2, 64], strides = [1, 1]} : vector<2x96xf32> to vector<2x64xf32>
    %431 = arith.addf %429, %430 : vector<2x64xf32>
    %432 = arith.negf %431 : vector<2x64xf32>
    %433 = math.exp %432 : vector<2x64xf32>
    %cst_82 = arith.constant 1.000000e+00 : f32
    %434 = vector.broadcast %cst_82 : f32 to vector<2x64xf32>
    %435 = arith.addf %434, %433 : vector<2x64xf32>
    %436 = arith.divf %434, %435 : vector<2x64xf32>
    %437 = vector.extract_strided_slice %436 {offsets = [0, 0], sizes = [2, 32], strides = [1, 1]} : vector<2x64xf32> to vector<2x32xf32>
    %438 = vector.extract_strided_slice %436 {offsets = [0, 32], sizes = [2, 32], strides = [1, 1]} : vector<2x64xf32> to vector<2x32xf32>
    %439 = vector.extract_strided_slice %388 {offsets = [4, 0], sizes = [2, 32], strides = [1, 1]} : vector<16x32xf32> to vector<2x32xf32>
    %440 = vector.extract_strided_slice %428 {offsets = [0, 64], sizes = [2, 32], strides = [1, 1]} : vector<2x96xf32> to vector<2x32xf32>
    %441 = vector.broadcast %383 : vector<1x32xf32> to vector<2x32xf32>
    %442 = arith.addf %440, %441 : vector<2x32xf32>
    %443 = arith.mulf %437, %442 : vector<2x32xf32>
    %444 = arith.addf %439, %443 : vector<2x32xf32>
    %445 = math.tanh %444 : vector<2x32xf32>
    %cst_83 = arith.constant 1.000000e+00 : f32
    %446 = vector.broadcast %cst_83 : f32 to vector<2x32xf32>
    %447 = arith.subf %446, %438 : vector<2x32xf32>
    %448 = arith.mulf %447, %445 : vector<2x32xf32>
    %449 = arith.mulf %438, %427 : vector<2x32xf32>
    %450 = arith.addf %448, %449 : vector<2x32xf32>
    %cst_84 = arith.constant dense<0.000000e+00> : vector<2x96xf32>
    %451 = tpu.matmul %450, %381, %cst_84 {dimension_numbers = #tpu.dot_dimension_numbers<[1], [0], [0], [1], [0, 0, 1, 1], [], []>} : vector<2x32xf32>, vector<32x96xf32>, vector<2x96xf32> -> vector<2x96xf32>
    %452 = vector.extract_strided_slice %387 {offsets = [6, 0], sizes = [2, 64], strides = [1, 1]} : vector<16x64xf32> to vector<2x64xf32>
    %453 = vector.extract_strided_slice %451 {offsets = [0, 0], sizes = [2, 64], strides = [1, 1]} : vector<2x96xf32> to vector<2x64xf32>
    %454 = arith.addf %452, %453 : vector<2x64xf32>
    %455 = arith.negf %454 : vector<2x64xf32>
    %456 = math.exp %455 : vector<2x64xf32>
    %cst_85 = arith.constant 1.000000e+00 : f32
    %457 = vector.broadcast %cst_85 : f32 to vector<2x64xf32>
    %458 = arith.addf %457, %456 : vector<2x64xf32>
    %459 = arith.divf %457, %458 : vector<2x64xf32>
    %460 = vector.extract_strided_slice %459 {offsets = [0, 0], sizes = [2, 32], strides = [1, 1]} : vector<2x64xf32> to vector<2x32xf32>
    %461 = vector.extract_strided_slice %459 {offsets = [0, 32], sizes = [2, 32], strides = [1, 1]} : vector<2x64xf32> to vector<2x32xf32>
    %462 = vector.extract_strided_slice %388 {offsets = [6, 0], sizes = [2, 32], strides = [1, 1]} : vector<16x32xf32> to vector<2x32xf32>
    %463 = vector.extract_strided_slice %451 {offsets = [0, 64], sizes = [2, 32], strides = [1, 1]} : vector<2x96xf32> to vector<2x32xf32>
    %464 = vector.broadcast %383 : vector<1x32xf32> to vector<2x32xf32>
    %465 = arith.addf %463, %464 : vector<2x32xf32>
    %466 = arith.mulf %460, %465 : vector<2x32xf32>
    %467 = arith.addf %462, %466 : vector<2x32xf32>
    %468 = math.tanh %467 : vector<2x32xf32>
    %cst_86 = arith.constant 1.000000e+00 : f32
    %469 = vector.broadcast %cst_86 : f32 to vector<2x32xf32>
    %470 = arith.subf %469, %461 : vector<2x32xf32>
    %471 = arith.mulf %470, %468 : vector<2x32xf32>
    %472 = arith.mulf %461, %450 : vector<2x32xf32>
    %473 = arith.addf %471, %472 : vector<2x32xf32>
    %cst_87 = arith.constant dense<0.000000e+00> : vector<2x96xf32>
    %474 = tpu.matmul %473, %381, %cst_87 {dimension_numbers = #tpu.dot_dimension_numbers<[1], [0], [0], [1], [0, 0, 1, 1], [], []>} : vector<2x32xf32>, vector<32x96xf32>, vector<2x96xf32> -> vector<2x96xf32>
    %475 = vector.extract_strided_slice %387 {offsets = [8, 0], sizes = [2, 64], strides = [1, 1]} : vector<16x64xf32> to vector<2x64xf32>
    %476 = vector.extract_strided_slice %474 {offsets = [0, 0], sizes = [2, 64], strides = [1, 1]} : vector<2x96xf32> to vector<2x64xf32>
    %477 = arith.addf %475, %476 : vector<2x64xf32>
    %478 = arith.negf %477 : vector<2x64xf32>
    %479 = math.exp %478 : vector<2x64xf32>
    %cst_88 = arith.constant 1.000000e+00 : f32
    %480 = vector.broadcast %cst_88 : f32 to vector<2x64xf32>
    %481 = arith.addf %480, %479 : vector<2x64xf32>
    %482 = arith.divf %480, %481 : vector<2x64xf32>
    %483 = vector.extract_strided_slice %482 {offsets = [0, 0], sizes = [2, 32], strides = [1, 1]} : vector<2x64xf32> to vector<2x32xf32>
    %484 = vector.extract_strided_slice %482 {offsets = [0, 32], sizes = [2, 32], strides = [1, 1]} : vector<2x64xf32> to vector<2x32xf32>
    %485 = vector.extract_strided_slice %388 {offsets = [8, 0], sizes = [2, 32], strides = [1, 1]} : vector<16x32xf32> to vector<2x32xf32>
    %486 = vector.extract_strided_slice %474 {offsets = [0, 64], sizes = [2, 32], strides = [1, 1]} : vector<2x96xf32> to vector<2x32xf32>
    %487 = vector.broadcast %383 : vector<1x32xf32> to vector<2x32xf32>
    %488 = arith.addf %486, %487 : vector<2x32xf32>
    %489 = arith.mulf %483, %488 : vector<2x32xf32>
    %490 = arith.addf %485, %489 : vector<2x32xf32>
    %491 = math.tanh %490 : vector<2x32xf32>
    %cst_89 = arith.constant 1.000000e+00 : f32
    %492 = vector.broadcast %cst_89 : f32 to vector<2x32xf32>
    %493 = arith.subf %492, %484 : vector<2x32xf32>
    %494 = arith.mulf %493, %491 : vector<2x32xf32>
    %495 = arith.mulf %484, %473 : vector<2x32xf32>
    %496 = arith.addf %494, %495 : vector<2x32xf32>
    %cst_90 = arith.constant dense<0.000000e+00> : vector<2x96xf32>
    %497 = tpu.matmul %496, %381, %cst_90 {dimension_numbers = #tpu.dot_dimension_numbers<[1], [0], [0], [1], [0, 0, 1, 1], [], []>} : vector<2x32xf32>, vector<32x96xf32>, vector<2x96xf32> -> vector<2x96xf32>
    %498 = vector.extract_strided_slice %387 {offsets = [10, 0], sizes = [2, 64], strides = [1, 1]} : vector<16x64xf32> to vector<2x64xf32>
    %499 = vector.extract_strided_slice %497 {offsets = [0, 0], sizes = [2, 64], strides = [1, 1]} : vector<2x96xf32> to vector<2x64xf32>
    %500 = arith.addf %498, %499 : vector<2x64xf32>
    %501 = arith.negf %500 : vector<2x64xf32>
    %502 = math.exp %501 : vector<2x64xf32>
    %cst_91 = arith.constant 1.000000e+00 : f32
    %503 = vector.broadcast %cst_91 : f32 to vector<2x64xf32>
    %504 = arith.addf %503, %502 : vector<2x64xf32>
    %505 = arith.divf %503, %504 : vector<2x64xf32>
    %506 = vector.extract_strided_slice %505 {offsets = [0, 0], sizes = [2, 32], strides = [1, 1]} : vector<2x64xf32> to vector<2x32xf32>
    %507 = vector.extract_strided_slice %505 {offsets = [0, 32], sizes = [2, 32], strides = [1, 1]} : vector<2x64xf32> to vector<2x32xf32>
    %508 = vector.extract_strided_slice %388 {offsets = [10, 0], sizes = [2, 32], strides = [1, 1]} : vector<16x32xf32> to vector<2x32xf32>
    %509 = vector.extract_strided_slice %497 {offsets = [0, 64], sizes = [2, 32], strides = [1, 1]} : vector<2x96xf32> to vector<2x32xf32>
    %510 = vector.broadcast %383 : vector<1x32xf32> to vector<2x32xf32>
    %511 = arith.addf %509, %510 : vector<2x32xf32>
    %512 = arith.mulf %506, %511 : vector<2x32xf32>
    %513 = arith.addf %508, %512 : vector<2x32xf32>
    %514 = math.tanh %513 : vector<2x32xf32>
    %cst_92 = arith.constant 1.000000e+00 : f32
    %515 = vector.broadcast %cst_92 : f32 to vector<2x32xf32>
    %516 = arith.subf %515, %507 : vector<2x32xf32>
    %517 = arith.mulf %516, %514 : vector<2x32xf32>
    %518 = arith.mulf %507, %496 : vector<2x32xf32>
    %519 = arith.addf %517, %518 : vector<2x32xf32>
    %cst_93 = arith.constant dense<0.000000e+00> : vector<2x96xf32>
    %520 = tpu.matmul %519, %381, %cst_93 {dimension_numbers = #tpu.dot_dimension_numbers<[1], [0], [0], [1], [0, 0, 1, 1], [], []>} : vector<2x32xf32>, vector<32x96xf32>, vector<2x96xf32> -> vector<2x96xf32>
    %521 = vector.extract_strided_slice %387 {offsets = [12, 0], sizes = [2, 64], strides = [1, 1]} : vector<16x64xf32> to vector<2x64xf32>
    %522 = vector.extract_strided_slice %520 {offsets = [0, 0], sizes = [2, 64], strides = [1, 1]} : vector<2x96xf32> to vector<2x64xf32>
    %523 = arith.addf %521, %522 : vector<2x64xf32>
    %524 = arith.negf %523 : vector<2x64xf32>
    %525 = math.exp %524 : vector<2x64xf32>
    %cst_94 = arith.constant 1.000000e+00 : f32
    %526 = vector.broadcast %cst_94 : f32 to vector<2x64xf32>
    %527 = arith.addf %526, %525 : vector<2x64xf32>
    %528 = arith.divf %526, %527 : vector<2x64xf32>
    %529 = vector.extract_strided_slice %528 {offsets = [0, 0], sizes = [2, 32], strides = [1, 1]} : vector<2x64xf32> to vector<2x32xf32>
    %530 = vector.extract_strided_slice %528 {offsets = [0, 32], sizes = [2, 32], strides = [1, 1]} : vector<2x64xf32> to vector<2x32xf32>
    %531 = vector.extract_strided_slice %388 {offsets = [12, 0], sizes = [2, 32], strides = [1, 1]} : vector<16x32xf32> to vector<2x32xf32>
    %532 = vector.extract_strided_slice %520 {offsets = [0, 64], sizes = [2, 32], strides = [1, 1]} : vector<2x96xf32> to vector<2x32xf32>
    %533 = vector.broadcast %383 : vector<1x32xf32> to vector<2x32xf32>
    %534 = arith.addf %532, %533 : vector<2x32xf32>
    %535 = arith.mulf %529, %534 : vector<2x32xf32>
    %536 = arith.addf %531, %535 : vector<2x32xf32>
    %537 = math.tanh %536 : vector<2x32xf32>
    %cst_95 = arith.constant 1.000000e+00 : f32
    %538 = vector.broadcast %cst_95 : f32 to vector<2x32xf32>
    %539 = arith.subf %538, %530 : vector<2x32xf32>
    %540 = arith.mulf %539, %537 : vector<2x32xf32>
    %541 = arith.mulf %530, %519 : vector<2x32xf32>
    %542 = arith.addf %540, %541 : vector<2x32xf32>
    %cst_96 = arith.constant dense<0.000000e+00> : vector<2x96xf32>
    %543 = tpu.matmul %542, %381, %cst_96 {dimension_numbers = #tpu.dot_dimension_numbers<[1], [0], [0], [1], [0, 0, 1, 1], [], []>} : vector<2x32xf32>, vector<32x96xf32>, vector<2x96xf32> -> vector<2x96xf32>
    %544 = vector.extract_strided_slice %387 {offsets = [14, 0], sizes = [2, 64], strides = [1, 1]} : vector<16x64xf32> to vector<2x64xf32>
    %545 = vector.extract_strided_slice %543 {offsets = [0, 0], sizes = [2, 64], strides = [1, 1]} : vector<2x96xf32> to vector<2x64xf32>
    %546 = arith.addf %544, %545 : vector<2x64xf32>
    %547 = arith.negf %546 : vector<2x64xf32>
    %548 = math.exp %547 : vector<2x64xf32>
    %cst_97 = arith.constant 1.000000e+00 : f32
    %549 = vector.broadcast %cst_97 : f32 to vector<2x64xf32>
    %550 = arith.addf %549, %548 : vector<2x64xf32>
    %551 = arith.divf %549, %550 : vector<2x64xf32>
    %552 = vector.extract_strided_slice %551 {offsets = [0, 0], sizes = [2, 32], strides = [1, 1]} : vector<2x64xf32> to vector<2x32xf32>
    %553 = vector.extract_strided_slice %551 {offsets = [0, 32], sizes = [2, 32], strides = [1, 1]} : vector<2x64xf32> to vector<2x32xf32>
    %554 = vector.extract_strided_slice %388 {offsets = [14, 0], sizes = [2, 32], strides = [1, 1]} : vector<16x32xf32> to vector<2x32xf32>
    %555 = vector.extract_strided_slice %543 {offsets = [0, 64], sizes = [2, 32], strides = [1, 1]} : vector<2x96xf32> to vector<2x32xf32>
    %556 = vector.broadcast %383 : vector<1x32xf32> to vector<2x32xf32>
    %557 = arith.addf %555, %556 : vector<2x32xf32>
    %558 = arith.mulf %552, %557 : vector<2x32xf32>
    %559 = arith.addf %554, %558 : vector<2x32xf32>
    %560 = math.tanh %559 : vector<2x32xf32>
    %cst_98 = arith.constant 1.000000e+00 : f32
    %561 = vector.broadcast %cst_98 : f32 to vector<2x32xf32>
    %562 = arith.subf %561, %553 : vector<2x32xf32>
    %563 = arith.mulf %562, %560 : vector<2x32xf32>
    %564 = arith.mulf %553, %542 : vector<2x32xf32>
    %565 = arith.addf %563, %564 : vector<2x32xf32>
    %566 = tpu.concatenate %404, %427, %450, %473, %496, %519, %542, %565 in 0 : vector<2x32xf32>, vector<2x32xf32>, vector<2x32xf32>, vector<2x32xf32>, vector<2x32xf32>, vector<2x32xf32>, vector<2x32xf32>, vector<2x32xf32> -> vector<16x32xf32>
    %c0_99 = arith.constant 0 : index
    %c0_100 = arith.constant 0 : index
    %567 = vector.load %arg6[%c0_99, %c0_100] : memref<33x80xf32, #tpu.memory_space<vmem>>, vector<32x80xf32>
    %c32 = arith.constant 32 : index
    %c0_101 = arith.constant 0 : index
    %568 = vector.load %arg6[%c32, %c0_101] : memref<33x80xf32, #tpu.memory_space<vmem>>, vector<1x80xf32>
    %cst_102 = arith.constant dense<0.000000e+00> : vector<16x80xf32>
    %569 = tpu.matmul %566, %567, %cst_102 {dimension_numbers = #tpu.dot_dimension_numbers<[1], [0], [0], [1], [0, 0, 1, 1], [], []>} : vector<16x32xf32>, vector<32x80xf32>, vector<16x80xf32> -> vector<16x80xf32>
    %570 = vector.broadcast %568 : vector<1x80xf32> to vector<16x80xf32>
    %571 = arith.addf %569, %570 : vector<16x80xf32>
    %cst_103 = arith.constant 0.000000e+00 : f32
    %572 = vector.broadcast %cst_103 : f32 to vector<16x80xf32>
    %573 = arith.maximumf %571, %572 : vector<16x80xf32>
    %c0_104 = arith.constant 0 : index
    %c0_105 = arith.constant 0 : index
    %574 = vector.load %arg7[%c0_104, %c0_105] : memref<81x40xf32, #tpu.memory_space<vmem>>, vector<80x40xf32>
    %c80 = arith.constant 80 : index
    %c0_106 = arith.constant 0 : index
    %575 = vector.load %arg7[%c80, %c0_106] : memref<81x40xf32, #tpu.memory_space<vmem>>, vector<1x40xf32>
    %cst_107 = arith.constant dense<0.000000e+00> : vector<16x40xf32>
    %576 = tpu.matmul %573, %574, %cst_107 {dimension_numbers = #tpu.dot_dimension_numbers<[1], [0], [0], [1], [0, 0, 1, 1], [], []>} : vector<16x80xf32>, vector<80x40xf32>, vector<16x40xf32> -> vector<16x40xf32>
    %577 = vector.broadcast %575 : vector<1x40xf32> to vector<16x40xf32>
    %578 = arith.addf %576, %577 : vector<16x40xf32>
    %cst_108 = arith.constant 0.000000e+00 : f32
    %579 = vector.broadcast %cst_108 : f32 to vector<16x40xf32>
    %580 = arith.maximumf %578, %579 : vector<16x40xf32>
    %c0_109 = arith.constant 0 : index
    %c0_110 = arith.constant 0 : index
    %581 = vector.load %arg8[%c0_109, %c0_110] : memref<41x20xf32, #tpu.memory_space<vmem>>, vector<40x20xf32>
    %c40 = arith.constant 40 : index
    %c0_111 = arith.constant 0 : index
    %582 = vector.load %arg8[%c40, %c0_111] : memref<41x20xf32, #tpu.memory_space<vmem>>, vector<1x20xf32>
    %cst_112 = arith.constant dense<0.000000e+00> : vector<16x20xf32>
    %583 = tpu.matmul %580, %581, %cst_112 {dimension_numbers = #tpu.dot_dimension_numbers<[1], [0], [0], [1], [0, 0, 1, 1], [], []>} : vector<16x40xf32>, vector<40x20xf32>, vector<16x20xf32> -> vector<16x20xf32>
    %584 = vector.broadcast %582 : vector<1x20xf32> to vector<16x20xf32>
    %585 = arith.addf %583, %584 : vector<16x20xf32>
    %cst_113 = arith.constant 0.000000e+00 : f32
    %586 = vector.broadcast %cst_113 : f32 to vector<16x20xf32>
    %587 = arith.maximumf %585, %586 : vector<16x20xf32>
    %c0_114 = arith.constant 0 : index
    %c0_115 = arith.constant 0 : index
    %588 = vector.load %arg9[%c0_114, %c0_115] : memref<21x4xf32, #tpu.memory_space<vmem>>, vector<20x4xf32>
    %c20 = arith.constant 20 : index
    %c0_116 = arith.constant 0 : index
    %589 = vector.load %arg9[%c20, %c0_116] : memref<21x4xf32, #tpu.memory_space<vmem>>, vector<1x4xf32>
    %cst_117 = arith.constant dense<0.000000e+00> : vector<16x4xf32>
    %590 = tpu.matmul %587, %588, %cst_117 {dimension_numbers = #tpu.dot_dimension_numbers<[1], [0], [0], [1], [0, 0, 1, 1], [], []>} : vector<16x20xf32>, vector<20x4xf32>, vector<16x4xf32> -> vector<16x4xf32>
    %591 = vector.broadcast %589 : vector<1x4xf32> to vector<16x4xf32>
    %592 = arith.addf %590, %591 : vector<16x4xf32>
    %593 = arith.negf %592 : vector<16x4xf32>
    %594 = math.exp %593 : vector<16x4xf32>
    %cst_118 = arith.constant 1.000000e+00 : f32
    %595 = vector.broadcast %cst_118 : f32 to vector<16x4xf32>
    %596 = arith.addf %595, %594 : vector<16x4xf32>
    %597 = arith.divf %595, %596 : vector<16x4xf32>
    %c0_119 = arith.constant 0 : index
    %c0_120 = arith.constant 0 : index
    %598 = vector.load %arg10[%c0_119, %c0_120] : memref<16x4xf32, #tpu.memory_space<vmem>>, vector<16x4xf32>
    tpu.vector_store %arg10[%c0_119, %c0_120], %597 {strides = array<i32>} : memref<16x4xf32, #tpu.memory_space<vmem>>, vector<16x4xf32>,
    return
  }
}

</mosaic_0001>

<llo_original>
// kernel: simple_rnn_forward.1
$region0: #{simple_rnn_forward.1}
  #allocation0 [shape = 'u32[]', space=smem, size = 0x4, offset = 0x4, fixed_abs, tag = 'smem constant byte address 0x4 - core index']
  #allocation1 [shape = 'u32[144,128]{1,0:T(1,128)}', space=vmem, size = 0x12000, scoped, tag = 'internal scratch']
  %s0 = inlined_call_operand.vmem [shape: f32[16,16], index: 0, kind: input, shape index: {}]
  %s1 = inlined_call_operand.hbm [shape: f32[16,96], index: 1, kind: input, shape index: {}]
  %s2 = inlined_call_operand.vmem [shape: f32[2,32,96], index: 2, kind: input, shape index: {}]
  %s3 = inlined_call_operand.vmem [shape: f32[3,32,96], index: 3, kind: input, shape index: {}]
  %s4 = inlined_call_operand.hbm [shape: f32[3,96], index: 4, kind: input, shape index: {}]
  %s5 = inlined_call_operand.hbm [shape: f32[3,32], index: 5, kind: input, shape index: {}]
  %s6 = inlined_call_operand.vmem [shape: f32[33,80], index: 6, kind: input, shape index: {}]
  %s7 = inlined_call_operand.vmem [shape: f32[81,40], index: 7, kind: input, shape index: {}]
  %s8 = inlined_call_operand.vmem [shape: f32[41,20], index: 8, kind: input, shape index: {}]
  %s9 = inlined_call_operand.vmem [shape: f32[21,4], index: 9, kind: input, shape index: {}]
  %s10 = inlined_call_operand.vmem [shape: f32[16,4], index: 10, kind: output, shape index: {}]
  %s11 = sld [smem:[#allocation0]]
  $region62: #{simple_rnn_forward.1} parent=0
    _
  %s13 = ssub.s32 1, %s11
  %s14 = scalar_select 0, %s13, %s11
  $region1: #{simple_rnn_forward.1} parent=0
    #allocation2 [shape = 'u8[8192]{0}', space=vmem, size = 0x2000, scoped, tag = 'input window, operand 1, single buffered']
    #allocation3 [shape = 's32[1]{0}', space=sflag, size = 0x4, scoped, tag = 'scoped memory for simple_rnn_forward.1']
    #allocation4 [shape = 'u8[2048]{0}', space=vmem, size = 0x800, scoped, tag = 'input window, operand 4, single buffered']
    #allocation5 [shape = 's32[1]{0}', space=sflag, size = 0x4, scoped, tag = 'scoped memory for simple_rnn_forward.1']
    #allocation6 [shape = 'u8[2048]{0}', space=vmem, size = 0x800, scoped, tag = 'input window, operand 5, single buffered']
    %15 = vsyncpa [#allocation3], 0
    %16 = vsyncpa [#allocation5], 0
    // Predicated region
    $region2: #{simple_rnn_forward.1} parent=1 // pred_check
      _
    $region3: #{simple_rnn_forward.1} parent=1 // pred_check_branch
      %18 = sbr.rel (0) target = $region5
    $region4: #{simple_rnn_forward.1} parent=1 // pred_region
      _
    $region5: #{simple_rnn_forward.1} parent=1 // pred_fallthru
      _
    // Predicated region
    $region6: #{simple_rnn_forward.1} parent=1 // pred_check
      _
    $region7: #{simple_rnn_forward.1} parent=1 // pred_check_branch
      %20 = sbr.rel (0) target = $region9
    $region8: #{simple_rnn_forward.1} parent=1 // pred_region
      %s22 = ssub.s32 256, 256
      %23 = vsyncadd [#allocation3], %s22
      %s24 = sshll.u32 [#allocation2], 4
      %s25 = int_to_ptr.vmem [resolvable:$true] %s24
      %30 = dma.hbm_to_vmem [thread:$0]  %s1, 256, %s25, [#allocation3], 128, 128, 8
    $region9: #{simple_rnn_forward.1} parent=1 // pred_fallthru
      _
    // Predicated region
    $region10: #{simple_rnn_forward.1} parent=1 // pred_check
      _
    $region11: #{simple_rnn_forward.1} parent=1 // pred_check_branch
      %32 = sbr.rel (0) target = $region13
    $region12: #{simple_rnn_forward.1} parent=1 // pred_region
      _
    $region13: #{simple_rnn_forward.1} parent=1 // pred_fallthru
      _
    // Predicated region
    $region14: #{simple_rnn_forward.1} parent=1 // pred_check
      _
    $region15: #{simple_rnn_forward.1} parent=1 // pred_check_branch
      %34 = sbr.rel (0) target = $region17
    $region16: #{simple_rnn_forward.1} parent=1 // pred_region
      _
    $region17: #{simple_rnn_forward.1} parent=1 // pred_fallthru
      _
    // Predicated region
    $region18: #{simple_rnn_forward.1} parent=1 // pred_check
      _
    $region19: #{simple_rnn_forward.1} parent=1 // pred_check_branch
      %36 = sbr.rel (0) target = $region21
    $region20: #{simple_rnn_forward.1} parent=1 // pred_region
      %s38 = ssub.s32 64, 64
      %39 = vsyncadd [#allocation5], %s38
      %s41 = sshll.u32 [#allocation4], 4
      %s42 = int_to_ptr.vmem [resolvable:$true] %s41
      %44 = dma.hbm_to_vmem [thread:$0]  %s4, 64, %s42, [#allocation5]
    $region21: #{simple_rnn_forward.1} parent=1 // pred_fallthru
      _
    // Predicated region
    $region22: #{simple_rnn_forward.1} parent=1 // pred_check
      _
    $region23: #{simple_rnn_forward.1} parent=1 // pred_check_branch
      %46 = sbr.rel (0) target = $region25
    $region24: #{simple_rnn_forward.1} parent=1 // pred_region
      %s48 = ssub.s32 64, 64
      %49 = vsyncadd [#allocation5], %s48
      %s51 = sshll.u32 [#allocation6], 4
      %s52 = int_to_ptr.vmem [resolvable:$true] %s51
      %54 = dma.hbm_to_vmem [thread:$0]  %s5, 64, %s52, [#allocation5]
    $region25: #{simple_rnn_forward.1} parent=1 // pred_fallthru
      _
    // Predicated region
    $region26: #{simple_rnn_forward.1} parent=1 // pred_check
      _
    $region27: #{simple_rnn_forward.1} parent=1 // pred_check_branch
      %56 = sbr.rel (0) target = $region29
    $region28: #{simple_rnn_forward.1} parent=1 // pred_region
      _
    $region29: #{simple_rnn_forward.1} parent=1 // pred_fallthru
      _
    // Predicated region
    $region30: #{simple_rnn_forward.1} parent=1 // pred_check
      _
    $region31: #{simple_rnn_forward.1} parent=1 // pred_check_branch
      %58 = sbr.rel (0) target = $region33
    $region32: #{simple_rnn_forward.1} parent=1 // pred_region
      _
    $region33: #{simple_rnn_forward.1} parent=1 // pred_fallthru
      _
    // Predicated region
    $region34: #{simple_rnn_forward.1} parent=1 // pred_check
      _
    $region35: #{simple_rnn_forward.1} parent=1 // pred_check_branch
      %60 = sbr.rel (0) target = $region37
    $region36: #{simple_rnn_forward.1} parent=1 // pred_region
      _
    $region37: #{simple_rnn_forward.1} parent=1 // pred_fallthru
      _
    // Predicated region
    $region38: #{simple_rnn_forward.1} parent=1 // pred_check
      _
    $region39: #{simple_rnn_forward.1} parent=1 // pred_check_branch
      %62 = sbr.rel (0) target = $region41
    $region40: #{simple_rnn_forward.1} parent=1 // pred_region
      _
    $region41: #{simple_rnn_forward.1} parent=1 // pred_fallthru
      _
    // Predicated region
    $region42: #{simple_rnn_forward.1} parent=1 // pred_check
      _
    $region43: #{simple_rnn_forward.1} parent=1 // pred_check_branch
      %64 = sbr.rel (0) target = $region45
    $region44: #{simple_rnn_forward.1} parent=1 // pred_region
      %65 = dma.done [#allocation3], 256
    $region45: #{simple_rnn_forward.1} parent=1 // pred_fallthru
      _
    // Predicated region
    $region46: #{simple_rnn_forward.1} parent=1 // pred_check
      _
    $region47: #{simple_rnn_forward.1} parent=1 // pred_check_branch
      %67 = sbr.rel (0) target = $region49
    $region48: #{simple_rnn_forward.1} parent=1 // pred_region
      %68 = dma.done [#allocation5], 64
    $region49: #{simple_rnn_forward.1} parent=1 // pred_fallthru
      _
    // Predicated region
    $region50: #{simple_rnn_forward.1} parent=1 // pred_check
      _
    $region51: #{simple_rnn_forward.1} parent=1 // pred_check_branch
      %70 = sbr.rel (0) target = $region53
    $region52: #{simple_rnn_forward.1} parent=1 // pred_region
      %71 = dma.done [#allocation5], 64
    $region53: #{simple_rnn_forward.1} parent=1 // pred_fallthru
      _
    %v72 = vld [vmem:[%s0] sm:$0xff]
    %v73 = vld [vmem:[%s0 + $0x8] sm:$0xff]
    %v74 = vld [vmem:[#allocation2] sm:$0xff]
    %v75 = vld [vmem:[#allocation2 + $0x8] sm:$0xff]
    %v76 = vld [vmem:[%s3] sm:$0xff]
    %v77 = vld [vmem:[%s3 + $0x8] sm:$0xff]
    %v78 = vld [vmem:[%s3 + $0x10] sm:$0xff]
    %v79 = vld [vmem:[%s3 + $0x18] sm:$0xff]
    %v80 = vld [vmem:[#allocation4] sm:$0x1]
    %v81 = vld [vmem:[#allocation6] sm:$0x1]
    %v82 = vlaneseq
    %v83 = vshrl.u32 %v82, 7
    %v84 = vsub.s32 0, %v83
    %v85 = vrot.slane %v80, %v84
    %vm86 = vcmask 130048
    %v88 = vsel %vm86, %v72, 0
    %v91 = vsel %vm86, %v73, 0
    %93 = vmatprep.subr.mxu0 0.0
    %94 = vmatpush1.msra.mxu0 0.0
    %95 = vmatprep.subr.mxu0 0.0
    %96 = vmatpush1.msra.mxu0 0.0
    %97 = vmatprep.subr.mxu0 0.0
    %98 = vmatpush1.msra.mxu0 0.0
    %99 = vmatprep.subr.mxu0 0.0
    %100 = vmatpush1.msra.mxu0 0.0
    %101 = vmatprep.subr.mxu0 0.0
    %102 = vmatpush1.msra.mxu0 0.0
    %103 = vmatprep.subr.mxu0 0.0
    %104 = vmatpush1.msra.mxu0 0.0
    %105 = vmatprep.subr.mxu0 0.0
    %106 = vmatpush1.msra.mxu0 0.0
    %107 = vmatprep.subr.mxu0 0.0
    %108 = vmatpush1.msra.mxu0 0.0
    %109 = vmatprep.subr.mxu0 0.0
    %110 = vmatpush1.msra.mxu0 0.0
    %111 = vmatprep.subr.mxu0 0.0
    %112 = vmatpush1.msra.mxu0 0.0
    %113 = vmatprep.subr.mxu0 0.0
    %114 = vmatpush1.msra.mxu0 0.0
    %115 = vmatprep.subr.mxu0 0.0
    %116 = vmatpush1.msra.mxu0 0.0
    %117 = vmatprep.subr.mxu0 0.0
    %118 = vmatpush1.msra.mxu0 0.0
    %119 = vmatprep.subr.mxu0 0.0
    %120 = vmatpush1.msra.mxu0 0.0
    %121 = vmatprep.subr.mxu0 0.0
    %122 = vmatpush1.msra.mxu0 %v75
    %123 = vmatprep.subr.mxu0 0.0
    %124 = vmatpush1.msra.mxu0 %v74
    %125 = vmatprep.subr.mxu0 0.0
    %126 = vmatpush2.msra.mxu0 0.0
    %127 = vmatprep.subr.mxu0 0.0
    %128 = vmatpush2.msra.mxu0 0.0
    %129 = vmatprep.subr.mxu0 0.0
    %130 = vmatpush2.msra.mxu0 0.0
    %131 = vmatprep.subr.mxu0 0.0
    %132 = vmatpush2.msra.mxu0 0.0
    %133 = vmatprep.subr.mxu0 0.0
    %134 = vmatpush2.msra.mxu0 0.0
    %135 = vmatprep.subr.mxu0 0.0
    %136 = vmatpush2.msra.mxu0 0.0
    %137 = vmatprep.subr.mxu0 0.0
    %138 = vmatpush2.msra.mxu0 0.0
    %139 = vmatprep.subr.mxu0 0.0
    %140 = vmatpush2.msra.mxu0 0.0
    %141 = vmatprep.subr.mxu0 0.0
    %142 = vmatpush2.msra.mxu0 0.0
    %143 = vmatprep.subr.mxu0 0.0
    %144 = vmatpush2.msra.mxu0 0.0
    %145 = vmatprep.subr.mxu0 0.0
    %146 = vmatpush2.msra.mxu0 0.0
    %147 = vmatprep.subr.mxu0 0.0
    %148 = vmatpush2.msra.mxu0 0.0
    %149 = vmatprep.subr.mxu0 0.0
    %150 = vmatpush2.msra.mxu0 0.0
    %151 = vmatprep.subr.mxu0 0.0
    %152 = vmatpush2.msra.mxu0 0.0
    %153 = vmatprep.subr.mxu0 0.0
    %154 = vmatpush2.msra.mxu0 0.0
    %155 = vmatprep.subr.mxu0 0.0
    %156 = vmatpush2.msra.mxu0 0.0
    %157 = vmatprep.mubr.f32.mxu0 0.0
    %158 = vmatmul.mubr.f32.gmra.mxu0 %v88
    %v159 = vpop.f32.mrf.mxu0
    %v160 = vadd.f32 %v85, %v159
    %v161 = vpop.f32.mrf.mxu0
    %162 = vmatprep.mubr.f32.mxu0 0.0
    %163 = vmatmul.mubr.f32.gmra.mxu0 %v91
    %v164 = vpop.f32.mrf.mxu0
    %v165 = vadd.f32 %v85, %v164
    %v166 = vpop.f32.mrf.mxu0
    %167 = vdwg.mxu0
    %v168 = vxor.u32 %v160, 2147483648
    %v169 = vmul.f32 %v168, 1.442695
    %v170 = vpow.pop %v169
    %v171 = vadd.f32 %v170, 1.0
    %v172 = vrcp.pop %v171
    %v173 = vmul.f32 1.0, %v172
    %v174 = vlaneseq
    %v175 = vshrl.u32 %v174, 7
    %v176 = vsub.s32 0, %v175
    %v177 = vrot.slane %v81, %v176
    %v178 = vmul.f32 %v173, %v177
    %180 = vrot.lane.b32.xlu0 %v178, 64
    %v181 = vpop.permute.xlu0 %180
    %v183 = vadd.f32 %v160, %v181
    %v184 = vtanh.pop %v183
    %v185 = vsub.f32 1.0, %v173
    %187 = vrot.lane.b32.xlu0 %v184, 96
    %v188 = vpop.permute.xlu0 %187
    %v190 = vmul.f32 %v185, %v188
    %192 = vrot.lane.b32.xlu0 %v190, 96
    %v193 = vpop.permute.xlu0 %192
    %vm194 = vcmask 261120
    %v195 = vsel %vm194, %v193, 0
    %197 = vmatprep.subr.mxu0 0.0
    %198 = vmatpush1.msra.mxu0 0.0
    %199 = vmatprep.subr.mxu0 0.0
    %200 = vmatpush1.msra.mxu0 0.0
    %201 = vmatprep.subr.mxu0 0.0
    %202 = vmatpush1.msra.mxu0 0.0
    %203 = vmatprep.subr.mxu0 0.0
    %204 = vmatpush1.msra.mxu0 0.0
    %205 = vmatprep.subr.mxu0 0.0
    %206 = vmatpush1.msra.mxu0 0.0
    %207 = vmatprep.subr.mxu0 0.0
    %208 = vmatpush1.msra.mxu0 0.0
    %209 = vmatprep.subr.mxu0 0.0
    %210 = vmatpush1.msra.mxu0 0.0
    %211 = vmatprep.subr.mxu0 0.0
    %212 = vmatpush1.msra.mxu0 0.0
    %213 = vmatprep.subr.mxu0 0.0
    %214 = vmatpush1.msra.mxu0 0.0
    %215 = vmatprep.subr.mxu0 0.0
    %216 = vmatpush1.msra.mxu0 0.0
    %217 = vmatprep.subr.mxu0 0.0
    %218 = vmatpush1.msra.mxu0 0.0
    %219 = vmatprep.subr.mxu0 0.0
    %220 = vmatpush1.msra.mxu0 0.0
    %221 = vmatprep.subr.mxu0 0.0
    %222 = vmatpush1.msra.mxu0 %v79
    %223 = vmatprep.subr.mxu0 0.0
    %224 = vmatpush1.msra.mxu0 %v78
    %225 = vmatprep.subr.mxu0 0.0
    %226 = vmatpush1.msra.mxu0 %v77
    %227 = vmatprep.subr.mxu0 0.0
    %228 = vmatpush1.msra.mxu0 %v76
    %229 = vmatprep.subr.mxu0 0.0
    %230 = vmatpush2.msra.mxu0 0.0
    %231 = vmatprep.subr.mxu0 0.0
    %232 = vmatpush2.msra.mxu0 0.0
    %233 = vmatprep.subr.mxu0 0.0
    %234 = vmatpush2.msra.mxu0 0.0
    %235 = vmatprep.subr.mxu0 0.0
    %236 = vmatpush2.msra.mxu0 0.0
    %237 = vmatprep.subr.mxu0 0.0
    %238 = vmatpush2.msra.mxu0 0.0
    %239 = vmatprep.subr.mxu0 0.0
    %240 = vmatpush2.msra.mxu0 0.0
    %241 = vmatprep.subr.mxu0 0.0
    %242 = vmatpush2.msra.mxu0 0.0
    %243 = vmatprep.subr.mxu0 0.0
    %244 = vmatpush2.msra.mxu0 0.0
    %245 = vmatprep.subr.mxu0 0.0
    %246 = vmatpush2.msra.mxu0 0.0
    %247 = vmatprep.subr.mxu0 0.0
    %248 = vmatpush2.msra.mxu0 0.0
    %249 = vmatprep.subr.mxu0 0.0
    %250 = vmatpush2.msra.mxu0 0.0
    %251 = vmatprep.subr.mxu0 0.0
    %252 = vmatpush2.msra.mxu0 0.0
    %253 = vmatprep.subr.mxu0 0.0
    %254 = vmatpush2.msra.mxu0 0.0
    %255 = vmatprep.subr.mxu0 0.0
    %256 = vmatpush2.msra.mxu0 0.0
    %257 = vmatprep.subr.mxu0 0.0
    %258 = vmatpush2.msra.mxu0 0.0
    %259 = vmatprep.subr.mxu0 0.0
    %260 = vmatpush2.msra.mxu0 0.0
    %261 = vmatprep.mubr.f32.mxu0 0.0
    %262 = vmatmul.mubr.f32.gmra.mxu0 %v195
    %v263 = vpop.f32.mrf.mxu0
    %v264 = vadd.f32 0.0, %v263
    %v265 = vpop.f32.mrf.mxu0
    %266 = vdwg.mxu0
    %v268 = vrot.slane %v264, 6
    %v270 = vadd.f32 %v160, %v268
    %v271 = vxor.u32 %v270, 2147483648
    %v272 = vmul.f32 %v271, 1.442695
    %v273 = vpow.pop %v272
    %v274 = vadd.f32 %v273, 1.0
    %v275 = vrcp.pop %v274
    %v276 = vmul.f32 1.0, %v275
    %278 = vrot.lane.b32.xlu0 %v177, 64
    %v279 = vpop.permute.xlu0 %278
    %v281 = vadd.f32 %v264, %v279
    %v283 = vrot.slane %v281, 6
    %284 = vrot.lane.b32.xlu0 %v283, 64
    %v285 = vpop.permute.xlu0 %284
    %v287 = vmul.f32 %v276, %v285
    %289 = vrot.lane.b32.xlu0 %v287, 64
    %v290 = vpop.permute.xlu0 %289
    %v292 = vadd.f32 %v160, %v290
    %v293 = vtanh.pop %v292
    %v294 = vsub.f32 1.0, %v276
    %296 = vrot.lane.b32.xlu0 %v293, 96
    %v297 = vpop.permute.xlu0 %296
    %v299 = vmul.f32 %v294, %v297
    %v300 = vrot.slane %v190, 6
    %v302 = vmul.f32 %v276, %v300
    %v303 = vadd.f32 %v299, %v302
    %v305 = vrot.slane %v303, 2
    %306 = vrot.lane.b32.xlu0 %v305, 96
    %v307 = vpop.permute.xlu0 %306
    %v308 = vsel %vm194, %v307, 0
    %310 = vmatprep.subr.mxu0 0.0
    %311 = vmatpush1.msra.mxu0 0.0
    %312 = vmatprep.subr.mxu0 0.0
    %313 = vmatpush1.msra.mxu0 0.0
    %314 = vmatprep.subr.mxu0 0.0
    %315 = vmatpush1.msra.mxu0 0.0
    %316 = vmatprep.subr.mxu0 0.0
    %317 = vmatpush1.msra.mxu0 0.0
    %318 = vmatprep.subr.mxu0 0.0
    %319 = vmatpush1.msra.mxu0 0.0
    %320 = vmatprep.subr.mxu0 0.0
    %321 = vmatpush1.msra.mxu0 0.0
    %322 = vmatprep.subr.mxu0 0.0
    %323 = vmatpush1.msra.mxu0 0.0
    %324 = vmatprep.subr.mxu0 0.0
    %325 = vmatpush1.msra.mxu0 0.0
    %326 = vmatprep.subr.mxu0 0.0
    %327 = vmatpush1.msra.mxu0 0.0
    %328 = vmatprep.subr.mxu0 0.0
    %329 = vmatpush1.msra.mxu0 0.0
    %330 = vmatprep.subr.mxu0 0.0
    %331 = vmatpush1.msra.mxu0 0.0
    %332 = vmatprep.subr.mxu0 0.0
    %333 = vmatpush1.msra.mxu0 0.0
    %334 = vmatprep.subr.mxu0 0.0
    %335 = vmatpush1.msra.mxu0 %v79
    %336 = vmatprep.subr.mxu0 0.0
    %337 = vmatpush1.msra.mxu0 %v78
    %338 = vmatprep.subr.mxu0 0.0
    %339 = vmatpush1.msra.mxu0 %v77
    %340 = vmatprep.subr.mxu0 0.0
    %341 = vmatpush1.msra.mxu0 %v76
    %342 = vmatprep.subr.mxu0 0.0
    %343 = vmatpush2.msra.mxu0 0.0
    %344 = vmatprep.subr.mxu0 0.0
    %345 = vmatpush2.msra.mxu0 0.0
    %346 = vmatprep.subr.mxu0 0.0
    %347 = vmatpush2.msra.mxu0 0.0
    %348 = vmatprep.subr.mxu0 0.0
    %349 = vmatpush2.msra.mxu0 0.0
    %350 = vmatprep.subr.mxu0 0.0
    %351 = vmatpush2.msra.mxu0 0.0
    %352 = vmatprep.subr.mxu0 0.0
    %353 = vmatpush2.msra.mxu0 0.0
    %354 = vmatprep.subr.mxu0 0.0
    %355 = vmatpush2.msra.mxu0 0.0
    %356 = vmatprep.subr.mxu0 0.0
    %357 = vmatpush2.msra.mxu0 0.0
    %358 = vmatprep.subr.mxu0 0.0
    %359 = vmatpush2.msra.mxu0 0.0
    %360 = vmatprep.subr.mxu0 0.0
    %361 = vmatpush2.msra.mxu0 0.0
    %362 = vmatprep.subr.mxu0 0.0
    %363 = vmatpush2.msra.mxu0 0.0
    %364 = vmatprep.subr.mxu0 0.0
    %365 = vmatpush2.msra.mxu0 0.0
    %366 = vmatprep.subr.mxu0 0.0
    %367 = vmatpush2.msra.mxu0 0.0
    %368 = vmatprep.subr.mxu0 0.0
    %369 = vmatpush2.msra.mxu0 0.0
    %370 = vmatprep.subr.mxu0 0.0
    %371 = vmatpush2.msra.mxu0 0.0
    %372 = vmatprep.subr.mxu0 0.0
    %373 = vmatpush2.msra.mxu0 0.0
    %374 = vmatprep.mubr.f32.mxu0 0.0
    %375 = vmatmul.mubr.f32.gmra.mxu0 %v308
    %v376 = vpop.f32.mrf.mxu0
    %v377 = vadd.f32 0.0, %v376
    %v378 = vpop.f32.mrf.mxu0
    %379 = vdwg.mxu0
    %v381 = vrot.slane %v377, 4
    %v383 = vadd.f32 %v160, %v381
    %v384 = vxor.u32 %v383, 2147483648
    %v385 = vmul.f32 %v384, 1.442695
    %v386 = vpow.pop %v385
    %v387 = vadd.f32 %v386, 1.0
    %v388 = vrcp.pop %v387
    %v389 = vmul.f32 1.0, %v388
    %v390 = vadd.f32 %v377, %v279
    %v392 = vrot.slane %v390, 4
    %393 = vrot.lane.b32.xlu0 %v392, 64
    %v394 = vpop.permute.xlu0 %393
    %v396 = vmul.f32 %v389, %v394
    %398 = vrot.lane.b32.xlu0 %v396, 64
    %v399 = vpop.permute.xlu0 %398
    %v401 = vadd.f32 %v160, %v399
    %v402 = vtanh.pop %v401
    %v403 = vsub.f32 1.0, %v389
    %405 = vrot.lane.b32.xlu0 %v402, 96
    %v406 = vpop.permute.xlu0 %405
    %v408 = vmul.f32 %v403, %v406
    %v409 = vrot.slane %v303, 6
    %v411 = vmul.f32 %v389, %v409
    %v412 = vadd.f32 %v408, %v411
    %v414 = vrot.slane %v412, 4
    %415 = vrot.lane.b32.xlu0 %v414, 96
    %v416 = vpop.permute.xlu0 %415
    %v417 = vsel %vm194, %v416, 0
    %419 = vmatprep.subr.mxu0 0.0
    %420 = vmatpush1.msra.mxu0 0.0
    %421 = vmatprep.subr.mxu0 0.0
    %422 = vmatpush1.msra.mxu0 0.0
    %423 = vmatprep.subr.mxu0 0.0
    %424 = vmatpush1.msra.mxu0 0.0
    %425 = vmatprep.subr.mxu0 0.0
    %426 = vmatpush1.msra.mxu0 0.0
    %427 = vmatprep.subr.mxu0 0.0
    %428 = vmatpush1.msra.mxu0 0.0
    %429 = vmatprep.subr.mxu0 0.0
    %430 = vmatpush1.msra.mxu0 0.0
    %431 = vmatprep.subr.mxu0 0.0
    %432 = vmatpush1.msra.mxu0 0.0
    %433 = vmatprep.subr.mxu0 0.0
    %434 = vmatpush1.msra.mxu0 0.0
    %435 = vmatprep.subr.mxu0 0.0
    %436 = vmatpush1.msra.mxu0 0.0
    %437 = vmatprep.subr.mxu0 0.0
    %438 = vmatpush1.msra.mxu0 0.0
    %439 = vmatprep.subr.mxu0 0.0
    %440 = vmatpush1.msra.mxu0 0.0
    %441 = vmatprep.subr.mxu0 0.0
    %442 = vmatpush1.msra.mxu0 0.0
    %443 = vmatprep.subr.mxu0 0.0
    %444 = vmatpush1.msra.mxu0 %v79
    %445 = vmatprep.subr.mxu0 0.0
    %446 = vmatpush1.msra.mxu0 %v78
    %447 = vmatprep.subr.mxu0 0.0
    %448 = vmatpush1.msra.mxu0 %v77
    %449 = vmatprep.subr.mxu0 0.0
    %450 = vmatpush1.msra.mxu0 %v76
    %451 = vmatprep.subr.mxu0 0.0
    %452 = vmatpush2.msra.mxu0 0.0
    %453 = vmatprep.subr.mxu0 0.0
    %454 = vmatpush2.msra.mxu0 0.0
    %455 = vmatprep.subr.mxu0 0.0
    %456 = vmatpush2.msra.mxu0 0.0
    %457 = vmatprep.subr.mxu0 0.0
    %458 = vmatpush2.msra.mxu0 0.0
    %459 = vmatprep.subr.mxu0 0.0
    %460 = vmatpush2.msra.mxu0 0.0
    %461 = vmatprep.subr.mxu0 0.0
    %462 = vmatpush2.msra.mxu0 0.0
    %463 = vmatprep.subr.mxu0 0.0
    %464 = vmatpush2.msra.mxu0 0.0
    %465 = vmatprep.subr.mxu0 0.0
    %466 = vmatpush2.msra.mxu0 0.0
    %467 = vmatprep.subr.mxu0 0.0
    %468 = vmatpush2.msra.mxu0 0.0
    %469 = vmatprep.subr.mxu0 0.0
    %470 = vmatpush2.msra.mxu0 0.0
    %471 = vmatprep.subr.mxu0 0.0
    %472 = vmatpush2.msra.mxu0 0.0
    %473 = vmatprep.subr.mxu0 0.0
    %474 = vmatpush2.msra.mxu0 0.0
    %475 = vmatprep.subr.mxu0 0.0
    %476 = vmatpush2.msra.mxu0 0.0
    %477 = vmatprep.subr.mxu0 0.0
    %478 = vmatpush2.msra.mxu0 0.0
    %479 = vmatprep.subr.mxu0 0.0
    %480 = vmatpush2.msra.mxu0 0.0
    %481 = vmatprep.subr.mxu0 0.0
    %482 = vmatpush2.msra.mxu0 0.0
    %483 = vmatprep.mubr.f32.mxu0 0.0
    %484 = vmatmul.mubr.f32.gmra.mxu0 %v417
    %v485 = vpop.f32.mrf.mxu0
    %v486 = vadd.f32 0.0, %v485
    %v487 = vpop.f32.mrf.mxu0
    %488 = vdwg.mxu0
    %v490 = vrot.slane %v486, 2
    %v492 = vadd.f32 %v160, %v490
    %v493 = vxor.u32 %v492, 2147483648
    %v494 = vmul.f32 %v493, 1.442695
    %v495 = vpow.pop %v494
    %v496 = vadd.f32 %v495, 1.0
    %v497 = vrcp.pop %v496
    %v498 = vmul.f32 1.0, %v497
    %v499 = vadd.f32 %v486, %v279
    %v501 = vrot.slane %v499, 2
    %502 = vrot.lane.b32.xlu0 %v501, 64
    %v503 = vpop.permute.xlu0 %502
    %v505 = vmul.f32 %v498, %v503
    %507 = vrot.lane.b32.xlu0 %v505, 64
    %v508 = vpop.permute.xlu0 %507
    %v510 = vadd.f32 %v160, %v508
    %v511 = vtanh.pop %v510
    %v512 = vsub.f32 1.0, %v498
    %514 = vrot.lane.b32.xlu0 %v511, 96
    %v515 = vpop.permute.xlu0 %514
    %v517 = vmul.f32 %v512, %v515
    %v518 = vrot.slane %v412, 6
    %v520 = vmul.f32 %v498, %v518
    %v521 = vadd.f32 %v517, %v520
    %v523 = vrot.slane %v521, 6
    %524 = vrot.lane.b32.xlu0 %v523, 96
    %v525 = vpop.permute.xlu0 %524
    %v526 = vsel %vm194, %v525, 0
    %528 = vmatprep.subr.mxu0 0.0
    %529 = vmatpush1.msra.mxu0 0.0
    %530 = vmatprep.subr.mxu0 0.0
    %531 = vmatpush1.msra.mxu0 0.0
    %532 = vmatprep.subr.mxu0 0.0
    %533 = vmatpush1.msra.mxu0 0.0
    %534 = vmatprep.subr.mxu0 0.0
    %535 = vmatpush1.msra.mxu0 0.0
    %536 = vmatprep.subr.mxu0 0.0
    %537 = vmatpush1.msra.mxu0 0.0
    %538 = vmatprep.subr.mxu0 0.0
    %539 = vmatpush1.msra.mxu0 0.0
    %540 = vmatprep.subr.mxu0 0.0
    %541 = vmatpush1.msra.mxu0 0.0
    %542 = vmatprep.subr.mxu0 0.0
    %543 = vmatpush1.msra.mxu0 0.0
    %544 = vmatprep.subr.mxu0 0.0
    %545 = vmatpush1.msra.mxu0 0.0
    %546 = vmatprep.subr.mxu0 0.0
    %547 = vmatpush1.msra.mxu0 0.0
    %548 = vmatprep.subr.mxu0 0.0
    %549 = vmatpush1.msra.mxu0 0.0
    %550 = vmatprep.subr.mxu0 0.0
    %551 = vmatpush1.msra.mxu0 0.0
    %552 = vmatprep.subr.mxu0 0.0
    %553 = vmatpush1.msra.mxu0 %v79
    %554 = vmatprep.subr.mxu0 0.0
    %555 = vmatpush1.msra.mxu0 %v78
    %556 = vmatprep.subr.mxu0 0.0
    %557 = vmatpush1.msra.mxu0 %v77
    %558 = vmatprep.subr.mxu0 0.0
    %559 = vmatpush1.msra.mxu0 %v76
    %560 = vmatprep.subr.mxu0 0.0
    %561 = vmatpush2.msra.mxu0 0.0
    %562 = vmatprep.subr.mxu0 0.0
    %563 = vmatpush2.msra.mxu0 0.0
    %564 = vmatprep.subr.mxu0 0.0
    %565 = vmatpush2.msra.mxu0 0.0
    %566 = vmatprep.subr.mxu0 0.0
    %567 = vmatpush2.msra.mxu0 0.0
    %568 = vmatprep.subr.mxu0 0.0
    %569 = vmatpush2.msra.mxu0 0.0
    %570 = vmatprep.subr.mxu0 0.0
    %571 = vmatpush2.msra.mxu0 0.0
    %572 = vmatprep.subr.mxu0 0.0
    %573 = vmatpush2.msra.mxu0 0.0
    %574 = vmatprep.subr.mxu0 0.0
    %575 = vmatpush2.msra.mxu0 0.0
    %576 = vmatprep.subr.mxu0 0.0
    %577 = vmatpush2.msra.mxu0 0.0
    %578 = vmatprep.subr.mxu0 0.0
    %579 = vmatpush2.msra.mxu0 0.0
    %580 = vmatprep.subr.mxu0 0.0
    %581 = vmatpush2.msra.mxu0 0.0
    %582 = vmatprep.subr.mxu0 0.0
    %583 = vmatpush2.msra.mxu0 0.0
    %584 = vmatprep.subr.mxu0 0.0
    %585 = vmatpush2.msra.mxu0 0.0
    %586 = vmatprep.subr.mxu0 0.0
    %587 = vmatpush2.msra.mxu0 0.0
    %588 = vmatprep.subr.mxu0 0.0
    %589 = vmatpush2.msra.mxu0 0.0
    %590 = vmatprep.subr.mxu0 0.0
    %591 = vmatpush2.msra.mxu0 0.0
    %592 = vmatprep.mubr.f32.mxu0 0.0
    %593 = vmatmul.mubr.f32.gmra.mxu0 %v526
    %v594 = vpop.f32.mrf.mxu0
    %v595 = vadd.f32 0.0, %v594
    %v596 = vpop.f32.mrf.mxu0
    %597 = vdwg.mxu0
    %v598 = vadd.f32 %v165, %v595
    %v599 = vxor.u32 %v598, 2147483648
    %v600 = vmul.f32 %v599, 1.442695
    %v601 = vpow.pop %v600
    %v602 = vadd.f32 %v601, 1.0
    %v603 = vrcp.pop %v602
    %v604 = vmul.f32 1.0, %v603
    %v605 = vadd.f32 %v595, %v279
    %607 = vrot.lane.b32.xlu0 %v605, 64
    %v608 = vpop.permute.xlu0 %607
    %v610 = vmul.f32 %v604, %v608
    %612 = vrot.lane.b32.xlu0 %v610, 64
    %v613 = vpop.permute.xlu0 %612
    %v615 = vadd.f32 %v165, %v613
    %v616 = vtanh.pop %v615
    %v617 = vsub.f32 1.0, %v604
    %619 = vrot.lane.b32.xlu0 %v616, 96
    %v620 = vpop.permute.xlu0 %619
    %v622 = vmul.f32 %v617, %v620
    %v624 = vmul.f32 %v604, %v523
    %v625 = vadd.f32 %v622, %v624
    %627 = vrot.lane.b32.xlu0 %v625, 96
    %v628 = vpop.permute.xlu0 %627
    %v629 = vsel %vm194, %v628, 0
    %631 = vmatprep.subr.mxu0 0.0
    %632 = vmatpush1.msra.mxu0 0.0
    %633 = vmatprep.subr.mxu0 0.0
    %634 = vmatpush1.msra.mxu0 0.0
    %635 = vmatprep.subr.mxu0 0.0
    %636 = vmatpush1.msra.mxu0 0.0
    %637 = vmatprep.subr.mxu0 0.0
    %638 = vmatpush1.msra.mxu0 0.0
    %639 = vmatprep.subr.mxu0 0.0
    %640 = vmatpush1.msra.mxu0 0.0
    %641 = vmatprep.subr.mxu0 0.0
    %642 = vmatpush1.msra.mxu0 0.0
    %643 = vmatprep.subr.mxu0 0.0
    %644 = vmatpush1.msra.mxu0 0.0
    %645 = vmatprep.subr.mxu0 0.0
    %646 = vmatpush1.msra.mxu0 0.0
    %647 = vmatprep.subr.mxu0 0.0
    %648 = vmatpush1.msra.mxu0 0.0
    %649 = vmatprep.subr.mxu0 0.0
    %650 = vmatpush1.msra.mxu0 0.0
    %651 = vmatprep.subr.mxu0 0.0
    %652 = vmatpush1.msra.mxu0 0.0
    %653 = vmatprep.subr.mxu0 0.0
    %654 = vmatpush1.msra.mxu0 0.0
    %655 = vmatprep.subr.mxu0 0.0
    %656 = vmatpush1.msra.mxu0 %v79
    %657 = vmatprep.subr.mxu0 0.0
    %658 = vmatpush1.msra.mxu0 %v78
    %659 = vmatprep.subr.mxu0 0.0
    %660 = vmatpush1.msra.mxu0 %v77
    %661 = vmatprep.subr.mxu0 0.0
    %662 = vmatpush1.msra.mxu0 %v76
    %663 = vmatprep.subr.mxu0 0.0
    %664 = vmatpush2.msra.mxu0 0.0
    %665 = vmatprep.subr.mxu0 0.0
    %666 = vmatpush2.msra.mxu0 0.0
    %667 = vmatprep.subr.mxu0 0.0
    %668 = vmatpush2.msra.mxu0 0.0
    %669 = vmatprep.subr.mxu0 0.0
    %670 = vmatpush2.msra.mxu0 0.0
    %671 = vmatprep.subr.mxu0 0.0
    %672 = vmatpush2.msra.mxu0 0.0
    %673 = vmatprep.subr.mxu0 0.0
    %674 = vmatpush2.msra.mxu0 0.0
    %675 = vmatprep.subr.mxu0 0.0
    %676 = vmatpush2.msra.mxu0 0.0
    %677 = vmatprep.subr.mxu0 0.0
    %678 = vmatpush2.msra.mxu0 0.0
    %679 = vmatprep.subr.mxu0 0.0
    %680 = vmatpush2.msra.mxu0 0.0
    %681 = vmatprep.subr.mxu0 0.0
    %682 = vmatpush2.msra.mxu0 0.0
    %683 = vmatprep.subr.mxu0 0.0
    %684 = vmatpush2.msra.mxu0 0.0
    %685 = vmatprep.subr.mxu0 0.0
    %686 = vmatpush2.msra.mxu0 0.0
    %687 = vmatprep.subr.mxu0 0.0
    %688 = vmatpush2.msra.mxu0 0.0
    %689 = vmatprep.subr.mxu0 0.0
    %690 = vmatpush2.msra.mxu0 0.0
    %691 = vmatprep.subr.mxu0 0.0
    %692 = vmatpush2.msra.mxu0 0.0
    %693 = vmatprep.subr.mxu0 0.0
    %694 = vmatpush2.msra.mxu0 0.0
    %695 = vmatprep.mubr.f32.mxu0 0.0
    %696 = vmatmul.mubr.f32.gmra.mxu0 %v629
    %v697 = vpop.f32.mrf.mxu0
    %v698 = vadd.f32 0.0, %v697
    %v699 = vpop.f32.mrf.mxu0
    %700 = vdwg.mxu0
    %v702 = vrot.slane %v698, 6
    %v704 = vadd.f32 %v165, %v702
    %v705 = vxor.u32 %v704, 2147483648
    %v706 = vmul.f32 %v705, 1.442695
    %v707 = vpow.pop %v706
    %v708 = vadd.f32 %v707, 1.0
    %v709 = vrcp.pop %v708
    %v710 = vmul.f32 1.0, %v709
    %v711 = vadd.f32 %v698, %v279
    %v713 = vrot.slane %v711, 6
    %714 = vrot.lane.b32.xlu0 %v713, 64
    %v715 = vpop.permute.xlu0 %714
    %v717 = vmul.f32 %v710, %v715
    %719 = vrot.lane.b32.xlu0 %v717, 64
    %v720 = vpop.permute.xlu0 %719
    %v722 = vadd.f32 %v165, %v720
    %v723 = vtanh.pop %v722
    %v724 = vsub.f32 1.0, %v710
    %726 = vrot.lane.b32.xlu0 %v723, 96
    %v727 = vpop.permute.xlu0 %726
    %v729 = vmul.f32 %v724, %v727
    %v730 = vrot.slane %v625, 6
    %v732 = vmul.f32 %v710, %v730
    %v733 = vadd.f32 %v729, %v732
    %v735 = vrot.slane %v733, 2
    %736 = vrot.lane.b32.xlu0 %v735, 96
    %v737 = vpop.permute.xlu0 %736
    %v738 = vsel %vm194, %v737, 0
    %740 = vmatprep.subr.mxu0 0.0
    %741 = vmatpush1.msra.mxu0 0.0
    %742 = vmatprep.subr.mxu0 0.0
    %743 = vmatpush1.msra.mxu0 0.0
    %744 = vmatprep.subr.mxu0 0.0
    %745 = vmatpush1.msra.mxu0 0.0
    %746 = vmatprep.subr.mxu0 0.0
    %747 = vmatpush1.msra.mxu0 0.0
    %748 = vmatprep.subr.mxu0 0.0
    %749 = vmatpush1.msra.mxu0 0.0
    %750 = vmatprep.subr.mxu0 0.0
    %751 = vmatpush1.msra.mxu0 0.0
    %752 = vmatprep.subr.mxu0 0.0
    %753 = vmatpush1.msra.mxu0 0.0
    %754 = vmatprep.subr.mxu0 0.0
    %755 = vmatpush1.msra.mxu0 0.0
    %756 = vmatprep.subr.mxu0 0.0
    %757 = vmatpush1.msra.mxu0 0.0
    %758 = vmatprep.subr.mxu0 0.0
    %759 = vmatpush1.msra.mxu0 0.0
    %760 = vmatprep.subr.mxu0 0.0
    %761 = vmatpush1.msra.mxu0 0.0
    %762 = vmatprep.subr.mxu0 0.0
    %763 = vmatpush1.msra.mxu0 0.0
    %764 = vmatprep.subr.mxu0 0.0
    %765 = vmatpush1.msra.mxu0 %v79
    %766 = vmatprep.subr.mxu0 0.0
    %767 = vmatpush1.msra.mxu0 %v78
    %768 = vmatprep.subr.mxu0 0.0
    %769 = vmatpush1.msra.mxu0 %v77
    %770 = vmatprep.subr.mxu0 0.0
    %771 = vmatpush1.msra.mxu0 %v76
    %772 = vmatprep.subr.mxu0 0.0
    %773 = vmatpush2.msra.mxu0 0.0
    %774 = vmatprep.subr.mxu0 0.0
    %775 = vmatpush2.msra.mxu0 0.0
    %776 = vmatprep.subr.mxu0 0.0
    %777 = vmatpush2.msra.mxu0 0.0
    %778 = vmatprep.subr.mxu0 0.0
    %779 = vmatpush2.msra.mxu0 0.0
    %780 = vmatprep.subr.mxu0 0.0
    %781 = vmatpush2.msra.mxu0 0.0
    %782 = vmatprep.subr.mxu0 0.0
    %783 = vmatpush2.msra.mxu0 0.0
    %784 = vmatprep.subr.mxu0 0.0
    %785 = vmatpush2.msra.mxu0 0.0
    %786 = vmatprep.subr.mxu0 0.0
    %787 = vmatpush2.msra.mxu0 0.0
    %788 = vmatprep.subr.mxu0 0.0
    %789 = vmatpush2.msra.mxu0 0.0
    %790 = vmatprep.subr.mxu0 0.0
    %791 = vmatpush2.msra.mxu0 0.0
    %792 = vmatprep.subr.mxu0 0.0
    %793 = vmatpush2.msra.mxu0 0.0
    %794 = vmatprep.subr.mxu0 0.0
    %795 = vmatpush2.msra.mxu0 0.0
    %796 = vmatprep.subr.mxu0 0.0
    %797 = vmatpush2.msra.mxu0 0.0
    %798 = vmatprep.subr.mxu0 0.0
    %799 = vmatpush2.msra.mxu0 0.0
    %800 = vmatprep.subr.mxu0 0.0
    %801 = vmatpush2.msra.mxu0 0.0
    %802 = vmatprep.subr.mxu0 0.0
    %803 = vmatpush2.msra.mxu0 0.0
    %804 = vmatprep.mubr.f32.mxu0 0.0
    %805 = vmatmul.mubr.f32.gmra.mxu0 %v738
    %v806 = vpop.f32.mrf.mxu0
    %v807 = vadd.f32 0.0, %v806
    %v808 = vpop.f32.mrf.mxu0
    %809 = vdwg.mxu0
    %v811 = vrot.slane %v807, 4
    %v813 = vadd.f32 %v165, %v811
    %v814 = vxor.u32 %v813, 2147483648
    %v815 = vmul.f32 %v814, 1.442695
    %v816 = vpow.pop %v815
    %v817 = vadd.f32 %v816, 1.0
    %v818 = vrcp.pop %v817
    %v819 = vmul.f32 1.0, %v818
    %v820 = vadd.f32 %v807, %v279
    %v822 = vrot.slane %v820, 4
    %823 = vrot.lane.b32.xlu0 %v822, 64
    %v824 = vpop.permute.xlu0 %823
    %v826 = vmul.f32 %v819, %v824
    %828 = vrot.lane.b32.xlu0 %v826, 64
    %v829 = vpop.permute.xlu0 %828
    %v831 = vadd.f32 %v165, %v829
    %v832 = vtanh.pop %v831
    %v833 = vsub.f32 1.0, %v819
    %835 = vrot.lane.b32.xlu0 %v832, 96
    %v836 = vpop.permute.xlu0 %835
    %v838 = vmul.f32 %v833, %v836
    %v839 = vrot.slane %v733, 6
    %v841 = vmul.f32 %v819, %v839
    %v842 = vadd.f32 %v838, %v841
    %v844 = vrot.slane %v842, 4
    %845 = vrot.lane.b32.xlu0 %v844, 96
    %v846 = vpop.permute.xlu0 %845
    %v847 = vsel %vm194, %v846, 0
    %849 = vmatprep.subr.mxu0 0.0
    %850 = vmatpush1.msra.mxu0 0.0
    %851 = vmatprep.subr.mxu0 0.0
    %852 = vmatpush1.msra.mxu0 0.0
    %853 = vmatprep.subr.mxu0 0.0
    %854 = vmatpush1.msra.mxu0 0.0
    %855 = vmatprep.subr.mxu0 0.0
    %856 = vmatpush1.msra.mxu0 0.0
    %857 = vmatprep.subr.mxu0 0.0
    %858 = vmatpush1.msra.mxu0 0.0
    %859 = vmatprep.subr.mxu0 0.0
    %860 = vmatpush1.msra.mxu0 0.0
    %861 = vmatprep.subr.mxu0 0.0
    %862 = vmatpush1.msra.mxu0 0.0
    %863 = vmatprep.subr.mxu0 0.0
    %864 = vmatpush1.msra.mxu0 0.0
    %865 = vmatprep.subr.mxu0 0.0
    %866 = vmatpush1.msra.mxu0 0.0
    %867 = vmatprep.subr.mxu0 0.0
    %868 = vmatpush1.msra.mxu0 0.0
    %869 = vmatprep.subr.mxu0 0.0
    %870 = vmatpush1.msra.mxu0 0.0
    %871 = vmatprep.subr.mxu0 0.0
    %872 = vmatpush1.msra.mxu0 0.0
    %873 = vmatprep.subr.mxu0 0.0
    %874 = vmatpush1.msra.mxu0 %v79
    %875 = vmatprep.subr.mxu0 0.0
    %876 = vmatpush1.msra.mxu0 %v78
    %877 = vmatprep.subr.mxu0 0.0
    %878 = vmatpush1.msra.mxu0 %v77
    %879 = vmatprep.subr.mxu0 0.0
    %880 = vmatpush1.msra.mxu0 %v76
    %881 = vmatprep.subr.mxu0 0.0
    %882 = vmatpush2.msra.mxu0 0.0
    %883 = vmatprep.subr.mxu0 0.0
    %884 = vmatpush2.msra.mxu0 0.0
    %885 = vmatprep.subr.mxu0 0.0
    %886 = vmatpush2.msra.mxu0 0.0
    %887 = vmatprep.subr.mxu0 0.0
    %888 = vmatpush2.msra.mxu0 0.0
    %889 = vmatprep.subr.mxu0 0.0
    %890 = vmatpush2.msra.mxu0 0.0
    %891 = vmatprep.subr.mxu0 0.0
    %892 = vmatpush2.msra.mxu0 0.0
    %893 = vmatprep.subr.mxu0 0.0
    %894 = vmatpush2.msra.mxu0 0.0
    %895 = vmatprep.subr.mxu0 0.0
    %896 = vmatpush2.msra.mxu0 0.0
    %897 = vmatprep.subr.mxu0 0.0
    %898 = vmatpush2.msra.mxu0 0.0
    %899 = vmatprep.subr.mxu0 0.0
    %900 = vmatpush2.msra.mxu0 0.0
    %901 = vmatprep.subr.mxu0 0.0
    %902 = vmatpush2.msra.mxu0 0.0
    %903 = vmatprep.subr.mxu0 0.0
    %904 = vmatpush2.msra.mxu0 0.0
    %905 = vmatprep.subr.mxu0 0.0
    %906 = vmatpush2.msra.mxu0 0.0
    %907 = vmatprep.subr.mxu0 0.0
    %908 = vmatpush2.msra.mxu0 0.0
    %909 = vmatprep.subr.mxu0 0.0
    %910 = vmatpush2.msra.mxu0 0.0
    %911 = vmatprep.subr.mxu0 0.0
    %912 = vmatpush2.msra.mxu0 0.0
    %913 = vmatprep.mubr.f32.mxu0 0.0
    %914 = vmatmul.mubr.f32.gmra.mxu0 %v847
    %v915 = vpop.f32.mrf.mxu0
    %v916 = vadd.f32 0.0, %v915
    %v917 = vpop.f32.mrf.mxu0
    %918 = vdwg.mxu0
    %v920 = vrot.slane %v916, 2
    %v922 = vadd.f32 %v165, %v920
    %v923 = vxor.u32 %v922, 2147483648
    %v924 = vmul.f32 %v923, 1.442695
    %v925 = vpow.pop %v924
    %v926 = vadd.f32 %v925, 1.0
    %v927 = vrcp.pop %v926
    %v928 = vmul.f32 1.0, %v927
    %v929 = vadd.f32 %v916, %v279
    %v931 = vrot.slane %v929, 2
    %932 = vrot.lane.b32.xlu0 %v931, 64
    %v933 = vpop.permute.xlu0 %932
    %v935 = vmul.f32 %v928, %v933
    %937 = vrot.lane.b32.xlu0 %v935, 64
    %v938 = vpop.permute.xlu0 %937
    %v940 = vadd.f32 %v165, %v938
    %v941 = vtanh.pop %v940
    %v942 = vsub.f32 1.0, %v928
    %944 = vrot.lane.b32.xlu0 %v941, 96
    %v945 = vpop.permute.xlu0 %944
    %v947 = vmul.f32 %v942, %v945
    %v948 = vrot.slane %v842, 6
    %v950 = vmul.f32 %v928, %v948
    %v951 = vadd.f32 %v947, %v950
    %vm952 = vcmask 1041408
    %v953 = vsel %vm952, %v190, %v303
    %vm954 = vcmask 1043456
    %v955 = vsel %vm954, %v953, %v412
    %vm956 = vcmask 1045504
    %v957 = vsel %vm956, %v955, %v521
    %v958 = vsel %vm952, %v625, %v733
    %v959 = vsel %vm954, %v958, %v842
    %v960 = vsel %vm956, %v959, %v951
    %v961 = vld [vmem:[%s2] sm:$0xff]
    %v962 = vld [vmem:[%s2 + $0x8] sm:$0xff]
    %v963 = vld [vmem:[%s2 + $0x10] sm:$0xff]
    %v964 = vld [vmem:[%s2 + $0x18] sm:$0xff]
    %s965 = scalar_lea.vmem %s3, 32
    %v966 = vld [vmem:[%s965] sm:$0xff]
    %v967 = vld [vmem:[%s965 + $0x8] sm:$0xff]
    %v968 = vld [vmem:[%s965 + $0x10] sm:$0xff]
    %v969 = vld [vmem:[%s965 + $0x18] sm:$0xff]
    %v970 = vld [vmem:[#allocation4 + $0x1] sm:$0x1]
    %v971 = vld [vmem:[#allocation6 + $0x1] sm:$0x1]
    %v972 = vlaneseq
    %v973 = vshrl.u32 %v972, 7
    %v974 = vsub.s32 0, %v973
    %v975 = vrot.slane %v970, %v974
    %978 = vrot.lane.b32.xlu0 %v957, 96
    %v979 = vpop.permute.xlu0 %978
    %980 = vrot.lane.b32.xlu0 %v960, 96
    %v981 = vpop.permute.xlu0 %980
    %v982 = vsel %vm194, %v979, 0
    %v984 = vsel %vm194, %v981, 0
    %986 = vmatprep.subr.mxu0 0.0
    %987 = vmatpush1.msra.mxu0 0.0
    %988 = vmatprep.subr.mxu0 0.0
    %989 = vmatpush1.msra.mxu0 0.0
    %990 = vmatprep.subr.mxu0 0.0
    %991 = vmatpush1.msra.mxu0 0.0
    %992 = vmatprep.subr.mxu0 0.0
    %993 = vmatpush1.msra.mxu0 0.0
    %994 = vmatprep.subr.mxu0 0.0
    %995 = vmatpush1.msra.mxu0 0.0
    %996 = vmatprep.subr.mxu0 0.0
    %997 = vmatpush1.msra.mxu0 0.0
    %998 = vmatprep.subr.mxu0 0.0
    %999 = vmatpush1.msra.mxu0 0.0
    %1000 = vmatprep.subr.mxu0 0.0
    %1001 = vmatpush1.msra.mxu0 0.0
    %1002 = vmatprep.subr.mxu0 0.0
    %1003 = vmatpush1.msra.mxu0 0.0
    %1004 = vmatprep.subr.mxu0 0.0
    %1005 = vmatpush1.msra.mxu0 0.0
    %1006 = vmatprep.subr.mxu0 0.0
    %1007 = vmatpush1.msra.mxu0 0.0
    %1008 = vmatprep.subr.mxu0 0.0
    %1009 = vmatpush1.msra.mxu0 0.0
    %1010 = vmatprep.subr.mxu0 0.0
    %1011 = vmatpush1.msra.mxu0 %v964
    %1012 = vmatprep.subr.mxu0 0.0
    %1013 = vmatpush1.msra.mxu0 %v963
    %1014 = vmatprep.subr.mxu0 0.0
    %1015 = vmatpush1.msra.mxu0 %v962
    %1016 = vmatprep.subr.mxu0 0.0
    %1017 = vmatpush1.msra.mxu0 %v961
    %1018 = vmatprep.subr.mxu0 0.0
    %1019 = vmatpush2.msra.mxu0 0.0
    %1020 = vmatprep.subr.mxu0 0.0
    %1021 = vmatpush2.msra.mxu0 0.0
    %1022 = vmatprep.subr.mxu0 0.0
    %1023 = vmatpush2.msra.mxu0 0.0
    %1024 = vmatprep.subr.mxu0 0.0
    %1025 = vmatpush2.msra.mxu0 0.0
    %1026 = vmatprep.subr.mxu0 0.0
    %1027 = vmatpush2.msra.mxu0 0.0
    %1028 = vmatprep.subr.mxu0 0.0
    %1029 = vmatpush2.msra.mxu0 0.0
    %1030 = vmatprep.subr.mxu0 0.0
    %1031 = vmatpush2.msra.mxu0 0.0
    %1032 = vmatprep.subr.mxu0 0.0
    %1033 = vmatpush2.msra.mxu0 0.0
    %1034 = vmatprep.subr.mxu0 0.0
    %1035 = vmatpush2.msra.mxu0 0.0
    %1036 = vmatprep.subr.mxu0 0.0
    %1037 = vmatpush2.msra.mxu0 0.0
    %1038 = vmatprep.subr.mxu0 0.0
    %1039 = vmatpush2.msra.mxu0 0.0
    %1040 = vmatprep.subr.mxu0 0.0
    %1041 = vmatpush2.msra.mxu0 0.0
    %1042 = vmatprep.subr.mxu0 0.0
    %1043 = vmatpush2.msra.mxu0 0.0
    %1044 = vmatprep.subr.mxu0 0.0
    %1045 = vmatpush2.msra.mxu0 0.0
    %1046 = vmatprep.subr.mxu0 0.0
    %1047 = vmatpush2.msra.mxu0 0.0
    %1048 = vmatprep.subr.mxu0 0.0
    %1049 = vmatpush2.msra.mxu0 0.0
    %1050 = vmatprep.mubr.f32.mxu0 0.0
    %1051 = vmatmul.mubr.f32.gmra.mxu0 %v982
    %v1052 = vpop.f32.mrf.mxu0
    %v1053 = vadd.f32 %v975, %v1052
    %v1054 = vpop.f32.mrf.mxu0
    %1055 = vmatprep.mubr.f32.mxu0 0.0
    %1056 = vmatmul.mubr.f32.gmra.mxu0 %v984
    %v1057 = vpop.f32.mrf.mxu0
    %v1058 = vadd.f32 %v975, %v1057
    %v1059 = vpop.f32.mrf.mxu0
    %1060 = vdwg.mxu0
    %v1061 = vxor.u32 %v1053, 2147483648
    %v1062 = vmul.f32 %v1061, 1.442695
    %v1063 = vpow.pop %v1062
    %v1064 = vadd.f32 %v1063, 1.0
    %v1065 = vrcp.pop %v1064
    %v1066 = vmul.f32 1.0, %v1065
    %v1067 = vlaneseq
    %v1068 = vshrl.u32 %v1067, 7
    %v1069 = vsub.s32 0, %v1068
    %v1070 = vrot.slane %v971, %v1069
    %v1071 = vmul.f32 %v1066, %v1070
    %1073 = vrot.lane.b32.xlu0 %v1071, 64
    %v1074 = vpop.permute.xlu0 %1073
    %v1076 = vadd.f32 %v1053, %v1074
    %v1077 = vtanh.pop %v1076
    %v1078 = vsub.f32 1.0, %v1066
    %1080 = vrot.lane.b32.xlu0 %v1077, 96
    %v1081 = vpop.permute.xlu0 %1080
    %v1083 = vmul.f32 %v1078, %v1081
    %1085 = vrot.lane.b32.xlu0 %v1083, 96
    %v1086 = vpop.permute.xlu0 %1085
    %v1087 = vsel %vm194, %v1086, 0
    %1089 = vmatprep.subr.mxu0 0.0
    %1090 = vmatpush1.msra.mxu0 0.0
    %1091 = vmatprep.subr.mxu0 0.0
    %1092 = vmatpush1.msra.mxu0 0.0
    %1093 = vmatprep.subr.mxu0 0.0
    %1094 = vmatpush1.msra.mxu0 0.0
    %1095 = vmatprep.subr.mxu0 0.0
    %1096 = vmatpush1.msra.mxu0 0.0
    %1097 = vmatprep.subr.mxu0 0.0
    %1098 = vmatpush1.msra.mxu0 0.0
    %1099 = vmatprep.subr.mxu0 0.0
    %1100 = vmatpush1.msra.mxu0 0.0
    %1101 = vmatprep.subr.mxu0 0.0
    %1102 = vmatpush1.msra.mxu0 0.0
    %1103 = vmatprep.subr.mxu0 0.0
    %1104 = vmatpush1.msra.mxu0 0.0
    %1105 = vmatprep.subr.mxu0 0.0
    %1106 = vmatpush1.msra.mxu0 0.0
    %1107 = vmatprep.subr.mxu0 0.0
    %1108 = vmatpush1.msra.mxu0 0.0
    %1109 = vmatprep.subr.mxu0 0.0
    %1110 = vmatpush1.msra.mxu0 0.0
    %1111 = vmatprep.subr.mxu0 0.0
    %1112 = vmatpush1.msra.mxu0 0.0
    %1113 = vmatprep.subr.mxu0 0.0
    %1114 = vmatpush1.msra.mxu0 %v969
    %1115 = vmatprep.subr.mxu0 0.0
    %1116 = vmatpush1.msra.mxu0 %v968
    %1117 = vmatprep.subr.mxu0 0.0
    %1118 = vmatpush1.msra.mxu0 %v967
    %1119 = vmatprep.subr.mxu0 0.0
    %1120 = vmatpush1.msra.mxu0 %v966
    %1121 = vmatprep.subr.mxu0 0.0
    %1122 = vmatpush2.msra.mxu0 0.0
    %1123 = vmatprep.subr.mxu0 0.0
    %1124 = vmatpush2.msra.mxu0 0.0
    %1125 = vmatprep.subr.mxu0 0.0
    %1126 = vmatpush2.msra.mxu0 0.0
    %1127 = vmatprep.subr.mxu0 0.0
    %1128 = vmatpush2.msra.mxu0 0.0
    %1129 = vmatprep.subr.mxu0 0.0
    %1130 = vmatpush2.msra.mxu0 0.0
    %1131 = vmatprep.subr.mxu0 0.0
    %1132 = vmatpush2.msra.mxu0 0.0
    %1133 = vmatprep.subr.mxu0 0.0
    %1134 = vmatpush2.msra.mxu0 0.0
    %1135 = vmatprep.subr.mxu0 0.0
    %1136 = vmatpush2.msra.mxu0 0.0
    %1137 = vmatprep.subr.mxu0 0.0
    %1138 = vmatpush2.msra.mxu0 0.0
    %1139 = vmatprep.subr.mxu0 0.0
    %1140 = vmatpush2.msra.mxu0 0.0
    %1141 = vmatprep.subr.mxu0 0.0
    %1142 = vmatpush2.msra.mxu0 0.0
    %1143 = vmatprep.subr.mxu0 0.0
    %1144 = vmatpush2.msra.mxu0 0.0
    %1145 = vmatprep.subr.mxu0 0.0
    %1146 = vmatpush2.msra.mxu0 0.0
    %1147 = vmatprep.subr.mxu0 0.0
    %1148 = vmatpush2.msra.mxu0 0.0
    %1149 = vmatprep.subr.mxu0 0.0
    %1150 = vmatpush2.msra.mxu0 0.0
    %1151 = vmatprep.subr.mxu0 0.0
    %1152 = vmatpush2.msra.mxu0 0.0
    %1153 = vmatprep.mubr.f32.mxu0 0.0
    %1154 = vmatmul.mubr.f32.gmra.mxu0 %v1087
    %v1155 = vpop.f32.mrf.mxu0
    %v1156 = vadd.f32 0.0, %v1155
    %v1157 = vpop.f32.mrf.mxu0
    %1158 = vdwg.mxu0
    %v1160 = vrot.slane %v1156, 6
    %v1162 = vadd.f32 %v1053, %v1160
    %v1163 = vxor.u32 %v1162, 2147483648
    %v1164 = vmul.f32 %v1163, 1.442695
    %v1165 = vpow.pop %v1164
    %v1166 = vadd.f32 %v1165, 1.0
    %v1167 = vrcp.pop %v1166
    %v1168 = vmul.f32 1.0, %v1167
    %1170 = vrot.lane.b32.xlu0 %v1070, 64
    %v1171 = vpop.permute.xlu0 %1170
    %v1173 = vadd.f32 %v1156, %v1171
    %v1175 = vrot.slane %v1173, 6
    %1176 = vrot.lane.b32.xlu0 %v1175, 64
    %v1177 = vpop.permute.xlu0 %1176
    %v1179 = vmul.f32 %v1168, %v1177
    %1181 = vrot.lane.b32.xlu0 %v1179, 64
    %v1182 = vpop.permute.xlu0 %1181
    %v1184 = vadd.f32 %v1053, %v1182
    %v1185 = vtanh.pop %v1184
    %v1186 = vsub.f32 1.0, %v1168
    %1188 = vrot.lane.b32.xlu0 %v1185, 96
    %v1189 = vpop.permute.xlu0 %1188
    %v1191 = vmul.f32 %v1186, %v1189
    %v1192 = vrot.slane %v1083, 6
    %v1194 = vmul.f32 %v1168, %v1192
    %v1195 = vadd.f32 %v1191, %v1194
    %v1197 = vrot.slane %v1195, 2
    %1198 = vrot.lane.b32.xlu0 %v1197, 96
    %v1199 = vpop.permute.xlu0 %1198
    %v1200 = vsel %vm194, %v1199, 0
    %1202 = vmatprep.subr.mxu0 0.0
    %1203 = vmatpush1.msra.mxu0 0.0
    %1204 = vmatprep.subr.mxu0 0.0
    %1205 = vmatpush1.msra.mxu0 0.0
    %1206 = vmatprep.subr.mxu0 0.0
    %1207 = vmatpush1.msra.mxu0 0.0
    %1208 = vmatprep.subr.mxu0 0.0
    %1209 = vmatpush1.msra.mxu0 0.0
    %1210 = vmatprep.subr.mxu0 0.0
    %1211 = vmatpush1.msra.mxu0 0.0
    %1212 = vmatprep.subr.mxu0 0.0
    %1213 = vmatpush1.msra.mxu0 0.0
    %1214 = vmatprep.subr.mxu0 0.0
    %1215 = vmatpush1.msra.mxu0 0.0
    %1216 = vmatprep.subr.mxu0 0.0
    %1217 = vmatpush1.msra.mxu0 0.0
    %1218 = vmatprep.subr.mxu0 0.0
    %1219 = vmatpush1.msra.mxu0 0.0
    %1220 = vmatprep.subr.mxu0 0.0
    %1221 = vmatpush1.msra.mxu0 0.0
    %1222 = vmatprep.subr.mxu0 0.0
    %1223 = vmatpush1.msra.mxu0 0.0
    %1224 = vmatprep.subr.mxu0 0.0
    %1225 = vmatpush1.msra.mxu0 0.0
    %1226 = vmatprep.subr.mxu0 0.0
    %1227 = vmatpush1.msra.mxu0 %v969
    %1228 = vmatprep.subr.mxu0 0.0
    %1229 = vmatpush1.msra.mxu0 %v968
    %1230 = vmatprep.subr.mxu0 0.0
    %1231 = vmatpush1.msra.mxu0 %v967
    %1232 = vmatprep.subr.mxu0 0.0
    %1233 = vmatpush1.msra.mxu0 %v966
    %1234 = vmatprep.subr.mxu0 0.0
    %1235 = vmatpush2.msra.mxu0 0.0
    %1236 = vmatprep.subr.mxu0 0.0
    %1237 = vmatpush2.msra.mxu0 0.0
    %1238 = vmatprep.subr.mxu0 0.0
    %1239 = vmatpush2.msra.mxu0 0.0
    %1240 = vmatprep.subr.mxu0 0.0
    %1241 = vmatpush2.msra.mxu0 0.0
    %1242 = vmatprep.subr.mxu0 0.0
    %1243 = vmatpush2.msra.mxu0 0.0
    %1244 = vmatprep.subr.mxu0 0.0
    %1245 = vmatpush2.msra.mxu0 0.0
    %1246 = vmatprep.subr.mxu0 0.0
    %1247 = vmatpush2.msra.mxu0 0.0
    %1248 = vmatprep.subr.mxu0 0.0
    %1249 = vmatpush2.msra.mxu0 0.0
    %1250 = vmatprep.subr.mxu0 0.0
    %1251 = vmatpush2.msra.mxu0 0.0
    %1252 = vmatprep.subr.mxu0 0.0
    %1253 = vmatpush2.msra.mxu0 0.0
    %1254 = vmatprep.subr.mxu0 0.0
    %1255 = vmatpush2.msra.mxu0 0.0
    %1256 = vmatprep.subr.mxu0 0.0
    %1257 = vmatpush2.msra.mxu0 0.0
    %1258 = vmatprep.subr.mxu0 0.0
    %1259 = vmatpush2.msra.mxu0 0.0
    %1260 = vmatprep.subr.mxu0 0.0
    %1261 = vmatpush2.msra.mxu0 0.0
    %1262 = vmatprep.subr.mxu0 0.0
    %1263 = vmatpush2.msra.mxu0 0.0
    %1264 = vmatprep.subr.mxu0 0.0
    %1265 = vmatpush2.msra.mxu0 0.0
    %1266 = vmatprep.mubr.f32.mxu0 0.0
    %1267 = vmatmul.mubr.f32.gmra.mxu0 %v1200
    %v1268 = vpop.f32.mrf.mxu0
    %v1269 = vadd.f32 0.0, %v1268
    %v1270 = vpop.f32.mrf.mxu0
    %1271 = vdwg.mxu0
    %v1273 = vrot.slane %v1269, 4
    %v1275 = vadd.f32 %v1053, %v1273
    %v1276 = vxor.u32 %v1275, 2147483648
    %v1277 = vmul.f32 %v1276, 1.442695
    %v1278 = vpow.pop %v1277
    %v1279 = vadd.f32 %v1278, 1.0
    %v1280 = vrcp.pop %v1279
    %v1281 = vmul.f32 1.0, %v1280
    %v1282 = vadd.f32 %v1269, %v1171
    %v1284 = vrot.slane %v1282, 4
    %1285 = vrot.lane.b32.xlu0 %v1284, 64
    %v1286 = vpop.permute.xlu0 %1285
    %v1288 = vmul.f32 %v1281, %v1286
    %1290 = vrot.lane.b32.xlu0 %v1288, 64
    %v1291 = vpop.permute.xlu0 %1290
    %v1293 = vadd.f32 %v1053, %v1291
    %v1294 = vtanh.pop %v1293
    %v1295 = vsub.f32 1.0, %v1281
    %1297 = vrot.lane.b32.xlu0 %v1294, 96
    %v1298 = vpop.permute.xlu0 %1297
    %v1300 = vmul.f32 %v1295, %v1298
    %v1301 = vrot.slane %v1195, 6
    %v1303 = vmul.f32 %v1281, %v1301
    %v1304 = vadd.f32 %v1300, %v1303
    %v1306 = vrot.slane %v1304, 4
    %1307 = vrot.lane.b32.xlu0 %v1306, 96
    %v1308 = vpop.permute.xlu0 %1307
    %v1309 = vsel %vm194, %v1308, 0
    %1311 = vmatprep.subr.mxu0 0.0
    %1312 = vmatpush1.msra.mxu0 0.0
    %1313 = vmatprep.subr.mxu0 0.0
    %1314 = vmatpush1.msra.mxu0 0.0
    %1315 = vmatprep.subr.mxu0 0.0
    %1316 = vmatpush1.msra.mxu0 0.0
    %1317 = vmatprep.subr.mxu0 0.0
    %1318 = vmatpush1.msra.mxu0 0.0
    %1319 = vmatprep.subr.mxu0 0.0
    %1320 = vmatpush1.msra.mxu0 0.0
    %1321 = vmatprep.subr.mxu0 0.0
    %1322 = vmatpush1.msra.mxu0 0.0
    %1323 = vmatprep.subr.mxu0 0.0
    %1324 = vmatpush1.msra.mxu0 0.0
    %1325 = vmatprep.subr.mxu0 0.0
    %1326 = vmatpush1.msra.mxu0 0.0
    %1327 = vmatprep.subr.mxu0 0.0
    %1328 = vmatpush1.msra.mxu0 0.0
    %1329 = vmatprep.subr.mxu0 0.0
    %1330 = vmatpush1.msra.mxu0 0.0
    %1331 = vmatprep.subr.mxu0 0.0
    %1332 = vmatpush1.msra.mxu0 0.0
    %1333 = vmatprep.subr.mxu0 0.0
    %1334 = vmatpush1.msra.mxu0 0.0
    %1335 = vmatprep.subr.mxu0 0.0
    %1336 = vmatpush1.msra.mxu0 %v969
    %1337 = vmatprep.subr.mxu0 0.0
    %1338 = vmatpush1.msra.mxu0 %v968
    %1339 = vmatprep.subr.mxu0 0.0
    %1340 = vmatpush1.msra.mxu0 %v967
    %1341 = vmatprep.subr.mxu0 0.0
    %1342 = vmatpush1.msra.mxu0 %v966
    %1343 = vmatprep.subr.mxu0 0.0
    %1344 = vmatpush2.msra.mxu0 0.0
    %1345 = vmatprep.subr.mxu0 0.0
    %1346 = vmatpush2.msra.mxu0 0.0
    %1347 = vmatprep.subr.mxu0 0.0
    %1348 = vmatpush2.msra.mxu0 0.0
    %1349 = vmatprep.subr.mxu0 0.0
    %1350 = vmatpush2.msra.mxu0 0.0
    %1351 = vmatprep.subr.mxu0 0.0
    %1352 = vmatpush2.msra.mxu0 0.0
    %1353 = vmatprep.subr.mxu0 0.0
    %1354 = vmatpush2.msra.mxu0 0.0
    %1355 = vmatprep.subr.mxu0 0.0
    %1356 = vmatpush2.msra.mxu0 0.0
    %1357 = vmatprep.subr.mxu0 0.0
    %1358 = vmatpush2.msra.mxu0 0.0
    %1359 = vmatprep.subr.mxu0 0.0
    %1360 = vmatpush2.msra.mxu0 0.0
    %1361 = vmatprep.subr.mxu0 0.0
    %1362 = vmatpush2.msra.mxu0 0.0
    %1363 = vmatprep.subr.mxu0 0.0
    %1364 = vmatpush2.msra.mxu0 0.0
    %1365 = vmatprep.subr.mxu0 0.0
    %1366 = vmatpush2.msra.mxu0 0.0
    %1367 = vmatprep.subr.mxu0 0.0
    %1368 = vmatpush2.msra.mxu0 0.0
    %1369 = vmatprep.subr.mxu0 0.0
    %1370 = vmatpush2.msra.mxu0 0.0
    %1371 = vmatprep.subr.mxu0 0.0
    %1372 = vmatpush2.msra.mxu0 0.0
    %1373 = vmatprep.subr.mxu0 0.0
    %1374 = vmatpush2.msra.mxu0 0.0
    %1375 = vmatprep.mubr.f32.mxu0 0.0
    %1376 = vmatmul.mubr.f32.gmra.mxu0 %v1309
    %v1377 = vpop.f32.mrf.mxu0
    %v1378 = vadd.f32 0.0, %v1377
    %v1379 = vpop.f32.mrf.mxu0
    %1380 = vdwg.mxu0
    %v1382 = vrot.slane %v1378, 2
    %v1384 = vadd.f32 %v1053, %v1382
    %v1385 = vxor.u32 %v1384, 2147483648
    %v1386 = vmul.f32 %v1385, 1.442695
    %v1387 = vpow.pop %v1386
    %v1388 = vadd.f32 %v1387, 1.0
    %v1389 = vrcp.pop %v1388
    %v1390 = vmul.f32 1.0, %v1389
    %v1391 = vadd.f32 %v1378, %v1171
    %v1393 = vrot.slane %v1391, 2
    %1394 = vrot.lane.b32.xlu0 %v1393, 64
    %v1395 = vpop.permute.xlu0 %1394
    %v1397 = vmul.f32 %v1390, %v1395
    %1399 = vrot.lane.b32.xlu0 %v1397, 64
    %v1400 = vpop.permute.xlu0 %1399
    %v1402 = vadd.f32 %v1053, %v1400
    %v1403 = vtanh.pop %v1402
    %v1404 = vsub.f32 1.0, %v1390
    %1406 = vrot.lane.b32.xlu0 %v1403, 96
    %v1407 = vpop.permute.xlu0 %1406
    %v1409 = vmul.f32 %v1404, %v1407
    %v1410 = vrot.slane %v1304, 6
    %v1412 = vmul.f32 %v1390, %v1410
    %v1413 = vadd.f32 %v1409, %v1412
    %v1415 = vrot.slane %v1413, 6
    %1416 = vrot.lane.b32.xlu0 %v1415, 96
    %v1417 = vpop.permute.xlu0 %1416
    %v1418 = vsel %vm194, %v1417, 0
    %1420 = vmatprep.subr.mxu0 0.0
    %1421 = vmatpush1.msra.mxu0 0.0
    %1422 = vmatprep.subr.mxu0 0.0
    %1423 = vmatpush1.msra.mxu0 0.0
    %1424 = vmatprep.subr.mxu0 0.0
    %1425 = vmatpush1.msra.mxu0 0.0
    %1426 = vmatprep.subr.mxu0 0.0
    %1427 = vmatpush1.msra.mxu0 0.0
    %1428 = vmatprep.subr.mxu0 0.0
    %1429 = vmatpush1.msra.mxu0 0.0
    %1430 = vmatprep.subr.mxu0 0.0
    %1431 = vmatpush1.msra.mxu0 0.0
    %1432 = vmatprep.subr.mxu0 0.0
    %1433 = vmatpush1.msra.mxu0 0.0
    %1434 = vmatprep.subr.mxu0 0.0
    %1435 = vmatpush1.msra.mxu0 0.0
    %1436 = vmatprep.subr.mxu0 0.0
    %1437 = vmatpush1.msra.mxu0 0.0
    %1438 = vmatprep.subr.mxu0 0.0
    %1439 = vmatpush1.msra.mxu0 0.0
    %1440 = vmatprep.subr.mxu0 0.0
    %1441 = vmatpush1.msra.mxu0 0.0
    %1442 = vmatprep.subr.mxu0 0.0
    %1443 = vmatpush1.msra.mxu0 0.0
    %1444 = vmatprep.subr.mxu0 0.0
    %1445 = vmatpush1.msra.mxu0 %v969
    %1446 = vmatprep.subr.mxu0 0.0
    %1447 = vmatpush1.msra.mxu0 %v968
    %1448 = vmatprep.subr.mxu0 0.0
    %1449 = vmatpush1.msra.mxu0 %v967
    %1450 = vmatprep.subr.mxu0 0.0
    %1451 = vmatpush1.msra.mxu0 %v966
    %1452 = vmatprep.subr.mxu0 0.0
    %1453 = vmatpush2.msra.mxu0 0.0
    %1454 = vmatprep.subr.mxu0 0.0
    %1455 = vmatpush2.msra.mxu0 0.0
    %1456 = vmatprep.subr.mxu0 0.0
    %1457 = vmatpush2.msra.mxu0 0.0
    %1458 = vmatprep.subr.mxu0 0.0
    %1459 = vmatpush2.msra.mxu0 0.0
    %1460 = vmatprep.subr.mxu0 0.0
    %1461 = vmatpush2.msra.mxu0 0.0
    %1462 = vmatprep.subr.mxu0 0.0
    %1463 = vmatpush2.msra.mxu0 0.0
    %1464 = vmatprep.subr.mxu0 0.0
    %1465 = vmatpush2.msra.mxu0 0.0
    %1466 = vmatprep.subr.mxu0 0.0
    %1467 = vmatpush2.msra.mxu0 0.0
    %1468 = vmatprep.subr.mxu0 0.0
    %1469 = vmatpush2.msra.mxu0 0.0
    %1470 = vmatprep.subr.mxu0 0.0
    %1471 = vmatpush2.msra.mxu0 0.0
    %1472 = vmatprep.subr.mxu0 0.0
    %1473 = vmatpush2.msra.mxu0 0.0
    %1474 = vmatprep.subr.mxu0 0.0
    %1475 = vmatpush2.msra.mxu0 0.0
    %1476 = vmatprep.subr.mxu0 0.0
    %1477 = vmatpush2.msra.mxu0 0.0
    %1478 = vmatprep.subr.mxu0 0.0
    %1479 = vmatpush2.msra.mxu0 0.0
    %1480 = vmatprep.subr.mxu0 0.0
    %1481 = vmatpush2.msra.mxu0 0.0
    %1482 = vmatprep.subr.mxu0 0.0
    %1483 = vmatpush2.msra.mxu0 0.0
    %1484 = vmatprep.mubr.f32.mxu0 0.0
    %1485 = vmatmul.mubr.f32.gmra.mxu0 %v1418
    %v1486 = vpop.f32.mrf.mxu0
    %v1487 = vadd.f32 0.0, %v1486
    %v1488 = vpop.f32.mrf.mxu0
    %1489 = vdwg.mxu0
    %v1490 = vadd.f32 %v1058, %v1487
    %v1491 = vxor.u32 %v1490, 2147483648
    %v1492 = vmul.f32 %v1491, 1.442695
    %v1493 = vpow.pop %v1492
    %v1494 = vadd.f32 %v1493, 1.0
    %v1495 = vrcp.pop %v1494
    %v1496 = vmul.f32 1.0, %v1495
    %v1497 = vadd.f32 %v1487, %v1171
    %1499 = vrot.lane.b32.xlu0 %v1497, 64
    %v1500 = vpop.permute.xlu0 %1499
    %v1502 = vmul.f32 %v1496, %v1500
    %1504 = vrot.lane.b32.xlu0 %v1502, 64
    %v1505 = vpop.permute.xlu0 %1504
    %v1507 = vadd.f32 %v1058, %v1505
    %v1508 = vtanh.pop %v1507
    %v1509 = vsub.f32 1.0, %v1496
    %1511 = vrot.lane.b32.xlu0 %v1508, 96
    %v1512 = vpop.permute.xlu0 %1511
    %v1514 = vmul.f32 %v1509, %v1512
    %v1516 = vmul.f32 %v1496, %v1415
    %v1517 = vadd.f32 %v1514, %v1516
    %1519 = vrot.lane.b32.xlu0 %v1517, 96
    %v1520 = vpop.permute.xlu0 %1519
    %v1521 = vsel %vm194, %v1520, 0
    %1523 = vmatprep.subr.mxu0 0.0
    %1524 = vmatpush1.msra.mxu0 0.0
    %1525 = vmatprep.subr.mxu0 0.0
    %1526 = vmatpush1.msra.mxu0 0.0
    %1527 = vmatprep.subr.mxu0 0.0
    %1528 = vmatpush1.msra.mxu0 0.0
    %1529 = vmatprep.subr.mxu0 0.0
    %1530 = vmatpush1.msra.mxu0 0.0
    %1531 = vmatprep.subr.mxu0 0.0
    %1532 = vmatpush1.msra.mxu0 0.0
    %1533 = vmatprep.subr.mxu0 0.0
    %1534 = vmatpush1.msra.mxu0 0.0
    %1535 = vmatprep.subr.mxu0 0.0
    %1536 = vmatpush1.msra.mxu0 0.0
    %1537 = vmatprep.subr.mxu0 0.0
    %1538 = vmatpush1.msra.mxu0 0.0
    %1539 = vmatprep.subr.mxu0 0.0
    %1540 = vmatpush1.msra.mxu0 0.0
    %1541 = vmatprep.subr.mxu0 0.0
    %1542 = vmatpush1.msra.mxu0 0.0
    %1543 = vmatprep.subr.mxu0 0.0
    %1544 = vmatpush1.msra.mxu0 0.0
    %1545 = vmatprep.subr.mxu0 0.0
    %1546 = vmatpush1.msra.mxu0 0.0
    %1547 = vmatprep.subr.mxu0 0.0
    %1548 = vmatpush1.msra.mxu0 %v969
    %1549 = vmatprep.subr.mxu0 0.0
    %1550 = vmatpush1.msra.mxu0 %v968
    %1551 = vmatprep.subr.mxu0 0.0
    %1552 = vmatpush1.msra.mxu0 %v967
    %1553 = vmatprep.subr.mxu0 0.0
    %1554 = vmatpush1.msra.mxu0 %v966
    %1555 = vmatprep.subr.mxu0 0.0
    %1556 = vmatpush2.msra.mxu0 0.0
    %1557 = vmatprep.subr.mxu0 0.0
    %1558 = vmatpush2.msra.mxu0 0.0
    %1559 = vmatprep.subr.mxu0 0.0
    %1560 = vmatpush2.msra.mxu0 0.0
    %1561 = vmatprep.subr.mxu0 0.0
    %1562 = vmatpush2.msra.mxu0 0.0
    %1563 = vmatprep.subr.mxu0 0.0
    %1564 = vmatpush2.msra.mxu0 0.0
    %1565 = vmatprep.subr.mxu0 0.0
    %1566 = vmatpush2.msra.mxu0 0.0
    %1567 = vmatprep.subr.mxu0 0.0
    %1568 = vmatpush2.msra.mxu0 0.0
    %1569 = vmatprep.subr.mxu0 0.0
    %1570 = vmatpush2.msra.mxu0 0.0
    %1571 = vmatprep.subr.mxu0 0.0
    %1572 = vmatpush2.msra.mxu0 0.0
    %1573 = vmatprep.subr.mxu0 0.0
    %1574 = vmatpush2.msra.mxu0 0.0
    %1575 = vmatprep.subr.mxu0 0.0
    %1576 = vmatpush2.msra.mxu0 0.0
    %1577 = vmatprep.subr.mxu0 0.0
    %1578 = vmatpush2.msra.mxu0 0.0
    %1579 = vmatprep.subr.mxu0 0.0
    %1580 = vmatpush2.msra.mxu0 0.0
    %1581 = vmatprep.subr.mxu0 0.0
    %1582 = vmatpush2.msra.mxu0 0.0
    %1583 = vmatprep.subr.mxu0 0.0
    %1584 = vmatpush2.msra.mxu0 0.0
    %1585 = vmatprep.subr.mxu0 0.0
    %1586 = vmatpush2.msra.mxu0 0.0
    %1587 = vmatprep.mubr.f32.mxu0 0.0
    %1588 = vmatmul.mubr.f32.gmra.mxu0 %v1521
    %v1589 = vpop.f32.mrf.mxu0
    %v1590 = vadd.f32 0.0, %v1589
    %v1591 = vpop.f32.mrf.mxu0
    %1592 = vdwg.mxu0
    %v1594 = vrot.slane %v1590, 6
    %v1596 = vadd.f32 %v1058, %v1594
    %v1597 = vxor.u32 %v1596, 2147483648
    %v1598 = vmul.f32 %v1597, 1.442695
    %v1599 = vpow.pop %v1598
    %v1600 = vadd.f32 %v1599, 1.0
    %v1601 = vrcp.pop %v1600
    %v1602 = vmul.f32 1.0, %v1601
    %v1603 = vadd.f32 %v1590, %v1171
    %v1605 = vrot.slane %v1603, 6
    %1606 = vrot.lane.b32.xlu0 %v1605, 64
    %v1607 = vpop.permute.xlu0 %1606
    %v1609 = vmul.f32 %v1602, %v1607
    %1611 = vrot.lane.b32.xlu0 %v1609, 64
    %v1612 = vpop.permute.xlu0 %1611
    %v1614 = vadd.f32 %v1058, %v1612
    %v1615 = vtanh.pop %v1614
    %v1616 = vsub.f32 1.0, %v1602
    %1618 = vrot.lane.b32.xlu0 %v1615, 96
    %v1619 = vpop.permute.xlu0 %1618
    %v1621 = vmul.f32 %v1616, %v1619
    %v1622 = vrot.slane %v1517, 6
    %v1624 = vmul.f32 %v1602, %v1622
    %v1625 = vadd.f32 %v1621, %v1624
    %v1627 = vrot.slane %v1625, 2
    %1628 = vrot.lane.b32.xlu0 %v1627, 96
    %v1629 = vpop.permute.xlu0 %1628
    %v1630 = vsel %vm194, %v1629, 0
    %1632 = vmatprep.subr.mxu0 0.0
    %1633 = vmatpush1.msra.mxu0 0.0
    %1634 = vmatprep.subr.mxu0 0.0
    %1635 = vmatpush1.msra.mxu0 0.0
    %1636 = vmatprep.subr.mxu0 0.0
    %1637 = vmatpush1.msra.mxu0 0.0
    %1638 = vmatprep.subr.mxu0 0.0
    %1639 = vmatpush1.msra.mxu0 0.0
    %1640 = vmatprep.subr.mxu0 0.0
    %1641 = vmatpush1.msra.mxu0 0.0
    %1642 = vmatprep.subr.mxu0 0.0
    %1643 = vmatpush1.msra.mxu0 0.0
    %1644 = vmatprep.subr.mxu0 0.0
    %1645 = vmatpush1.msra.mxu0 0.0
    %1646 = vmatprep.subr.mxu0 0.0
    %1647 = vmatpush1.msra.mxu0 0.0
    %1648 = vmatprep.subr.mxu0 0.0
    %1649 = vmatpush1.msra.mxu0 0.0
    %1650 = vmatprep.subr.mxu0 0.0
    %1651 = vmatpush1.msra.mxu0 0.0
    %1652 = vmatprep.subr.mxu0 0.0
    %1653 = vmatpush1.msra.mxu0 0.0
    %1654 = vmatprep.subr.mxu0 0.0
    %1655 = vmatpush1.msra.mxu0 0.0
    %1656 = vmatprep.subr.mxu0 0.0
    %1657 = vmatpush1.msra.mxu0 %v969
    %1658 = vmatprep.subr.mxu0 0.0
    %1659 = vmatpush1.msra.mxu0 %v968
    %1660 = vmatprep.subr.mxu0 0.0
    %1661 = vmatpush1.msra.mxu0 %v967
    %1662 = vmatprep.subr.mxu0 0.0
    %1663 = vmatpush1.msra.mxu0 %v966
    %1664 = vmatprep.subr.mxu0 0.0
    %1665 = vmatpush2.msra.mxu0 0.0
    %1666 = vmatprep.subr.mxu0 0.0
    %1667 = vmatpush2.msra.mxu0 0.0
    %1668 = vmatprep.subr.mxu0 0.0
    %1669 = vmatpush2.msra.mxu0 0.0
    %1670 = vmatprep.subr.mxu0 0.0
    %1671 = vmatpush2.msra.mxu0 0.0
    %1672 = vmatprep.subr.mxu0 0.0
    %1673 = vmatpush2.msra.mxu0 0.0
    %1674 = vmatprep.subr.mxu0 0.0
    %1675 = vmatpush2.msra.mxu0 0.0
    %1676 = vmatprep.subr.mxu0 0.0
    %1677 = vmatpush2.msra.mxu0 0.0
    %1678 = vmatprep.subr.mxu0 0.0
    %1679 = vmatpush2.msra.mxu0 0.0
    %1680 = vmatprep.subr.mxu0 0.0
    %1681 = vmatpush2.msra.mxu0 0.0
    %1682 = vmatprep.subr.mxu0 0.0
    %1683 = vmatpush2.msra.mxu0 0.0
    %1684 = vmatprep.subr.mxu0 0.0
    %1685 = vmatpush2.msra.mxu0 0.0
    %1686 = vmatprep.subr.mxu0 0.0
    %1687 = vmatpush2.msra.mxu0 0.0
    %1688 = vmatprep.subr.mxu0 0.0
    %1689 = vmatpush2.msra.mxu0 0.0
    %1690 = vmatprep.subr.mxu0 0.0
    %1691 = vmatpush2.msra.mxu0 0.0
    %1692 = vmatprep.subr.mxu0 0.0
    %1693 = vmatpush2.msra.mxu0 0.0
    %1694 = vmatprep.subr.mxu0 0.0
    %1695 = vmatpush2.msra.mxu0 0.0
    %1696 = vmatprep.mubr.f32.mxu0 0.0
    %1697 = vmatmul.mubr.f32.gmra.mxu0 %v1630
    %v1698 = vpop.f32.mrf.mxu0
    %v1699 = vadd.f32 0.0, %v1698
    %v1700 = vpop.f32.mrf.mxu0
    %1701 = vdwg.mxu0
    %v1703 = vrot.slane %v1699, 4
    %v1705 = vadd.f32 %v1058, %v1703
    %v1706 = vxor.u32 %v1705, 2147483648
    %v1707 = vmul.f32 %v1706, 1.442695
    %v1708 = vpow.pop %v1707
    %v1709 = vadd.f32 %v1708, 1.0
    %v1710 = vrcp.pop %v1709
    %v1711 = vmul.f32 1.0, %v1710
    %v1712 = vadd.f32 %v1699, %v1171
    %v1714 = vrot.slane %v1712, 4
    %1715 = vrot.lane.b32.xlu0 %v1714, 64
    %v1716 = vpop.permute.xlu0 %1715
    %v1718 = vmul.f32 %v1711, %v1716
    %1720 = vrot.lane.b32.xlu0 %v1718, 64
    %v1721 = vpop.permute.xlu0 %1720
    %v1723 = vadd.f32 %v1058, %v1721
    %v1724 = vtanh.pop %v1723
    %v1725 = vsub.f32 1.0, %v1711
    %1727 = vrot.lane.b32.xlu0 %v1724, 96
    %v1728 = vpop.permute.xlu0 %1727
    %v1730 = vmul.f32 %v1725, %v1728
    %v1731 = vrot.slane %v1625, 6
    %v1733 = vmul.f32 %v1711, %v1731
    %v1734 = vadd.f32 %v1730, %v1733
    %v1736 = vrot.slane %v1734, 4
    %1737 = vrot.lane.b32.xlu0 %v1736, 96
    %v1738 = vpop.permute.xlu0 %1737
    %v1739 = vsel %vm194, %v1738, 0
    %1741 = vmatprep.subr.mxu0 0.0
    %1742 = vmatpush1.msra.mxu0 0.0
    %1743 = vmatprep.subr.mxu0 0.0
    %1744 = vmatpush1.msra.mxu0 0.0
    %1745 = vmatprep.subr.mxu0 0.0
    %1746 = vmatpush1.msra.mxu0 0.0
    %1747 = vmatprep.subr.mxu0 0.0
    %1748 = vmatpush1.msra.mxu0 0.0
    %1749 = vmatprep.subr.mxu0 0.0
    %1750 = vmatpush1.msra.mxu0 0.0
    %1751 = vmatprep.subr.mxu0 0.0
    %1752 = vmatpush1.msra.mxu0 0.0
    %1753 = vmatprep.subr.mxu0 0.0
    %1754 = vmatpush1.msra.mxu0 0.0
    %1755 = vmatprep.subr.mxu0 0.0
    %1756 = vmatpush1.msra.mxu0 0.0
    %1757 = vmatprep.subr.mxu0 0.0
    %1758 = vmatpush1.msra.mxu0 0.0
    %1759 = vmatprep.subr.mxu0 0.0
    %1760 = vmatpush1.msra.mxu0 0.0
    %1761 = vmatprep.subr.mxu0 0.0
    %1762 = vmatpush1.msra.mxu0 0.0
    %1763 = vmatprep.subr.mxu0 0.0
    %1764 = vmatpush1.msra.mxu0 0.0
    %1765 = vmatprep.subr.mxu0 0.0
    %1766 = vmatpush1.msra.mxu0 %v969
    %1767 = vmatprep.subr.mxu0 0.0
    %1768 = vmatpush1.msra.mxu0 %v968
    %1769 = vmatprep.subr.mxu0 0.0
    %1770 = vmatpush1.msra.mxu0 %v967
    %1771 = vmatprep.subr.mxu0 0.0
    %1772 = vmatpush1.msra.mxu0 %v966
    %1773 = vmatprep.subr.mxu0 0.0
    %1774 = vmatpush2.msra.mxu0 0.0
    %1775 = vmatprep.subr.mxu0 0.0
    %1776 = vmatpush2.msra.mxu0 0.0
    %1777 = vmatprep.subr.mxu0 0.0
    %1778 = vmatpush2.msra.mxu0 0.0
    %1779 = vmatprep.subr.mxu0 0.0
    %1780 = vmatpush2.msra.mxu0 0.0
    %1781 = vmatprep.subr.mxu0 0.0
    %1782 = vmatpush2.msra.mxu0 0.0
    %1783 = vmatprep.subr.mxu0 0.0
    %1784 = vmatpush2.msra.mxu0 0.0
    %1785 = vmatprep.subr.mxu0 0.0
    %1786 = vmatpush2.msra.mxu0 0.0
    %1787 = vmatprep.subr.mxu0 0.0
    %1788 = vmatpush2.msra.mxu0 0.0
    %1789 = vmatprep.subr.mxu0 0.0
    %1790 = vmatpush2.msra.mxu0 0.0
    %1791 = vmatprep.subr.mxu0 0.0
    %1792 = vmatpush2.msra.mxu0 0.0
    %1793 = vmatprep.subr.mxu0 0.0
    %1794 = vmatpush2.msra.mxu0 0.0
    %1795 = vmatprep.subr.mxu0 0.0
    %1796 = vmatpush2.msra.mxu0 0.0
    %1797 = vmatprep.subr.mxu0 0.0
    %1798 = vmatpush2.msra.mxu0 0.0
    %1799 = vmatprep.subr.mxu0 0.0
    %1800 = vmatpush2.msra.mxu0 0.0
    %1801 = vmatprep.subr.mxu0 0.0
    %1802 = vmatpush2.msra.mxu0 0.0
    %1803 = vmatprep.subr.mxu0 0.0
    %1804 = vmatpush2.msra.mxu0 0.0
    %1805 = vmatprep.mubr.f32.mxu0 0.0
    %1806 = vmatmul.mubr.f32.gmra.mxu0 %v1739
    %v1807 = vpop.f32.mrf.mxu0
    %v1808 = vadd.f32 0.0, %v1807
    %v1809 = vpop.f32.mrf.mxu0
    %1810 = vdwg.mxu0
    %v1812 = vrot.slane %v1808, 2
    %v1814 = vadd.f32 %v1058, %v1812
    %v1815 = vxor.u32 %v1814, 2147483648
    %v1816 = vmul.f32 %v1815, 1.442695
    %v1817 = vpow.pop %v1816
    %v1818 = vadd.f32 %v1817, 1.0
    %v1819 = vrcp.pop %v1818
    %v1820 = vmul.f32 1.0, %v1819
    %v1821 = vadd.f32 %v1808, %v1171
    %v1823 = vrot.slane %v1821, 2
    %1824 = vrot.lane.b32.xlu0 %v1823, 64
    %v1825 = vpop.permute.xlu0 %1824
    %v1827 = vmul.f32 %v1820, %v1825
    %1829 = vrot.lane.b32.xlu0 %v1827, 64
    %v1830 = vpop.permute.xlu0 %1829
    %v1832 = vadd.f32 %v1058, %v1830
    %v1833 = vtanh.pop %v1832
    %v1834 = vsub.f32 1.0, %v1820
    %1836 = vrot.lane.b32.xlu0 %v1833, 96
    %v1837 = vpop.permute.xlu0 %1836
    %v1839 = vmul.f32 %v1834, %v1837
    %v1840 = vrot.slane %v1734, 6
    %v1842 = vmul.f32 %v1820, %v1840
    %v1843 = vadd.f32 %v1839, %v1842
    %v1844 = vsel %vm952, %v1083, %v1195
    %v1845 = vsel %vm954, %v1844, %v1304
    %v1846 = vsel %vm956, %v1845, %v1413
    %v1847 = vsel %vm952, %v1517, %v1625
    %v1848 = vsel %vm954, %v1847, %v1734
    %v1849 = vsel %vm956, %v1848, %v1843
    %s1850 = scalar_lea.vmem %s2, 32
    %v1851 = vld [vmem:[%s1850] sm:$0xff]
    %v1852 = vld [vmem:[%s1850 + $0x8] sm:$0xff]
    %v1853 = vld [vmem:[%s1850 + $0x10] sm:$0xff]
    %v1854 = vld [vmem:[%s1850 + $0x18] sm:$0xff]
    %s1855 = scalar_lea.vmem %s3, 64
    %v1856 = vld [vmem:[%s1855] sm:$0xff]
    %v1857 = vld [vmem:[%s1855 + $0x8] sm:$0xff]
    %v1858 = vld [vmem:[%s1855 + $0x10] sm:$0xff]
    %v1859 = vld [vmem:[%s1855 + $0x18] sm:$0xff]
    %v1860 = vld [vmem:[#allocation4 + $0x2] sm:$0x1]
    %v1861 = vld [vmem:[#allocation6 + $0x2] sm:$0x1]
    %v1862 = vlaneseq
    %v1863 = vshrl.u32 %v1862, 7
    %v1864 = vsub.s32 0, %v1863
    %v1865 = vrot.slane %v1860, %v1864
    %1868 = vrot.lane.b32.xlu0 %v1846, 96
    %v1869 = vpop.permute.xlu0 %1868
    %1870 = vrot.lane.b32.xlu0 %v1849, 96
    %v1871 = vpop.permute.xlu0 %1870
    %v1872 = vsel %vm194, %v1869, 0
    %v1874 = vsel %vm194, %v1871, 0
    %1876 = vmatprep.subr.mxu0 0.0
    %1877 = vmatpush1.msra.mxu0 0.0
    %1878 = vmatprep.subr.mxu0 0.0
    %1879 = vmatpush1.msra.mxu0 0.0
    %1880 = vmatprep.subr.mxu0 0.0
    %1881 = vmatpush1.msra.mxu0 0.0
    %1882 = vmatprep.subr.mxu0 0.0
    %1883 = vmatpush1.msra.mxu0 0.0
    %1884 = vmatprep.subr.mxu0 0.0
    %1885 = vmatpush1.msra.mxu0 0.0
    %1886 = vmatprep.subr.mxu0 0.0
    %1887 = vmatpush1.msra.mxu0 0.0
    %1888 = vmatprep.subr.mxu0 0.0
    %1889 = vmatpush1.msra.mxu0 0.0
    %1890 = vmatprep.subr.mxu0 0.0
    %1891 = vmatpush1.msra.mxu0 0.0
    %1892 = vmatprep.subr.mxu0 0.0
    %1893 = vmatpush1.msra.mxu0 0.0
    %1894 = vmatprep.subr.mxu0 0.0
    %1895 = vmatpush1.msra.mxu0 0.0
    %1896 = vmatprep.subr.mxu0 0.0
    %1897 = vmatpush1.msra.mxu0 0.0
    %1898 = vmatprep.subr.mxu0 0.0
    %1899 = vmatpush1.msra.mxu0 0.0
    %1900 = vmatprep.subr.mxu0 0.0
    %1901 = vmatpush1.msra.mxu0 %v1854
    %1902 = vmatprep.subr.mxu0 0.0
    %1903 = vmatpush1.msra.mxu0 %v1853
    %1904 = vmatprep.subr.mxu0 0.0
    %1905 = vmatpush1.msra.mxu0 %v1852
    %1906 = vmatprep.subr.mxu0 0.0
    %1907 = vmatpush1.msra.mxu0 %v1851
    %1908 = vmatprep.subr.mxu0 0.0
    %1909 = vmatpush2.msra.mxu0 0.0
    %1910 = vmatprep.subr.mxu0 0.0
    %1911 = vmatpush2.msra.mxu0 0.0
    %1912 = vmatprep.subr.mxu0 0.0
    %1913 = vmatpush2.msra.mxu0 0.0
    %1914 = vmatprep.subr.mxu0 0.0
    %1915 = vmatpush2.msra.mxu0 0.0
    %1916 = vmatprep.subr.mxu0 0.0
    %1917 = vmatpush2.msra.mxu0 0.0
    %1918 = vmatprep.subr.mxu0 0.0
    %1919 = vmatpush2.msra.mxu0 0.0
    %1920 = vmatprep.subr.mxu0 0.0
    %1921 = vmatpush2.msra.mxu0 0.0
    %1922 = vmatprep.subr.mxu0 0.0
    %1923 = vmatpush2.msra.mxu0 0.0
    %1924 = vmatprep.subr.mxu0 0.0
    %1925 = vmatpush2.msra.mxu0 0.0
    %1926 = vmatprep.subr.mxu0 0.0
    %1927 = vmatpush2.msra.mxu0 0.0
    %1928 = vmatprep.subr.mxu0 0.0
    %1929 = vmatpush2.msra.mxu0 0.0
    %1930 = vmatprep.subr.mxu0 0.0
    %1931 = vmatpush2.msra.mxu0 0.0
    %1932 = vmatprep.subr.mxu0 0.0
    %1933 = vmatpush2.msra.mxu0 0.0
    %1934 = vmatprep.subr.mxu0 0.0
    %1935 = vmatpush2.msra.mxu0 0.0
    %1936 = vmatprep.subr.mxu0 0.0
    %1937 = vmatpush2.msra.mxu0 0.0
    %1938 = vmatprep.subr.mxu0 0.0
    %1939 = vmatpush2.msra.mxu0 0.0
    %1940 = vmatprep.mubr.f32.mxu0 0.0
    %1941 = vmatmul.mubr.f32.gmra.mxu0 %v1872
    %v1942 = vpop.f32.mrf.mxu0
    %v1943 = vadd.f32 %v1865, %v1942
    %v1944 = vpop.f32.mrf.mxu0
    %1945 = vmatprep.mubr.f32.mxu0 0.0
    %1946 = vmatmul.mubr.f32.gmra.mxu0 %v1874
    %v1947 = vpop.f32.mrf.mxu0
    %v1948 = vadd.f32 %v1865, %v1947
    %v1949 = vpop.f32.mrf.mxu0
    %1950 = vdwg.mxu0
    %v1951 = vxor.u32 %v1943, 2147483648
    %v1952 = vmul.f32 %v1951, 1.442695
    %v1953 = vpow.pop %v1952
    %v1954 = vadd.f32 %v1953, 1.0
    %v1955 = vrcp.pop %v1954
    %v1956 = vmul.f32 1.0, %v1955
    %v1957 = vlaneseq
    %v1958 = vshrl.u32 %v1957, 7
    %v1959 = vsub.s32 0, %v1958
    %v1960 = vrot.slane %v1861, %v1959
    %v1961 = vmul.f32 %v1956, %v1960
    %1963 = vrot.lane.b32.xlu0 %v1961, 64
    %v1964 = vpop.permute.xlu0 %1963
    %v1966 = vadd.f32 %v1943, %v1964
    %v1967 = vtanh.pop %v1966
    %v1968 = vsub.f32 1.0, %v1956
    %1970 = vrot.lane.b32.xlu0 %v1967, 96
    %v1971 = vpop.permute.xlu0 %1970
    %v1973 = vmul.f32 %v1968, %v1971
    %1975 = vrot.lane.b32.xlu0 %v1973, 96
    %v1976 = vpop.permute.xlu0 %1975
    %v1977 = vsel %vm194, %v1976, 0
    %1979 = vmatprep.subr.mxu0 0.0
    %1980 = vmatpush1.msra.mxu0 0.0
    %1981 = vmatprep.subr.mxu0 0.0
    %1982 = vmatpush1.msra.mxu0 0.0
    %1983 = vmatprep.subr.mxu0 0.0
    %1984 = vmatpush1.msra.mxu0 0.0
    %1985 = vmatprep.subr.mxu0 0.0
    %1986 = vmatpush1.msra.mxu0 0.0
    %1987 = vmatprep.subr.mxu0 0.0
    %1988 = vmatpush1.msra.mxu0 0.0
    %1989 = vmatprep.subr.mxu0 0.0
    %1990 = vmatpush1.msra.mxu0 0.0
    %1991 = vmatprep.subr.mxu0 0.0
    %1992 = vmatpush1.msra.mxu0 0.0
    %1993 = vmatprep.subr.mxu0 0.0
    %1994 = vmatpush1.msra.mxu0 0.0
    %1995 = vmatprep.subr.mxu0 0.0
    %1996 = vmatpush1.msra.mxu0 0.0
    %1997 = vmatprep.subr.mxu0 0.0
    %1998 = vmatpush1.msra.mxu0 0.0
    %1999 = vmatprep.subr.mxu0 0.0
    %2000 = vmatpush1.msra.mxu0 0.0
    %2001 = vmatprep.subr.mxu0 0.0
    %2002 = vmatpush1.msra.mxu0 0.0
    %2003 = vmatprep.subr.mxu0 0.0
    %2004 = vmatpush1.msra.mxu0 %v1859
    %2005 = vmatprep.subr.mxu0 0.0
    %2006 = vmatpush1.msra.mxu0 %v1858
    %2007 = vmatprep.subr.mxu0 0.0
    %2008 = vmatpush1.msra.mxu0 %v1857
    %2009 = vmatprep.subr.mxu0 0.0
    %2010 = vmatpush1.msra.mxu0 %v1856
    %2011 = vmatprep.subr.mxu0 0.0
    %2012 = vmatpush2.msra.mxu0 0.0
    %2013 = vmatprep.subr.mxu0 0.0
    %2014 = vmatpush2.msra.mxu0 0.0
    %2015 = vmatprep.subr.mxu0 0.0
    %2016 = vmatpush2.msra.mxu0 0.0
    %2017 = vmatprep.subr.mxu0 0.0
    %2018 = vmatpush2.msra.mxu0 0.0
    %2019 = vmatprep.subr.mxu0 0.0
    %2020 = vmatpush2.msra.mxu0 0.0
    %2021 = vmatprep.subr.mxu0 0.0
    %2022 = vmatpush2.msra.mxu0 0.0
    %2023 = vmatprep.subr.mxu0 0.0
    %2024 = vmatpush2.msra.mxu0 0.0
    %2025 = vmatprep.subr.mxu0 0.0
    %2026 = vmatpush2.msra.mxu0 0.0
    %2027 = vmatprep.subr.mxu0 0.0
    %2028 = vmatpush2.msra.mxu0 0.0
    %2029 = vmatprep.subr.mxu0 0.0
    %2030 = vmatpush2.msra.mxu0 0.0
    %2031 = vmatprep.subr.mxu0 0.0
    %2032 = vmatpush2.msra.mxu0 0.0
    %2033 = vmatprep.subr.mxu0 0.0
    %2034 = vmatpush2.msra.mxu0 0.0
    %2035 = vmatprep.subr.mxu0 0.0
    %2036 = vmatpush2.msra.mxu0 0.0
    %2037 = vmatprep.subr.mxu0 0.0
    %2038 = vmatpush2.msra.mxu0 0.0
    %2039 = vmatprep.subr.mxu0 0.0
    %2040 = vmatpush2.msra.mxu0 0.0
    %2041 = vmatprep.subr.mxu0 0.0
    %2042 = vmatpush2.msra.mxu0 0.0
    %2043 = vmatprep.mubr.f32.mxu0 0.0
    %2044 = vmatmul.mubr.f32.gmra.mxu0 %v1977
    %v2045 = vpop.f32.mrf.mxu0
    %v2046 = vadd.f32 0.0, %v2045
    %v2047 = vpop.f32.mrf.mxu0
    %2048 = vdwg.mxu0
    %v2050 = vrot.slane %v2046, 6
    %v2052 = vadd.f32 %v1943, %v2050
    %v2053 = vxor.u32 %v2052, 2147483648
    %v2054 = vmul.f32 %v2053, 1.442695
    %v2055 = vpow.pop %v2054
    %v2056 = vadd.f32 %v2055, 1.0
    %v2057 = vrcp.pop %v2056
    %v2058 = vmul.f32 1.0, %v2057
    %2060 = vrot.lane.b32.xlu0 %v1960, 64
    %v2061 = vpop.permute.xlu0 %2060
    %v2063 = vadd.f32 %v2046, %v2061
    %v2065 = vrot.slane %v2063, 6
    %2066 = vrot.lane.b32.xlu0 %v2065, 64
    %v2067 = vpop.permute.xlu0 %2066
    %v2069 = vmul.f32 %v2058, %v2067
    %2071 = vrot.lane.b32.xlu0 %v2069, 64
    %v2072 = vpop.permute.xlu0 %2071
    %v2074 = vadd.f32 %v1943, %v2072
    %v2075 = vtanh.pop %v2074
    %v2076 = vsub.f32 1.0, %v2058
    %2078 = vrot.lane.b32.xlu0 %v2075, 96
    %v2079 = vpop.permute.xlu0 %2078
    %v2081 = vmul.f32 %v2076, %v2079
    %v2082 = vrot.slane %v1973, 6
    %v2084 = vmul.f32 %v2058, %v2082
    %v2085 = vadd.f32 %v2081, %v2084
    %v2087 = vrot.slane %v2085, 2
    %2088 = vrot.lane.b32.xlu0 %v2087, 96
    %v2089 = vpop.permute.xlu0 %2088
    %v2090 = vsel %vm194, %v2089, 0
    %2092 = vmatprep.subr.mxu0 0.0
    %2093 = vmatpush1.msra.mxu0 0.0
    %2094 = vmatprep.subr.mxu0 0.0
    %2095 = vmatpush1.msra.mxu0 0.0
    %2096 = vmatprep.subr.mxu0 0.0
    %2097 = vmatpush1.msra.mxu0 0.0
    %2098 = vmatprep.subr.mxu0 0.0
    %2099 = vmatpush1.msra.mxu0 0.0
    %2100 = vmatprep.subr.mxu0 0.0
    %2101 = vmatpush1.msra.mxu0 0.0
    %2102 = vmatprep.subr.mxu0 0.0
    %2103 = vmatpush1.msra.mxu0 0.0
    %2104 = vmatprep.subr.mxu0 0.0
    %2105 = vmatpush1.msra.mxu0 0.0
    %2106 = vmatprep.subr.mxu0 0.0
    %2107 = vmatpush1.msra.mxu0 0.0
    %2108 = vmatprep.subr.mxu0 0.0
    %2109 = vmatpush1.msra.mxu0 0.0
    %2110 = vmatprep.subr.mxu0 0.0
    %2111 = vmatpush1.msra.mxu0 0.0
    %2112 = vmatprep.subr.mxu0 0.0
    %2113 = vmatpush1.msra.mxu0 0.0
    %2114 = vmatprep.subr.mxu0 0.0
    %2115 = vmatpush1.msra.mxu0 0.0
    %2116 = vmatprep.subr.mxu0 0.0
    %2117 = vmatpush1.msra.mxu0 %v1859
    %2118 = vmatprep.subr.mxu0 0.0
    %2119 = vmatpush1.msra.mxu0 %v1858
    %2120 = vmatprep.subr.mxu0 0.0
    %2121 = vmatpush1.msra.mxu0 %v1857
    %2122 = vmatprep.subr.mxu0 0.0
    %2123 = vmatpush1.msra.mxu0 %v1856
    %2124 = vmatprep.subr.mxu0 0.0
    %2125 = vmatpush2.msra.mxu0 0.0
    %2126 = vmatprep.subr.mxu0 0.0
    %2127 = vmatpush2.msra.mxu0 0.0
    %2128 = vmatprep.subr.mxu0 0.0
    %2129 = vmatpush2.msra.mxu0 0.0
    %2130 = vmatprep.subr.mxu0 0.0
    %2131 = vmatpush2.msra.mxu0 0.0
    %2132 = vmatprep.subr.mxu0 0.0
    %2133 = vmatpush2.msra.mxu0 0.0
    %2134 = vmatprep.subr.mxu0 0.0
    %2135 = vmatpush2.msra.mxu0 0.0
    %2136 = vmatprep.subr.mxu0 0.0
    %2137 = vmatpush2.msra.mxu0 0.0
    %2138 = vmatprep.subr.mxu0 0.0
    %2139 = vmatpush2.msra.mxu0 0.0
    %2140 = vmatprep.subr.mxu0 0.0
    %2141 = vmatpush2.msra.mxu0 0.0
    %2142 = vmatprep.subr.mxu0 0.0
    %2143 = vmatpush2.msra.mxu0 0.0
    %2144 = vmatprep.subr.mxu0 0.0
    %2145 = vmatpush2.msra.mxu0 0.0
    %2146 = vmatprep.subr.mxu0 0.0
    %2147 = vmatpush2.msra.mxu0 0.0
    %2148 = vmatprep.subr.mxu0 0.0
    %2149 = vmatpush2.msra.mxu0 0.0
    %2150 = vmatprep.subr.mxu0 0.0
    %2151 = vmatpush2.msra.mxu0 0.0
    %2152 = vmatprep.subr.mxu0 0.0
    %2153 = vmatpush2.msra.mxu0 0.0
    %2154 = vmatprep.subr.mxu0 0.0
    %2155 = vmatpush2.msra.mxu0 0.0
    %2156 = vmatprep.mubr.f32.mxu0 0.0
    %2157 = vmatmul.mubr.f32.gmra.mxu0 %v2090
    %v2158 = vpop.f32.mrf.mxu0
    %v2159 = vadd.f32 0.0, %v2158
    %v2160 = vpop.f32.mrf.mxu0
    %2161 = vdwg.mxu0
    %v2163 = vrot.slane %v2159, 4
    %v2165 = vadd.f32 %v1943, %v2163
    %v2166 = vxor.u32 %v2165, 2147483648
    %v2167 = vmul.f32 %v2166, 1.442695
    %v2168 = vpow.pop %v2167
    %v2169 = vadd.f32 %v2168, 1.0
    %v2170 = vrcp.pop %v2169
    %v2171 = vmul.f32 1.0, %v2170
    %v2172 = vadd.f32 %v2159, %v2061
    %v2174 = vrot.slane %v2172, 4
    %2175 = vrot.lane.b32.xlu0 %v2174, 64
    %v2176 = vpop.permute.xlu0 %2175
    %v2178 = vmul.f32 %v2171, %v2176
    %2180 = vrot.lane.b32.xlu0 %v2178, 64
    %v2181 = vpop.permute.xlu0 %2180
    %v2183 = vadd.f32 %v1943, %v2181
    %v2184 = vtanh.pop %v2183
    %v2185 = vsub.f32 1.0, %v2171
    %2187 = vrot.lane.b32.xlu0 %v2184, 96
    %v2188 = vpop.permute.xlu0 %2187
    %v2190 = vmul.f32 %v2185, %v2188
    %v2191 = vrot.slane %v2085, 6
    %v2193 = vmul.f32 %v2171, %v2191
    %v2194 = vadd.f32 %v2190, %v2193
    %v2196 = vrot.slane %v2194, 4
    %2197 = vrot.lane.b32.xlu0 %v2196, 96
    %v2198 = vpop.permute.xlu0 %2197
    %v2199 = vsel %vm194, %v2198, 0
    %2201 = vmatprep.subr.mxu0 0.0
    %2202 = vmatpush1.msra.mxu0 0.0
    %2203 = vmatprep.subr.mxu0 0.0
    %2204 = vmatpush1.msra.mxu0 0.0
    %2205 = vmatprep.subr.mxu0 0.0
    %2206 = vmatpush1.msra.mxu0 0.0
    %2207 = vmatprep.subr.mxu0 0.0
    %2208 = vmatpush1.msra.mxu0 0.0
    %2209 = vmatprep.subr.mxu0 0.0
    %2210 = vmatpush1.msra.mxu0 0.0
    %2211 = vmatprep.subr.mxu0 0.0
    %2212 = vmatpush1.msra.mxu0 0.0
    %2213 = vmatprep.subr.mxu0 0.0
    %2214 = vmatpush1.msra.mxu0 0.0
    %2215 = vmatprep.subr.mxu0 0.0
    %2216 = vmatpush1.msra.mxu0 0.0
    %2217 = vmatprep.subr.mxu0 0.0
    %2218 = vmatpush1.msra.mxu0 0.0
    %2219 = vmatprep.subr.mxu0 0.0
    %2220 = vmatpush1.msra.mxu0 0.0
    %2221 = vmatprep.subr.mxu0 0.0
    %2222 = vmatpush1.msra.mxu0 0.0
    %2223 = vmatprep.subr.mxu0 0.0
    %2224 = vmatpush1.msra.mxu0 0.0
    %2225 = vmatprep.subr.mxu0 0.0
    %2226 = vmatpush1.msra.mxu0 %v1859
    %2227 = vmatprep.subr.mxu0 0.0
    %2228 = vmatpush1.msra.mxu0 %v1858
    %2229 = vmatprep.subr.mxu0 0.0
    %2230 = vmatpush1.msra.mxu0 %v1857
    %2231 = vmatprep.subr.mxu0 0.0
    %2232 = vmatpush1.msra.mxu0 %v1856
    %2233 = vmatprep.subr.mxu0 0.0
    %2234 = vmatpush2.msra.mxu0 0.0
    %2235 = vmatprep.subr.mxu0 0.0
    %2236 = vmatpush2.msra.mxu0 0.0
    %2237 = vmatprep.subr.mxu0 0.0
    %2238 = vmatpush2.msra.mxu0 0.0
    %2239 = vmatprep.subr.mxu0 0.0
    %2240 = vmatpush2.msra.mxu0 0.0
    %2241 = vmatprep.subr.mxu0 0.0
    %2242 = vmatpush2.msra.mxu0 0.0
    %2243 = vmatprep.subr.mxu0 0.0
    %2244 = vmatpush2.msra.mxu0 0.0
    %2245 = vmatprep.subr.mxu0 0.0
    %2246 = vmatpush2.msra.mxu0 0.0
    %2247 = vmatprep.subr.mxu0 0.0
    %2248 = vmatpush2.msra.mxu0 0.0
    %2249 = vmatprep.subr.mxu0 0.0
    %2250 = vmatpush2.msra.mxu0 0.0
    %2251 = vmatprep.subr.mxu0 0.0
    %2252 = vmatpush2.msra.mxu0 0.0
    %2253 = vmatprep.subr.mxu0 0.0
    %2254 = vmatpush2.msra.mxu0 0.0
    %2255 = vmatprep.subr.mxu0 0.0
    %2256 = vmatpush2.msra.mxu0 0.0
    %2257 = vmatprep.subr.mxu0 0.0
    %2258 = vmatpush2.msra.mxu0 0.0
    %2259 = vmatprep.subr.mxu0 0.0
    %2260 = vmatpush2.msra.mxu0 0.0
    %2261 = vmatprep.subr.mxu0 0.0
    %2262 = vmatpush2.msra.mxu0 0.0
    %2263 = vmatprep.subr.mxu0 0.0
    %2264 = vmatpush2.msra.mxu0 0.0
    %2265 = vmatprep.mubr.f32.mxu0 0.0
    %2266 = vmatmul.mubr.f32.gmra.mxu0 %v2199
    %v2267 = vpop.f32.mrf.mxu0
    %v2268 = vadd.f32 0.0, %v2267
    %v2269 = vpop.f32.mrf.mxu0
    %2270 = vdwg.mxu0
    %v2272 = vrot.slane %v2268, 2
    %v2274 = vadd.f32 %v1943, %v2272
    %v2275 = vxor.u32 %v2274, 2147483648
    %v2276 = vmul.f32 %v2275, 1.442695
    %v2277 = vpow.pop %v2276
    %v2278 = vadd.f32 %v2277, 1.0
    %v2279 = vrcp.pop %v2278
    %v2280 = vmul.f32 1.0, %v2279
    %v2281 = vadd.f32 %v2268, %v2061
    %v2283 = vrot.slane %v2281, 2
    %2284 = vrot.lane.b32.xlu0 %v2283, 64
    %v2285 = vpop.permute.xlu0 %2284
    %v2287 = vmul.f32 %v2280, %v2285
    %2289 = vrot.lane.b32.xlu0 %v2287, 64
    %v2290 = vpop.permute.xlu0 %2289
    %v2292 = vadd.f32 %v1943, %v2290
    %v2293 = vtanh.pop %v2292
    %v2294 = vsub.f32 1.0, %v2280
    %2296 = vrot.lane.b32.xlu0 %v2293, 96
    %v2297 = vpop.permute.xlu0 %2296
    %v2299 = vmul.f32 %v2294, %v2297
    %v2300 = vrot.slane %v2194, 6
    %v2302 = vmul.f32 %v2280, %v2300
    %v2303 = vadd.f32 %v2299, %v2302
    %v2305 = vrot.slane %v2303, 6
    %2306 = vrot.lane.b32.xlu0 %v2305, 96
    %v2307 = vpop.permute.xlu0 %2306
    %v2308 = vsel %vm194, %v2307, 0
    %2310 = vmatprep.subr.mxu0 0.0
    %2311 = vmatpush1.msra.mxu0 0.0
    %2312 = vmatprep.subr.mxu0 0.0
    %2313 = vmatpush1.msra.mxu0 0.0
    %2314 = vmatprep.subr.mxu0 0.0
    %2315 = vmatpush1.msra.mxu0 0.0
    %2316 = vmatprep.subr.mxu0 0.0
    %2317 = vmatpush1.msra.mxu0 0.0
    %2318 = vmatprep.subr.mxu0 0.0
    %2319 = vmatpush1.msra.mxu0 0.0
    %2320 = vmatprep.subr.mxu0 0.0
    %2321 = vmatpush1.msra.mxu0 0.0
    %2322 = vmatprep.subr.mxu0 0.0
    %2323 = vmatpush1.msra.mxu0 0.0
    %2324 = vmatprep.subr.mxu0 0.0
    %2325 = vmatpush1.msra.mxu0 0.0
    %2326 = vmatprep.subr.mxu0 0.0
    %2327 = vmatpush1.msra.mxu0 0.0
    %2328 = vmatprep.subr.mxu0 0.0
    %2329 = vmatpush1.msra.mxu0 0.0
    %2330 = vmatprep.subr.mxu0 0.0
    %2331 = vmatpush1.msra.mxu0 0.0
    %2332 = vmatprep.subr.mxu0 0.0
    %2333 = vmatpush1.msra.mxu0 0.0
    %2334 = vmatprep.subr.mxu0 0.0
    %2335 = vmatpush1.msra.mxu0 %v1859
    %2336 = vmatprep.subr.mxu0 0.0
    %2337 = vmatpush1.msra.mxu0 %v1858
    %2338 = vmatprep.subr.mxu0 0.0
    %2339 = vmatpush1.msra.mxu0 %v1857
    %2340 = vmatprep.subr.mxu0 0.0
    %2341 = vmatpush1.msra.mxu0 %v1856
    %2342 = vmatprep.subr.mxu0 0.0
    %2343 = vmatpush2.msra.mxu0 0.0
    %2344 = vmatprep.subr.mxu0 0.0
    %2345 = vmatpush2.msra.mxu0 0.0
    %2346 = vmatprep.subr.mxu0 0.0
    %2347 = vmatpush2.msra.mxu0 0.0
    %2348 = vmatprep.subr.mxu0 0.0
    %2349 = vmatpush2.msra.mxu0 0.0
    %2350 = vmatprep.subr.mxu0 0.0
    %2351 = vmatpush2.msra.mxu0 0.0
    %2352 = vmatprep.subr.mxu0 0.0
    %2353 = vmatpush2.msra.mxu0 0.0
    %2354 = vmatprep.subr.mxu0 0.0
    %2355 = vmatpush2.msra.mxu0 0.0
    %2356 = vmatprep.subr.mxu0 0.0
    %2357 = vmatpush2.msra.mxu0 0.0
    %2358 = vmatprep.subr.mxu0 0.0
    %2359 = vmatpush2.msra.mxu0 0.0
    %2360 = vmatprep.subr.mxu0 0.0
    %2361 = vmatpush2.msra.mxu0 0.0
    %2362 = vmatprep.subr.mxu0 0.0
    %2363 = vmatpush2.msra.mxu0 0.0
    %2364 = vmatprep.subr.mxu0 0.0
    %2365 = vmatpush2.msra.mxu0 0.0
    %2366 = vmatprep.subr.mxu0 0.0
    %2367 = vmatpush2.msra.mxu0 0.0
    %2368 = vmatprep.subr.mxu0 0.0
    %2369 = vmatpush2.msra.mxu0 0.0
    %2370 = vmatprep.subr.mxu0 0.0
    %2371 = vmatpush2.msra.mxu0 0.0
    %2372 = vmatprep.subr.mxu0 0.0
    %2373 = vmatpush2.msra.mxu0 0.0
    %2374 = vmatprep.mubr.f32.mxu0 0.0
    %2375 = vmatmul.mubr.f32.gmra.mxu0 %v2308
    %v2376 = vpop.f32.mrf.mxu0
    %v2377 = vadd.f32 0.0, %v2376
    %v2378 = vpop.f32.mrf.mxu0
    %2379 = vdwg.mxu0
    %v2380 = vadd.f32 %v1948, %v2377
    %v2381 = vxor.u32 %v2380, 2147483648
    %v2382 = vmul.f32 %v2381, 1.442695
    %v2383 = vpow.pop %v2382
    %v2384 = vadd.f32 %v2383, 1.0
    %v2385 = vrcp.pop %v2384
    %v2386 = vmul.f32 1.0, %v2385
    %v2387 = vadd.f32 %v2377, %v2061
    %2389 = vrot.lane.b32.xlu0 %v2387, 64
    %v2390 = vpop.permute.xlu0 %2389
    %v2392 = vmul.f32 %v2386, %v2390
    %2394 = vrot.lane.b32.xlu0 %v2392, 64
    %v2395 = vpop.permute.xlu0 %2394
    %v2397 = vadd.f32 %v1948, %v2395
    %v2398 = vtanh.pop %v2397
    %v2399 = vsub.f32 1.0, %v2386
    %2401 = vrot.lane.b32.xlu0 %v2398, 96
    %v2402 = vpop.permute.xlu0 %2401
    %v2404 = vmul.f32 %v2399, %v2402
    %v2406 = vmul.f32 %v2386, %v2305
    %v2407 = vadd.f32 %v2404, %v2406
    %2409 = vrot.lane.b32.xlu0 %v2407, 96
    %v2410 = vpop.permute.xlu0 %2409
    %v2411 = vsel %vm194, %v2410, 0
    %2413 = vmatprep.subr.mxu0 0.0
    %2414 = vmatpush1.msra.mxu0 0.0
    %2415 = vmatprep.subr.mxu0 0.0
    %2416 = vmatpush1.msra.mxu0 0.0
    %2417 = vmatprep.subr.mxu0 0.0
    %2418 = vmatpush1.msra.mxu0 0.0
    %2419 = vmatprep.subr.mxu0 0.0
    %2420 = vmatpush1.msra.mxu0 0.0
    %2421 = vmatprep.subr.mxu0 0.0
    %2422 = vmatpush1.msra.mxu0 0.0
    %2423 = vmatprep.subr.mxu0 0.0
    %2424 = vmatpush1.msra.mxu0 0.0
    %2425 = vmatprep.subr.mxu0 0.0
    %2426 = vmatpush1.msra.mxu0 0.0
    %2427 = vmatprep.subr.mxu0 0.0
    %2428 = vmatpush1.msra.mxu0 0.0
    %2429 = vmatprep.subr.mxu0 0.0
    %2430 = vmatpush1.msra.mxu0 0.0
    %2431 = vmatprep.subr.mxu0 0.0
    %2432 = vmatpush1.msra.mxu0 0.0
    %2433 = vmatprep.subr.mxu0 0.0
    %2434 = vmatpush1.msra.mxu0 0.0
    %2435 = vmatprep.subr.mxu0 0.0
    %2436 = vmatpush1.msra.mxu0 0.0
    %2437 = vmatprep.subr.mxu0 0.0
    %2438 = vmatpush1.msra.mxu0 %v1859
    %2439 = vmatprep.subr.mxu0 0.0
    %2440 = vmatpush1.msra.mxu0 %v1858
    %2441 = vmatprep.subr.mxu0 0.0
    %2442 = vmatpush1.msra.mxu0 %v1857
    %2443 = vmatprep.subr.mxu0 0.0
    %2444 = vmatpush1.msra.mxu0 %v1856
    %2445 = vmatprep.subr.mxu0 0.0
    %2446 = vmatpush2.msra.mxu0 0.0
    %2447 = vmatprep.subr.mxu0 0.0
    %2448 = vmatpush2.msra.mxu0 0.0
    %2449 = vmatprep.subr.mxu0 0.0
    %2450 = vmatpush2.msra.mxu0 0.0
    %2451 = vmatprep.subr.mxu0 0.0
    %2452 = vmatpush2.msra.mxu0 0.0
    %2453 = vmatprep.subr.mxu0 0.0
    %2454 = vmatpush2.msra.mxu0 0.0
    %2455 = vmatprep.subr.mxu0 0.0
    %2456 = vmatpush2.msra.mxu0 0.0
    %2457 = vmatprep.subr.mxu0 0.0
    %2458 = vmatpush2.msra.mxu0 0.0
    %2459 = vmatprep.subr.mxu0 0.0
    %2460 = vmatpush2.msra.mxu0 0.0
    %2461 = vmatprep.subr.mxu0 0.0
    %2462 = vmatpush2.msra.mxu0 0.0
    %2463 = vmatprep.subr.mxu0 0.0
    %2464 = vmatpush2.msra.mxu0 0.0
    %2465 = vmatprep.subr.mxu0 0.0
    %2466 = vmatpush2.msra.mxu0 0.0
    %2467 = vmatprep.subr.mxu0 0.0
    %2468 = vmatpush2.msra.mxu0 0.0
    %2469 = vmatprep.subr.mxu0 0.0
    %2470 = vmatpush2.msra.mxu0 0.0
    %2471 = vmatprep.subr.mxu0 0.0
    %2472 = vmatpush2.msra.mxu0 0.0
    %2473 = vmatprep.subr.mxu0 0.0
    %2474 = vmatpush2.msra.mxu0 0.0
    %2475 = vmatprep.subr.mxu0 0.0
    %2476 = vmatpush2.msra.mxu0 0.0
    %2477 = vmatprep.mubr.f32.mxu0 0.0
    %2478 = vmatmul.mubr.f32.gmra.mxu0 %v2411
    %v2479 = vpop.f32.mrf.mxu0
    %v2480 = vadd.f32 0.0, %v2479
    %v2481 = vpop.f32.mrf.mxu0
    %2482 = vdwg.mxu0
    %v2484 = vrot.slane %v2480, 6
    %v2486 = vadd.f32 %v1948, %v2484
    %v2487 = vxor.u32 %v2486, 2147483648
    %v2488 = vmul.f32 %v2487, 1.442695
    %v2489 = vpow.pop %v2488
    %v2490 = vadd.f32 %v2489, 1.0
    %v2491 = vrcp.pop %v2490
    %v2492 = vmul.f32 1.0, %v2491
    %v2493 = vadd.f32 %v2480, %v2061
    %v2495 = vrot.slane %v2493, 6
    %2496 = vrot.lane.b32.xlu0 %v2495, 64
    %v2497 = vpop.permute.xlu0 %2496
    %v2499 = vmul.f32 %v2492, %v2497
    %2501 = vrot.lane.b32.xlu0 %v2499, 64
    %v2502 = vpop.permute.xlu0 %2501
    %v2504 = vadd.f32 %v1948, %v2502
    %v2505 = vtanh.pop %v2504
    %v2506 = vsub.f32 1.0, %v2492
    %2508 = vrot.lane.b32.xlu0 %v2505, 96
    %v2509 = vpop.permute.xlu0 %2508
    %v2511 = vmul.f32 %v2506, %v2509
    %v2512 = vrot.slane %v2407, 6
    %v2514 = vmul.f32 %v2492, %v2512
    %v2515 = vadd.f32 %v2511, %v2514
    %v2517 = vrot.slane %v2515, 2
    %2518 = vrot.lane.b32.xlu0 %v2517, 96
    %v2519 = vpop.permute.xlu0 %2518
    %v2520 = vsel %vm194, %v2519, 0
    %2522 = vmatprep.subr.mxu0 0.0
    %2523 = vmatpush1.msra.mxu0 0.0
    %2524 = vmatprep.subr.mxu0 0.0
    %2525 = vmatpush1.msra.mxu0 0.0
    %2526 = vmatprep.subr.mxu0 0.0
    %2527 = vmatpush1.msra.mxu0 0.0
    %2528 = vmatprep.subr.mxu0 0.0
    %2529 = vmatpush1.msra.mxu0 0.0
    %2530 = vmatprep.subr.mxu0 0.0
    %2531 = vmatpush1.msra.mxu0 0.0
    %2532 = vmatprep.subr.mxu0 0.0
    %2533 = vmatpush1.msra.mxu0 0.0
    %2534 = vmatprep.subr.mxu0 0.0
    %2535 = vmatpush1.msra.mxu0 0.0
    %2536 = vmatprep.subr.mxu0 0.0
    %2537 = vmatpush1.msra.mxu0 0.0
    %2538 = vmatprep.subr.mxu0 0.0
    %2539 = vmatpush1.msra.mxu0 0.0
    %2540 = vmatprep.subr.mxu0 0.0
    %2541 = vmatpush1.msra.mxu0 0.0
    %2542 = vmatprep.subr.mxu0 0.0
    %2543 = vmatpush1.msra.mxu0 0.0
    %2544 = vmatprep.subr.mxu0 0.0
    %2545 = vmatpush1.msra.mxu0 0.0
    %2546 = vmatprep.subr.mxu0 0.0
    %2547 = vmatpush1.msra.mxu0 %v1859
    %2548 = vmatprep.subr.mxu0 0.0
    %2549 = vmatpush1.msra.mxu0 %v1858
    %2550 = vmatprep.subr.mxu0 0.0
    %2551 = vmatpush1.msra.mxu0 %v1857
    %2552 = vmatprep.subr.mxu0 0.0
    %2553 = vmatpush1.msra.mxu0 %v1856
    %2554 = vmatprep.subr.mxu0 0.0
    %2555 = vmatpush2.msra.mxu0 0.0
    %2556 = vmatprep.subr.mxu0 0.0
    %2557 = vmatpush2.msra.mxu0 0.0
    %2558 = vmatprep.subr.mxu0 0.0
    %2559 = vmatpush2.msra.mxu0 0.0
    %2560 = vmatprep.subr.mxu0 0.0
    %2561 = vmatpush2.msra.mxu0 0.0
    %2562 = vmatprep.subr.mxu0 0.0
    %2563 = vmatpush2.msra.mxu0 0.0
    %2564 = vmatprep.subr.mxu0 0.0
    %2565 = vmatpush2.msra.mxu0 0.0
    %2566 = vmatprep.subr.mxu0 0.0
    %2567 = vmatpush2.msra.mxu0 0.0
    %2568 = vmatprep.subr.mxu0 0.0
    %2569 = vmatpush2.msra.mxu0 0.0
    %2570 = vmatprep.subr.mxu0 0.0
    %2571 = vmatpush2.msra.mxu0 0.0
    %2572 = vmatprep.subr.mxu0 0.0
    %2573 = vmatpush2.msra.mxu0 0.0
    %2574 = vmatprep.subr.mxu0 0.0
    %2575 = vmatpush2.msra.mxu0 0.0
    %2576 = vmatprep.subr.mxu0 0.0
    %2577 = vmatpush2.msra.mxu0 0.0
    %2578 = vmatprep.subr.mxu0 0.0
    %2579 = vmatpush2.msra.mxu0 0.0
    %2580 = vmatprep.subr.mxu0 0.0
    %2581 = vmatpush2.msra.mxu0 0.0
    %2582 = vmatprep.subr.mxu0 0.0
    %2583 = vmatpush2.msra.mxu0 0.0
    %2584 = vmatprep.subr.mxu0 0.0
    %2585 = vmatpush2.msra.mxu0 0.0
    %2586 = vmatprep.mubr.f32.mxu0 0.0
    %2587 = vmatmul.mubr.f32.gmra.mxu0 %v2520
    %v2588 = vpop.f32.mrf.mxu0
    %v2589 = vadd.f32 0.0, %v2588
    %v2590 = vpop.f32.mrf.mxu0
    %2591 = vdwg.mxu0
    %v2593 = vrot.slane %v2589, 4
    %v2595 = vadd.f32 %v1948, %v2593
    %v2596 = vxor.u32 %v2595, 2147483648
    %v2597 = vmul.f32 %v2596, 1.442695
    %v2598 = vpow.pop %v2597
    %v2599 = vadd.f32 %v2598, 1.0
    %v2600 = vrcp.pop %v2599
    %v2601 = vmul.f32 1.0, %v2600
    %v2602 = vadd.f32 %v2589, %v2061
    %v2604 = vrot.slane %v2602, 4
    %2605 = vrot.lane.b32.xlu0 %v2604, 64
    %v2606 = vpop.permute.xlu0 %2605
    %v2608 = vmul.f32 %v2601, %v2606
    %2610 = vrot.lane.b32.xlu0 %v2608, 64
    %v2611 = vpop.permute.xlu0 %2610
    %v2613 = vadd.f32 %v1948, %v2611
    %v2614 = vtanh.pop %v2613
    %v2615 = vsub.f32 1.0, %v2601
    %2617 = vrot.lane.b32.xlu0 %v2614, 96
    %v2618 = vpop.permute.xlu0 %2617
    %v2620 = vmul.f32 %v2615, %v2618
    %v2621 = vrot.slane %v2515, 6
    %v2623 = vmul.f32 %v2601, %v2621
    %v2624 = vadd.f32 %v2620, %v2623
    %v2626 = vrot.slane %v2624, 4
    %2627 = vrot.lane.b32.xlu0 %v2626, 96
    %v2628 = vpop.permute.xlu0 %2627
    %v2629 = vsel %vm194, %v2628, 0
    %2631 = vmatprep.subr.mxu0 0.0
    %2632 = vmatpush1.msra.mxu0 0.0
    %2633 = vmatprep.subr.mxu0 0.0
    %2634 = vmatpush1.msra.mxu0 0.0
    %2635 = vmatprep.subr.mxu0 0.0
    %2636 = vmatpush1.msra.mxu0 0.0
    %2637 = vmatprep.subr.mxu0 0.0
    %2638 = vmatpush1.msra.mxu0 0.0
    %2639 = vmatprep.subr.mxu0 0.0
    %2640 = vmatpush1.msra.mxu0 0.0
    %2641 = vmatprep.subr.mxu0 0.0
    %2642 = vmatpush1.msra.mxu0 0.0
    %2643 = vmatprep.subr.mxu0 0.0
    %2644 = vmatpush1.msra.mxu0 0.0
    %2645 = vmatprep.subr.mxu0 0.0
    %2646 = vmatpush1.msra.mxu0 0.0
    %2647 = vmatprep.subr.mxu0 0.0
    %2648 = vmatpush1.msra.mxu0 0.0
    %2649 = vmatprep.subr.mxu0 0.0
    %2650 = vmatpush1.msra.mxu0 0.0
    %2651 = vmatprep.subr.mxu0 0.0
    %2652 = vmatpush1.msra.mxu0 0.0
    %2653 = vmatprep.subr.mxu0 0.0
    %2654 = vmatpush1.msra.mxu0 0.0
    %2655 = vmatprep.subr.mxu0 0.0
    %2656 = vmatpush1.msra.mxu0 %v1859
    %2657 = vmatprep.subr.mxu0 0.0
    %2658 = vmatpush1.msra.mxu0 %v1858
    %2659 = vmatprep.subr.mxu0 0.0
    %2660 = vmatpush1.msra.mxu0 %v1857
    %2661 = vmatprep.subr.mxu0 0.0
    %2662 = vmatpush1.msra.mxu0 %v1856
    %2663 = vmatprep.subr.mxu0 0.0
    %2664 = vmatpush2.msra.mxu0 0.0
    %2665 = vmatprep.subr.mxu0 0.0
    %2666 = vmatpush2.msra.mxu0 0.0
    %2667 = vmatprep.subr.mxu0 0.0
    %2668 = vmatpush2.msra.mxu0 0.0
    %2669 = vmatprep.subr.mxu0 0.0
    %2670 = vmatpush2.msra.mxu0 0.0
    %2671 = vmatprep.subr.mxu0 0.0
    %2672 = vmatpush2.msra.mxu0 0.0
    %2673 = vmatprep.subr.mxu0 0.0
    %2674 = vmatpush2.msra.mxu0 0.0
    %2675 = vmatprep.subr.mxu0 0.0
    %2676 = vmatpush2.msra.mxu0 0.0
    %2677 = vmatprep.subr.mxu0 0.0
    %2678 = vmatpush2.msra.mxu0 0.0
    %2679 = vmatprep.subr.mxu0 0.0
    %2680 = vmatpush2.msra.mxu0 0.0
    %2681 = vmatprep.subr.mxu0 0.0
    %2682 = vmatpush2.msra.mxu0 0.0
    %2683 = vmatprep.subr.mxu0 0.0
    %2684 = vmatpush2.msra.mxu0 0.0
    %2685 = vmatprep.subr.mxu0 0.0
    %2686 = vmatpush2.msra.mxu0 0.0
    %2687 = vmatprep.subr.mxu0 0.0
    %2688 = vmatpush2.msra.mxu0 0.0
    %2689 = vmatprep.subr.mxu0 0.0
    %2690 = vmatpush2.msra.mxu0 0.0
    %2691 = vmatprep.subr.mxu0 0.0
    %2692 = vmatpush2.msra.mxu0 0.0
    %2693 = vmatprep.subr.mxu0 0.0
    %2694 = vmatpush2.msra.mxu0 0.0
    %2695 = vmatprep.mubr.f32.mxu0 0.0
    %2696 = vmatmul.mubr.f32.gmra.mxu0 %v2629
    %v2697 = vpop.f32.mrf.mxu0
    %v2698 = vadd.f32 0.0, %v2697
    %v2699 = vpop.f32.mrf.mxu0
    %2700 = vdwg.mxu0
    %v2702 = vrot.slane %v2698, 2
    %v2704 = vadd.f32 %v1948, %v2702
    %v2705 = vxor.u32 %v2704, 2147483648
    %v2706 = vmul.f32 %v2705, 1.442695
    %v2707 = vpow.pop %v2706
    %v2708 = vadd.f32 %v2707, 1.0
    %v2709 = vrcp.pop %v2708
    %v2710 = vmul.f32 1.0, %v2709
    %v2711 = vadd.f32 %v2698, %v2061
    %v2713 = vrot.slane %v2711, 2
    %2714 = vrot.lane.b32.xlu0 %v2713, 64
    %v2715 = vpop.permute.xlu0 %2714
    %v2717 = vmul.f32 %v2710, %v2715
    %2719 = vrot.lane.b32.xlu0 %v2717, 64
    %v2720 = vpop.permute.xlu0 %2719
    %v2722 = vadd.f32 %v1948, %v2720
    %v2723 = vtanh.pop %v2722
    %v2724 = vsub.f32 1.0, %v2710
    %2726 = vrot.lane.b32.xlu0 %v2723, 96
    %v2727 = vpop.permute.xlu0 %2726
    %v2729 = vmul.f32 %v2724, %v2727
    %v2730 = vrot.slane %v2624, 6
    %v2732 = vmul.f32 %v2710, %v2730
    %v2733 = vadd.f32 %v2729, %v2732
    %v2734 = vsel %vm952, %v1973, %v2085
    %v2735 = vsel %vm954, %v2734, %v2194
    %v2736 = vsel %vm956, %v2735, %v2303
    %v2737 = vsel %vm952, %v2407, %v2515
    %v2738 = vsel %vm954, %v2737, %v2624
    %v2739 = vsel %vm956, %v2738, %v2733
    %v2740 = vld [vmem:[%s6] sm:$0xff]
    %v2741 = vld [vmem:[%s6 + $0x8] sm:$0xff]
    %v2742 = vld [vmem:[%s6 + $0x10] sm:$0xff]
    %v2743 = vld [vmem:[%s6 + $0x18] sm:$0xff]
    %v2744 = vld [vmem:[%s6 + $0x20] sm:$0x1]
    %v2745 = vlaneseq
    %v2746 = vshrl.u32 %v2745, 7
    %v2747 = vsub.s32 0, %v2746
    %v2748 = vrot.slane %v2744, %v2747
    %2751 = vrot.lane.b32.xlu0 %v2736, 96
    %v2752 = vpop.permute.xlu0 %2751
    %2753 = vrot.lane.b32.xlu0 %v2739, 96
    %v2754 = vpop.permute.xlu0 %2753
    %v2755 = vsel %vm194, %v2752, 0
    %v2757 = vsel %vm194, %v2754, 0
    %2759 = vmatprep.subr.mxu0 0.0
    %2760 = vmatpush1.msra.mxu0 0.0
    %2761 = vmatprep.subr.mxu0 0.0
    %2762 = vmatpush1.msra.mxu0 0.0
    %2763 = vmatprep.subr.mxu0 0.0
    %2764 = vmatpush1.msra.mxu0 0.0
    %2765 = vmatprep.subr.mxu0 0.0
    %2766 = vmatpush1.msra.mxu0 0.0
    %2767 = vmatprep.subr.mxu0 0.0
    %2768 = vmatpush1.msra.mxu0 0.0
    %2769 = vmatprep.subr.mxu0 0.0
    %2770 = vmatpush1.msra.mxu0 0.0
    %2771 = vmatprep.subr.mxu0 0.0
    %2772 = vmatpush1.msra.mxu0 0.0
    %2773 = vmatprep.subr.mxu0 0.0
    %2774 = vmatpush1.msra.mxu0 0.0
    %2775 = vmatprep.subr.mxu0 0.0
    %2776 = vmatpush1.msra.mxu0 0.0
    %2777 = vmatprep.subr.mxu0 0.0
    %2778 = vmatpush1.msra.mxu0 0.0
    %2779 = vmatprep.subr.mxu0 0.0
    %2780 = vmatpush1.msra.mxu0 0.0
    %2781 = vmatprep.subr.mxu0 0.0
    %2782 = vmatpush1.msra.mxu0 0.0
    %2783 = vmatprep.subr.mxu0 0.0
    %2784 = vmatpush1.msra.mxu0 %v2743
    %2785 = vmatprep.subr.mxu0 0.0
    %2786 = vmatpush1.msra.mxu0 %v2742
    %2787 = vmatprep.subr.mxu0 0.0
    %2788 = vmatpush1.msra.mxu0 %v2741
    %2789 = vmatprep.subr.mxu0 0.0
    %2790 = vmatpush1.msra.mxu0 %v2740
    %2791 = vmatprep.subr.mxu0 0.0
    %2792 = vmatpush2.msra.mxu0 0.0
    %2793 = vmatprep.subr.mxu0 0.0
    %2794 = vmatpush2.msra.mxu0 0.0
    %2795 = vmatprep.subr.mxu0 0.0
    %2796 = vmatpush2.msra.mxu0 0.0
    %2797 = vmatprep.subr.mxu0 0.0
    %2798 = vmatpush2.msra.mxu0 0.0
    %2799 = vmatprep.subr.mxu0 0.0
    %2800 = vmatpush2.msra.mxu0 0.0
    %2801 = vmatprep.subr.mxu0 0.0
    %2802 = vmatpush2.msra.mxu0 0.0
    %2803 = vmatprep.subr.mxu0 0.0
    %2804 = vmatpush2.msra.mxu0 0.0
    %2805 = vmatprep.subr.mxu0 0.0
    %2806 = vmatpush2.msra.mxu0 0.0
    %2807 = vmatprep.subr.mxu0 0.0
    %2808 = vmatpush2.msra.mxu0 0.0
    %2809 = vmatprep.subr.mxu0 0.0
    %2810 = vmatpush2.msra.mxu0 0.0
    %2811 = vmatprep.subr.mxu0 0.0
    %2812 = vmatpush2.msra.mxu0 0.0
    %2813 = vmatprep.subr.mxu0 0.0
    %2814 = vmatpush2.msra.mxu0 0.0
    %2815 = vmatprep.subr.mxu0 0.0
    %2816 = vmatpush2.msra.mxu0 0.0
    %2817 = vmatprep.subr.mxu0 0.0
    %2818 = vmatpush2.msra.mxu0 0.0
    %2819 = vmatprep.subr.mxu0 0.0
    %2820 = vmatpush2.msra.mxu0 0.0
    %2821 = vmatprep.subr.mxu0 0.0
    %2822 = vmatpush2.msra.mxu0 0.0
    %2823 = vmatprep.mubr.f32.mxu0 0.0
    %2824 = vmatmul.mubr.f32.gmra.mxu0 %v2755
    %v2825 = vpop.f32.mrf.mxu0
    %v2826 = vadd.f32 %v2748, %v2825
    %v2827 = vpop.f32.mrf.mxu0
    %2828 = vmatprep.mubr.f32.mxu0 0.0
    %2829 = vmatmul.mubr.f32.gmra.mxu0 %v2757
    %v2830 = vpop.f32.mrf.mxu0
    %v2831 = vadd.f32 %v2748, %v2830
    %v2832 = vpop.f32.mrf.mxu0
    %2833 = vdwg.mxu0
    %v2834 = vmax.f32 %v2826, 0.0
    %v2835 = vmax.f32 %v2831, 0.0
    %v2836 = vld [vmem:[%s7] sm:$0xff]
    %v2837 = vld [vmem:[%s7 + $0x8] sm:$0xff]
    %v2838 = vld [vmem:[%s7 + $0x10] sm:$0xff]
    %v2839 = vld [vmem:[%s7 + $0x18] sm:$0xff]
    %v2840 = vld [vmem:[%s7 + $0x20] sm:$0xff]
    %v2841 = vld [vmem:[%s7 + $0x28] sm:$0xff]
    %v2842 = vld [vmem:[%s7 + $0x30] sm:$0xff]
    %v2843 = vld [vmem:[%s7 + $0x38] sm:$0xff]
    %v2844 = vld [vmem:[%s7 + $0x40] sm:$0xff]
    %v2845 = vld [vmem:[%s7 + $0x48] sm:$0xff]
    %v2846 = vld [vmem:[%s7 + $0x50] sm:$0x1]
    %v2847 = vlaneseq
    %v2848 = vshrl.u32 %v2847, 7
    %v2849 = vsub.s32 0, %v2848
    %v2850 = vrot.slane %v2846, %v2849
    %vm2851 = vcmask 654336
    %v2853 = vsel %vm2851, %v2834, 0
    %v2856 = vsel %vm2851, %v2835, 0
    %2858 = vmatprep.subr.mxu0 0.0
    %2859 = vmatpush1.msra.mxu0 0.0
    %2860 = vmatprep.subr.mxu0 0.0
    %2861 = vmatpush1.msra.mxu0 0.0
    %2862 = vmatprep.subr.mxu0 0.0
    %2863 = vmatpush1.msra.mxu0 0.0
    %2864 = vmatprep.subr.mxu0 0.0
    %2865 = vmatpush1.msra.mxu0 0.0
    %2866 = vmatprep.subr.mxu0 0.0
    %2867 = vmatpush1.msra.mxu0 0.0
    %2868 = vmatprep.subr.mxu0 0.0
    %2869 = vmatpush1.msra.mxu0 0.0
    %2870 = vmatprep.subr.mxu0 0.0
    %2871 = vmatpush1.msra.mxu0 %v2845
    %2872 = vmatprep.subr.mxu0 0.0
    %2873 = vmatpush1.msra.mxu0 %v2844
    %2874 = vmatprep.subr.mxu0 0.0
    %2875 = vmatpush1.msra.mxu0 %v2843
    %2876 = vmatprep.subr.mxu0 0.0
    %2877 = vmatpush1.msra.mxu0 %v2842
    %2878 = vmatprep.subr.mxu0 0.0
    %2879 = vmatpush1.msra.mxu0 %v2841
    %2880 = vmatprep.subr.mxu0 0.0
    %2881 = vmatpush1.msra.mxu0 %v2840
    %2882 = vmatprep.subr.mxu0 0.0
    %2883 = vmatpush1.msra.mxu0 %v2839
    %2884 = vmatprep.subr.mxu0 0.0
    %2885 = vmatpush1.msra.mxu0 %v2838
    %2886 = vmatprep.subr.mxu0 0.0
    %2887 = vmatpush1.msra.mxu0 %v2837
    %2888 = vmatprep.subr.mxu0 0.0
    %2889 = vmatpush1.msra.mxu0 %v2836
    %2890 = vmatprep.subr.mxu0 0.0
    %2891 = vmatpush2.msra.mxu0 0.0
    %2892 = vmatprep.subr.mxu0 0.0
    %2893 = vmatpush2.msra.mxu0 0.0
    %2894 = vmatprep.subr.mxu0 0.0
    %2895 = vmatpush2.msra.mxu0 0.0
    %2896 = vmatprep.subr.mxu0 0.0
    %2897 = vmatpush2.msra.mxu0 0.0
    %2898 = vmatprep.subr.mxu0 0.0
    %2899 = vmatpush2.msra.mxu0 0.0
    %2900 = vmatprep.subr.mxu0 0.0
    %2901 = vmatpush2.msra.mxu0 0.0
    %2902 = vmatprep.subr.mxu0 0.0
    %2903 = vmatpush2.msra.mxu0 0.0
    %2904 = vmatprep.subr.mxu0 0.0
    %2905 = vmatpush2.msra.mxu0 0.0
    %2906 = vmatprep.subr.mxu0 0.0
    %2907 = vmatpush2.msra.mxu0 0.0
    %2908 = vmatprep.subr.mxu0 0.0
    %2909 = vmatpush2.msra.mxu0 0.0
    %2910 = vmatprep.subr.mxu0 0.0
    %2911 = vmatpush2.msra.mxu0 0.0
    %2912 = vmatprep.subr.mxu0 0.0
    %2913 = vmatpush2.msra.mxu0 0.0
    %2914 = vmatprep.subr.mxu0 0.0
    %2915 = vmatpush2.msra.mxu0 0.0
    %2916 = vmatprep.subr.mxu0 0.0
    %2917 = vmatpush2.msra.mxu0 0.0
    %2918 = vmatprep.subr.mxu0 0.0
    %2919 = vmatpush2.msra.mxu0 0.0
    %2920 = vmatprep.subr.mxu0 0.0
    %2921 = vmatpush2.msra.mxu0 0.0
    %2922 = vmatprep.mubr.f32.mxu0 0.0
    %2923 = vmatmul.mubr.f32.gmra.mxu0 %v2853
    %v2924 = vpop.f32.mrf.mxu0
    %v2925 = vadd.f32 %v2850, %v2924
    %v2926 = vpop.f32.mrf.mxu0
    %2927 = vmatprep.mubr.f32.mxu0 0.0
    %2928 = vmatmul.mubr.f32.gmra.mxu0 %v2856
    %v2929 = vpop.f32.mrf.mxu0
    %v2930 = vadd.f32 %v2850, %v2929
    %v2931 = vpop.f32.mrf.mxu0
    %2932 = vdwg.mxu0
    %v2933 = vmax.f32 %v2925, 0.0
    %v2934 = vmax.f32 %v2930, 0.0
    %v2935 = vld [vmem:[%s8] sm:$0xff]
    %v2936 = vld [vmem:[%s8 + $0x8] sm:$0xff]
    %v2937 = vld [vmem:[%s8 + $0x10] sm:$0xff]
    %v2938 = vld [vmem:[%s8 + $0x18] sm:$0xff]
    %v2939 = vld [vmem:[%s8 + $0x20] sm:$0xff]
    %v2940 = vld [vmem:[%s8 + $0x28] sm:$0x1]
    %v2941 = vlaneseq
    %v2942 = vshrl.u32 %v2941, 7
    %v2943 = vsub.s32 0, %v2942
    %v2944 = vrot.slane %v2940, %v2943
    %vm2945 = vcmask 326656
    %v2947 = vsel %vm2945, %v2933, 0
    %v2950 = vsel %vm2945, %v2934, 0
    %2952 = vmatprep.subr.mxu0 0.0
    %2953 = vmatpush1.msra.mxu0 0.0
    %2954 = vmatprep.subr.mxu0 0.0
    %2955 = vmatpush1.msra.mxu0 0.0
    %2956 = vmatprep.subr.mxu0 0.0
    %2957 = vmatpush1.msra.mxu0 0.0
    %2958 = vmatprep.subr.mxu0 0.0
    %2959 = vmatpush1.msra.mxu0 0.0
    %2960 = vmatprep.subr.mxu0 0.0
    %2961 = vmatpush1.msra.mxu0 0.0
    %2962 = vmatprep.subr.mxu0 0.0
    %2963 = vmatpush1.msra.mxu0 0.0
    %2964 = vmatprep.subr.mxu0 0.0
    %2965 = vmatpush1.msra.mxu0 0.0
    %2966 = vmatprep.subr.mxu0 0.0
    %2967 = vmatpush1.msra.mxu0 0.0
    %2968 = vmatprep.subr.mxu0 0.0
    %2969 = vmatpush1.msra.mxu0 0.0
    %2970 = vmatprep.subr.mxu0 0.0
    %2971 = vmatpush1.msra.mxu0 0.0
    %2972 = vmatprep.subr.mxu0 0.0
    %2973 = vmatpush1.msra.mxu0 0.0
    %2974 = vmatprep.subr.mxu0 0.0
    %2975 = vmatpush1.msra.mxu0 %v2939
    %2976 = vmatprep.subr.mxu0 0.0
    %2977 = vmatpush1.msra.mxu0 %v2938
    %2978 = vmatprep.subr.mxu0 0.0
    %2979 = vmatpush1.msra.mxu0 %v2937
    %2980 = vmatprep.subr.mxu0 0.0
    %2981 = vmatpush1.msra.mxu0 %v2936
    %2982 = vmatprep.subr.mxu0 0.0
    %2983 = vmatpush1.msra.mxu0 %v2935
    %2984 = vmatprep.subr.mxu0 0.0
    %2985 = vmatpush2.msra.mxu0 0.0
    %2986 = vmatprep.subr.mxu0 0.0
    %2987 = vmatpush2.msra.mxu0 0.0
    %2988 = vmatprep.subr.mxu0 0.0
    %2989 = vmatpush2.msra.mxu0 0.0
    %2990 = vmatprep.subr.mxu0 0.0
    %2991 = vmatpush2.msra.mxu0 0.0
    %2992 = vmatprep.subr.mxu0 0.0
    %2993 = vmatpush2.msra.mxu0 0.0
    %2994 = vmatprep.subr.mxu0 0.0
    %2995 = vmatpush2.msra.mxu0 0.0
    %2996 = vmatprep.subr.mxu0 0.0
    %2997 = vmatpush2.msra.mxu0 0.0
    %2998 = vmatprep.subr.mxu0 0.0
    %2999 = vmatpush2.msra.mxu0 0.0
    %3000 = vmatprep.subr.mxu0 0.0
    %3001 = vmatpush2.msra.mxu0 0.0
    %3002 = vmatprep.subr.mxu0 0.0
    %3003 = vmatpush2.msra.mxu0 0.0
    %3004 = vmatprep.subr.mxu0 0.0
    %3005 = vmatpush2.msra.mxu0 0.0
    %3006 = vmatprep.subr.mxu0 0.0
    %3007 = vmatpush2.msra.mxu0 0.0
    %3008 = vmatprep.subr.mxu0 0.0
    %3009 = vmatpush2.msra.mxu0 0.0
    %3010 = vmatprep.subr.mxu0 0.0
    %3011 = vmatpush2.msra.mxu0 0.0
    %3012 = vmatprep.subr.mxu0 0.0
    %3013 = vmatpush2.msra.mxu0 0.0
    %3014 = vmatprep.subr.mxu0 0.0
    %3015 = vmatpush2.msra.mxu0 0.0
    %3016 = vmatprep.mubr.f32.mxu0 0.0
    %3017 = vmatmul.mubr.f32.gmra.mxu0 %v2947
    %v3018 = vpop.f32.mrf.mxu0
    %v3019 = vadd.f32 %v2944, %v3018
    %v3020 = vpop.f32.mrf.mxu0
    %3021 = vmatprep.mubr.f32.mxu0 0.0
    %3022 = vmatmul.mubr.f32.gmra.mxu0 %v2950
    %v3023 = vpop.f32.mrf.mxu0
    %v3024 = vadd.f32 %v2944, %v3023
    %v3025 = vpop.f32.mrf.mxu0
    %3026 = vdwg.mxu0
    %v3027 = vmax.f32 %v3019, 0.0
    %v3028 = vmax.f32 %v3024, 0.0
    %v3029 = vld [vmem:[%s9] sm:$0xff]
    %v3030 = vld [vmem:[%s9 + $0x8] sm:$0xff]
    %v3031 = vld [vmem:[%s9 + $0x10] sm:$0xf]
    %v3032 = vld [vmem:[%s9 + $0x14] sm:$0x1]
    %v3033 = vlaneseq
    %v3034 = vshrl.u32 %v3033, 7
    %v3035 = vsub.s32 0, %v3034
    %v3036 = vrot.slane %v3032, %v3035
    %vm3037 = vcmask 162816
    %v3039 = vsel %vm3037, %v3027, 0
    %v3042 = vsel %vm3037, %v3028, 0
    %v3045 = vsel %vm954, %v3031, 0
    %3047 = vmatprep.subr.mxu0 0.0
    %3048 = vmatpush1.msra.mxu0 0.0
    %3049 = vmatprep.subr.mxu0 0.0
    %3050 = vmatpush1.msra.mxu0 0.0
    %3051 = vmatprep.subr.mxu0 0.0
    %3052 = vmatpush1.msra.mxu0 0.0
    %3053 = vmatprep.subr.mxu0 0.0
    %3054 = vmatpush1.msra.mxu0 0.0
    %3055 = vmatprep.subr.mxu0 0.0
    %3056 = vmatpush1.msra.mxu0 0.0
    %3057 = vmatprep.subr.mxu0 0.0
    %3058 = vmatpush1.msra.mxu0 0.0
    %3059 = vmatprep.subr.mxu0 0.0
    %3060 = vmatpush1.msra.mxu0 0.0
    %3061 = vmatprep.subr.mxu0 0.0
    %3062 = vmatpush1.msra.mxu0 0.0
    %3063 = vmatprep.subr.mxu0 0.0
    %3064 = vmatpush1.msra.mxu0 0.0
    %3065 = vmatprep.subr.mxu0 0.0
    %3066 = vmatpush1.msra.mxu0 0.0
    %3067 = vmatprep.subr.mxu0 0.0
    %3068 = vmatpush1.msra.mxu0 0.0
    %3069 = vmatprep.subr.mxu0 0.0
    %3070 = vmatpush1.msra.mxu0 0.0
    %3071 = vmatprep.subr.mxu0 0.0
    %3072 = vmatpush1.msra.mxu0 0.0
    %3073 = vmatprep.subr.mxu0 0.0
    %3074 = vmatpush1.msra.mxu0 %v3045
    %3075 = vmatprep.subr.mxu0 0.0
    %3076 = vmatpush1.msra.mxu0 %v3030
    %3077 = vmatprep.subr.mxu0 0.0
    %3078 = vmatpush1.msra.mxu0 %v3029
    %3079 = vmatprep.subr.mxu0 0.0
    %3080 = vmatpush2.msra.mxu0 0.0
    %3081 = vmatprep.subr.mxu0 0.0
    %3082 = vmatpush2.msra.mxu0 0.0
    %3083 = vmatprep.subr.mxu0 0.0
    %3084 = vmatpush2.msra.mxu0 0.0
    %3085 = vmatprep.subr.mxu0 0.0
    %3086 = vmatpush2.msra.mxu0 0.0
    %3087 = vmatprep.subr.mxu0 0.0
    %3088 = vmatpush2.msra.mxu0 0.0
    %3089 = vmatprep.subr.mxu0 0.0
    %3090 = vmatpush2.msra.mxu0 0.0
    %3091 = vmatprep.subr.mxu0 0.0
    %3092 = vmatpush2.msra.mxu0 0.0
    %3093 = vmatprep.subr.mxu0 0.0
    %3094 = vmatpush2.msra.mxu0 0.0
    %3095 = vmatprep.subr.mxu0 0.0
    %3096 = vmatpush2.msra.mxu0 0.0
    %3097 = vmatprep.subr.mxu0 0.0
    %3098 = vmatpush2.msra.mxu0 0.0
    %3099 = vmatprep.subr.mxu0 0.0
    %3100 = vmatpush2.msra.mxu0 0.0
    %3101 = vmatprep.subr.mxu0 0.0
    %3102 = vmatpush2.msra.mxu0 0.0
    %3103 = vmatprep.subr.mxu0 0.0
    %3104 = vmatpush2.msra.mxu0 0.0
    %3105 = vmatprep.subr.mxu0 0.0
    %3106 = vmatpush2.msra.mxu0 0.0
    %3107 = vmatprep.subr.mxu0 0.0
    %3108 = vmatpush2.msra.mxu0 0.0
    %3109 = vmatprep.subr.mxu0 0.0
    %3110 = vmatpush2.msra.mxu0 0.0
    %3111 = vmatprep.mubr.f32.mxu0 0.0
    %3112 = vmatmul.mubr.f32.gmra.mxu0 %v3039
    %v3113 = vpop.f32.mrf.mxu0
    %v3114 = vadd.f32 %v3036, %v3113
    %v3115 = vpop.f32.mrf.mxu0
    %3116 = vmatprep.mubr.f32.mxu0 0.0
    %3117 = vmatmul.mubr.f32.gmra.mxu0 %v3042
    %v3118 = vpop.f32.mrf.mxu0
    %v3119 = vadd.f32 %v3036, %v3118
    %v3120 = vpop.f32.mrf.mxu0
    %3121 = vdwg.mxu0
    %v3122 = vxor.u32 %v3114, 2147483648
    %v3123 = vxor.u32 %v3119, 2147483648
    %v3124 = vmul.f32 %v3122, 1.442695
    %v3125 = vpow.pop %v3124
    %v3126 = vmul.f32 %v3123, 1.442695
    %v3127 = vpow.pop %v3126
    %v3128 = vadd.f32 %v3125, 1.0
    %v3129 = vadd.f32 %v3127, 1.0
    %v3130 = vrcp.pop %v3128
    %v3131 = vmul.f32 1.0, %v3130
    %v3132 = vrcp.pop %v3129
    %v3133 = vmul.f32 1.0, %v3132
    %vm3134 = vcmask 31744
    %3135 = vst.msk [vmem:[%s10] sm:$0xff] %vm3134, %v3131
    %3136 = vst.msk [vmem:[%s10 + $0x8] sm:$0xff] %vm3134, %v3133
    // Predicated region
    $region54: #{simple_rnn_forward.1} parent=1 // pred_check
      _
    $region55: #{simple_rnn_forward.1} parent=1 // pred_check_branch
      %3138 = sbr.rel (0) target = $region57
    $region56: #{simple_rnn_forward.1} parent=1 // pred_region
      _
    $region57: #{simple_rnn_forward.1} parent=1 // pred_fallthru
      _
    // Predicated region
    $region58: #{simple_rnn_forward.1} parent=1 // pred_check
      _
    $region59: #{simple_rnn_forward.1} parent=1 // pred_check_branch
      %3140 = sbr.rel (0) target = $region61
    $region60: #{simple_rnn_forward.1} parent=1 // pred_region
      _
    $region61: #{simple_rnn_forward.1} parent=1 // pred_fallthru
      _
    %3141 = vsyncpa [#allocation3], 1
    %3142 = vsyncpa [#allocation5], 1

</llo_original>
